<compile_context>
chip_gen: v5e
topology: v5e:2x2
jax: 0.10.0
libtpu: 0.0.40
codegen_flags: <defaults>
</compile_context>

<pallas_src>
import jax
import jax.numpy as jnp
from jax.experimental import pallas as pl
from jax.experimental.pallas import tpu as pltpu


def _lstm_kernel(x_ref, wih_ref, whh_ref, b_ref, wfc_ref, bfc_ref, out_ref):
    H = whh_ref.shape[0]               # hidden size
    G = 4 * H                          # gate width
    B = out_ref.shape[0]               # batch
    T = x_ref.shape[0] // B            # timesteps (x is batch-major (B*T, I))
    f32 = jnp.float32
    HIGH = jax.lax.Precision.HIGHEST

    # ---- Prologue (off the serial chain) --------------------------------
    # Hoisted input projection: one (B*T, I) @ (I, 4H) matmul, b_ih+b_hh folded.
    gates_x = (jnp.dot(x_ref[...], wih_ref[...],
                       preferred_element_type=f32, precision=HIGH)
               + b_ref[...])                                   # (B*T, 4H)
    gxr = gates_x.reshape(B, T, G)     # batch-major view; static per-step slice

    whh = whh_ref[...]                 # (H, 4H): identical RHS for all T steps

    # Hoisted lane masks for the single full-vreg tanh trick:
    #   sigmoid(z) = 0.5 * (tanh(0.5 * z) + 1)   on i/f/o lanes,
    #   tanh(z)                                   on g lanes.
    lane = jax.lax.broadcasted_iota(jnp.int32, (B, G), 1)
    is_g = (lane >= 2 * H) & (lane < 3 * H)
    pre = jnp.where(is_g, 1.0, 0.5).astype(f32)    # pre-tanh scale
    post = pre                                      # post-tanh scale
    shift = jnp.where(is_g, 0.0, 0.5).astype(f32)   # post-tanh shift

    h = jnp.zeros((B, H), f32)
    c = jnp.zeros((B, H), f32)

    # ---- Fully unrolled serial recurrence --------------------------------
    for t in range(T):
        z = gxr[:, t, :] + jnp.dot(h, whh, preferred_element_type=f32,
                                   precision=HIGH)             # (B, 4H)
        a = jnp.tanh(z * pre) * post + shift                   # 1 full-vreg tanh
        i_g = a[:, 0 * H:1 * H]
        f_g = a[:, 1 * H:2 * H]
        g_g = a[:, 2 * H:3 * H]
        o_g = a[:, 3 * H:4 * H]
        c = f_g * c + i_g * g_g
        h = o_g * jnp.tanh(c)                                  # 2nd (last) EUP op

    # ---- Final Linear on the last hidden state ---------------------------
    out_ref[...] = (jnp.dot(h, wfc_ref[...], preferred_element_type=f32,
                            precision=HIGH)
                    + bfc_ref[...]).astype(out_ref.dtype)


def prepare_params(w_ih, w_hh, b_ih, b_hh, w_fc, b_fc):
    """One-time re-layout of PyTorch-layout params (call once at init, outside
    jit): transposed weights + folded bias so the per-call path has zero extra
    XLA ops."""
    wih_t = jnp.asarray(w_ih, jnp.float32).T                     # (I, 4H)
    whh_t = jnp.asarray(w_hh, jnp.float32).T                     # (H, 4H)
    b = (jnp.asarray(b_ih, jnp.float32)
         + jnp.asarray(b_hh, jnp.float32)).reshape(1, -1)        # (1, 4H)
    wfc_t = jnp.asarray(w_fc, jnp.float32).T                     # (H, O)
    bfc = jnp.asarray(b_fc, jnp.float32).reshape(1, -1)          # (1, O)
    return wih_t, whh_t, b, wfc_t, bfc


@jax.jit
def lstm_model_forward(x, wih_t, whh_t, b, wfc_t, bfc):
    """x: (B, T, I) batch_first; params already prepared by prepare_params."""
    B, T, I = x.shape
    O = wfc_t.shape[1]
    # Contiguous (B, T, I) -> (B*T, I): free reshape, no transpose copy.
    x2d = x.reshape(B * T, I).astype(jnp.float32)

    vmem = pl.BlockSpec(memory_space=pltpu.MemorySpace.VMEM)
    return pl.pallas_call(
        _lstm_kernel,
        out_shape=jax.ShapeDtypeStruct((B, O), jnp.float32),
        in_specs=[vmem] * 6,               # whole arrays resident in VMEM
        out_specs=vmem,                    # no grid -> no pipeline bookkeeping
    )(x2d, wih_t, whh_t, b, wfc_t, bfc)


def _reference_forward(x, w_ih, w_hh, b_ih, b_hh, w_fc, b_fc):
    """Pure-JAX reference mirroring torch nn.LSTM (batch_first) + Linear."""
    B, T, I = x.shape
    H = w_hh.shape[1]
    HIGH = jax.lax.Precision.HIGHEST

    def step(carry, x_t):
        h, c = carry
        gates = (jnp.dot(x_t, w_ih.T, precision=HIGH)
                 + jnp.dot(h, w_hh.T, precision=HIGH) + b_ih + b_hh)
        i = jax.nn.sigmoid(gates[:, 0 * H:1 * H])
        f = jax.nn.sigmoid(gates[:, 1 * H:2 * H])
        g = jnp.tanh(gates[:, 2 * H:3 * H])
        o = jax.nn.sigmoid(gates[:, 3 * H:4 * H])
        c = f * c + i * g
        h = o * jnp.tanh(c)
        return (h, c), None

    h0 = jnp.zeros((B, H), jnp.float32)
    c0 = jnp.zeros((B, H), jnp.float32)
    (h_last, _), _ = jax.lax.scan(step, (h0, c0), jnp.transpose(x, (1, 0, 2)))
    return jnp.dot(h_last, w_fc.T, precision=HIGH) + b_fc


if __name__ == "__main__":
    # Small shapes consistent with the module's forward.
    B, T, I, H, O = 8, 8, 16, 32, 4

    key = jax.random.PRNGKey(0)
    keys = jax.random.split(key, 7)
    scale = 1.0 / jnp.sqrt(H)
    x = jax.random.normal(keys[0], (B, T, I), jnp.float32)
    w_ih = jax.random.uniform(keys[1], (4 * H, I), jnp.float32, -scale, scale)
    w_hh = jax.random.uniform(keys[2], (4 * H, H), jnp.float32, -scale, scale)
    b_ih = jax.random.uniform(keys[3], (4 * H,), jnp.float32, -scale, scale)
    b_hh = jax.random.uniform(keys[4], (4 * H,), jnp.float32, -scale, scale)
    w_fc = jax.random.uniform(keys[5], (O, H), jnp.float32, -scale, scale)
    b_fc = jax.random.uniform(keys[6], (O,), jnp.float32, -scale, scale)

    # One-time param re-layout (outside jit / per-call path).
    params = prepare_params(w_ih, w_hh, b_ih, b_hh, w_fc, b_fc)
    params = jax.tree.map(jax.block_until_ready, params)

    out = lstm_model_forward(x, *params)
    jax.block_until_ready(out)

    ref = _reference_forward(x, w_ih, w_hh, b_ih, b_hh, w_fc, b_fc)
    assert out.shape == (B, O)
    assert jnp.allclose(out, ref, atol=1e-5, rtol=1e-5), "mismatch vs reference"

    print("KERNEL_OK")
</pallas_src>

<mosaic_0001>
module attributes {stable_mosaic.version = 11 : i64} {
  func.func @_lstm_kernel(%arg0: memref<64x16xf32, #tpu.memory_space<vmem>>, %arg1: memref<16x128xf32, #tpu.memory_space<vmem>>, %arg2: memref<32x128xf32, #tpu.memory_space<vmem>>, %arg3: memref<1x128xf32, #tpu.memory_space<vmem>>, %arg4: memref<32x4xf32, #tpu.memory_space<vmem>>, %arg5: memref<1x4xf32, #tpu.memory_space<vmem>>, %arg6: memref<8x4xf32, #tpu.memory_space<vmem>>) attributes {dimension_semantics = [], scalar_prefetch = 0 : i64, scratch_operands = 0 : i64, tpu.core_type = #tpu.core_type<tc>} {
    %c0 = arith.constant 0 : index
    %c0_0 = arith.constant 0 : index
    %0 = vector.load %arg0[%c0, %c0_0] : memref<64x16xf32, #tpu.memory_space<vmem>>, vector<64x16xf32>
    %c0_1 = arith.constant 0 : index
    %c0_2 = arith.constant 0 : index
    %1 = vector.load %arg1[%c0_1, %c0_2] : memref<16x128xf32, #tpu.memory_space<vmem>>, vector<16x128xf32>
    %cst = arith.constant dense<0.000000e+00> : vector<64x128xf32>
    %2 = tpu.matmul %0, %1, %cst {dimension_numbers = #tpu.dot_dimension_numbers<[1], [0], [0], [1], [0, 0, 1, 1], [], []>, precision = #tpu.contract_precision<fp32>} : vector<64x16xf32>, vector<16x128xf32>, vector<64x128xf32> -> vector<64x128xf32>
    %c0_3 = arith.constant 0 : index
    %c0_4 = arith.constant 0 : index
    %3 = vector.load %arg3[%c0_3, %c0_4] : memref<1x128xf32, #tpu.memory_space<vmem>>, vector<1x128xf32>
    %4 = vector.broadcast %3 : vector<1x128xf32> to vector<64x128xf32>
    %5 = arith.addf %2, %4 : vector<64x128xf32>
    %6 = vector.shape_cast %5 : vector<64x128xf32> to vector<8x8x128xf32>
    %c0_5 = arith.constant 0 : index
    %c0_6 = arith.constant 0 : index
    %7 = vector.load %arg2[%c0_5, %c0_6] : memref<32x128xf32, #tpu.memory_space<vmem>>, vector<32x128xf32>
    %8 = tpu.iota {dimensions = array<i32: 1>} : vector<8x128xi32>
    %c64_i32 = arith.constant 64 : i32
    %9 = vector.broadcast %c64_i32 : i32 to vector<8x128xi32>
    %10 = arith.cmpi sge, %8, %9 : vector<8x128xi32>
    %c96_i32 = arith.constant 96 : i32
    %11 = vector.broadcast %c96_i32 : i32 to vector<8x128xi32>
    %12 = arith.cmpi slt, %8, %11 : vector<8x128xi32>
    %13 = arith.andi %10, %12 : vector<8x128xi1>
    %cst_7 = arith.constant 1.000000e+00 : f32
    %cst_8 = arith.constant 5.000000e-01 : f32
    %14 = vector.broadcast %cst_7 : f32 to vector<8x128xf32>
    %15 = vector.broadcast %cst_8 : f32 to vector<8x128xf32>
    %16 = arith.select %13, %14, %15 : vector<8x128xi1>, vector<8x128xf32>
    %cst_9 = arith.constant 0.000000e+00 : f32
    %cst_10 = arith.constant 5.000000e-01 : f32
    %17 = vector.broadcast %cst_9 : f32 to vector<8x128xf32>
    %18 = vector.broadcast %cst_10 : f32 to vector<8x128xf32>
    %19 = arith.select %13, %17, %18 : vector<8x128xi1>, vector<8x128xf32>
    %cst_11 = arith.constant 0.000000e+00 : f32
    %20 = vector.broadcast %cst_11 : f32 to vector<8x32xf32>
    %cst_12 = arith.constant 0.000000e+00 : f32
    %21 = vector.broadcast %cst_12 : f32 to vector<8x32xf32>
    %22 = vector.extract_strided_slice %6 {offsets = [0, 0, 0], sizes = [8, 1, 128], strides = [1, 1, 1]} : vector<8x8x128xf32> to vector<8x1x128xf32>
    %23 = vector.shape_cast %22 : vector<8x1x128xf32> to vector<8x128xf32>
    %cst_13 = arith.constant dense<0.000000e+00> : vector<8x128xf32>
    %24 = tpu.matmul %20, %7, %cst_13 {dimension_numbers = #tpu.dot_dimension_numbers<[1], [0], [0], [1], [0, 0, 1, 1], [], []>, precision = #tpu.contract_precision<fp32>} : vector<8x32xf32>, vector<32x128xf32>, vector<8x128xf32> -> vector<8x128xf32>
    %25 = arith.addf %23, %24 : vector<8x128xf32>
    %26 = arith.mulf %25, %16 : vector<8x128xf32>
    %27 = math.tanh %26 : vector<8x128xf32>
    %28 = arith.mulf %27, %16 : vector<8x128xf32>
    %29 = arith.addf %28, %19 : vector<8x128xf32>
    %30 = vector.extract_strided_slice %29 {offsets = [0, 0], sizes = [8, 32], strides = [1, 1]} : vector<8x128xf32> to vector<8x32xf32>
    %31 = vector.extract_strided_slice %29 {offsets = [0, 32], sizes = [8, 32], strides = [1, 1]} : vector<8x128xf32> to vector<8x32xf32>
    %32 = vector.extract_strided_slice %29 {offsets = [0, 64], sizes = [8, 32], strides = [1, 1]} : vector<8x128xf32> to vector<8x32xf32>
    %33 = vector.extract_strided_slice %29 {offsets = [0, 96], sizes = [8, 32], strides = [1, 1]} : vector<8x128xf32> to vector<8x32xf32>
    %34 = arith.mulf %31, %21 : vector<8x32xf32>
    %35 = arith.mulf %30, %32 : vector<8x32xf32>
    %36 = arith.addf %34, %35 : vector<8x32xf32>
    %37 = math.tanh %36 : vector<8x32xf32>
    %38 = arith.mulf %33, %37 : vector<8x32xf32>
    %39 = vector.extract_strided_slice %6 {offsets = [0, 1, 0], sizes = [8, 1, 128], strides = [1, 1, 1]} : vector<8x8x128xf32> to vector<8x1x128xf32>
    %40 = vector.shape_cast %39 : vector<8x1x128xf32> to vector<8x128xf32>
    %cst_14 = arith.constant dense<0.000000e+00> : vector<8x128xf32>
    %41 = tpu.matmul %38, %7, %cst_14 {dimension_numbers = #tpu.dot_dimension_numbers<[1], [0], [0], [1], [0, 0, 1, 1], [], []>, precision = #tpu.contract_precision<fp32>} : vector<8x32xf32>, vector<32x128xf32>, vector<8x128xf32> -> vector<8x128xf32>
    %42 = arith.addf %40, %41 : vector<8x128xf32>
    %43 = arith.mulf %42, %16 : vector<8x128xf32>
    %44 = math.tanh %43 : vector<8x128xf32>
    %45 = arith.mulf %44, %16 : vector<8x128xf32>
    %46 = arith.addf %45, %19 : vector<8x128xf32>
    %47 = vector.extract_strided_slice %46 {offsets = [0, 0], sizes = [8, 32], strides = [1, 1]} : vector<8x128xf32> to vector<8x32xf32>
    %48 = vector.extract_strided_slice %46 {offsets = [0, 32], sizes = [8, 32], strides = [1, 1]} : vector<8x128xf32> to vector<8x32xf32>
    %49 = vector.extract_strided_slice %46 {offsets = [0, 64], sizes = [8, 32], strides = [1, 1]} : vector<8x128xf32> to vector<8x32xf32>
    %50 = vector.extract_strided_slice %46 {offsets = [0, 96], sizes = [8, 32], strides = [1, 1]} : vector<8x128xf32> to vector<8x32xf32>
    %51 = arith.mulf %48, %36 : vector<8x32xf32>
    %52 = arith.mulf %47, %49 : vector<8x32xf32>
    %53 = arith.addf %51, %52 : vector<8x32xf32>
    %54 = math.tanh %53 : vector<8x32xf32>
    %55 = arith.mulf %50, %54 : vector<8x32xf32>
    %56 = vector.extract_strided_slice %6 {offsets = [0, 2, 0], sizes = [8, 1, 128], strides = [1, 1, 1]} : vector<8x8x128xf32> to vector<8x1x128xf32>
    %57 = vector.shape_cast %56 : vector<8x1x128xf32> to vector<8x128xf32>
    %cst_15 = arith.constant dense<0.000000e+00> : vector<8x128xf32>
    %58 = tpu.matmul %55, %7, %cst_15 {dimension_numbers = #tpu.dot_dimension_numbers<[1], [0], [0], [1], [0, 0, 1, 1], [], []>, precision = #tpu.contract_precision<fp32>} : vector<8x32xf32>, vector<32x128xf32>, vector<8x128xf32> -> vector<8x128xf32>
    %59 = arith.addf %57, %58 : vector<8x128xf32>
    %60 = arith.mulf %59, %16 : vector<8x128xf32>
    %61 = math.tanh %60 : vector<8x128xf32>
    %62 = arith.mulf %61, %16 : vector<8x128xf32>
    %63 = arith.addf %62, %19 : vector<8x128xf32>
    %64 = vector.extract_strided_slice %63 {offsets = [0, 0], sizes = [8, 32], strides = [1, 1]} : vector<8x128xf32> to vector<8x32xf32>
    %65 = vector.extract_strided_slice %63 {offsets = [0, 32], sizes = [8, 32], strides = [1, 1]} : vector<8x128xf32> to vector<8x32xf32>
    %66 = vector.extract_strided_slice %63 {offsets = [0, 64], sizes = [8, 32], strides = [1, 1]} : vector<8x128xf32> to vector<8x32xf32>
    %67 = vector.extract_strided_slice %63 {offsets = [0, 96], sizes = [8, 32], strides = [1, 1]} : vector<8x128xf32> to vector<8x32xf32>
    %68 = arith.mulf %65, %53 : vector<8x32xf32>
    %69 = arith.mulf %64, %66 : vector<8x32xf32>
    %70 = arith.addf %68, %69 : vector<8x32xf32>
    %71 = math.tanh %70 : vector<8x32xf32>
    %72 = arith.mulf %67, %71 : vector<8x32xf32>
    %73 = vector.extract_strided_slice %6 {offsets = [0, 3, 0], sizes = [8, 1, 128], strides = [1, 1, 1]} : vector<8x8x128xf32> to vector<8x1x128xf32>
    %74 = vector.shape_cast %73 : vector<8x1x128xf32> to vector<8x128xf32>
    %cst_16 = arith.constant dense<0.000000e+00> : vector<8x128xf32>
    %75 = tpu.matmul %72, %7, %cst_16 {dimension_numbers = #tpu.dot_dimension_numbers<[1], [0], [0], [1], [0, 0, 1, 1], [], []>, precision = #tpu.contract_precision<fp32>} : vector<8x32xf32>, vector<32x128xf32>, vector<8x128xf32> -> vector<8x128xf32>
    %76 = arith.addf %74, %75 : vector<8x128xf32>
    %77 = arith.mulf %76, %16 : vector<8x128xf32>
    %78 = math.tanh %77 : vector<8x128xf32>
    %79 = arith.mulf %78, %16 : vector<8x128xf32>
    %80 = arith.addf %79, %19 : vector<8x128xf32>
    %81 = vector.extract_strided_slice %80 {offsets = [0, 0], sizes = [8, 32], strides = [1, 1]} : vector<8x128xf32> to vector<8x32xf32>
    %82 = vector.extract_strided_slice %80 {offsets = [0, 32], sizes = [8, 32], strides = [1, 1]} : vector<8x128xf32> to vector<8x32xf32>
    %83 = vector.extract_strided_slice %80 {offsets = [0, 64], sizes = [8, 32], strides = [1, 1]} : vector<8x128xf32> to vector<8x32xf32>
    %84 = vector.extract_strided_slice %80 {offsets = [0, 96], sizes = [8, 32], strides = [1, 1]} : vector<8x128xf32> to vector<8x32xf32>
    %85 = arith.mulf %82, %70 : vector<8x32xf32>
    %86 = arith.mulf %81, %83 : vector<8x32xf32>
    %87 = arith.addf %85, %86 : vector<8x32xf32>
    %88 = math.tanh %87 : vector<8x32xf32>
    %89 = arith.mulf %84, %88 : vector<8x32xf32>
    %90 = vector.extract_strided_slice %6 {offsets = [0, 4, 0], sizes = [8, 1, 128], strides = [1, 1, 1]} : vector<8x8x128xf32> to vector<8x1x128xf32>
    %91 = vector.shape_cast %90 : vector<8x1x128xf32> to vector<8x128xf32>
    %cst_17 = arith.constant dense<0.000000e+00> : vector<8x128xf32>
    %92 = tpu.matmul %89, %7, %cst_17 {dimension_numbers = #tpu.dot_dimension_numbers<[1], [0], [0], [1], [0, 0, 1, 1], [], []>, precision = #tpu.contract_precision<fp32>} : vector<8x32xf32>, vector<32x128xf32>, vector<8x128xf32> -> vector<8x128xf32>
    %93 = arith.addf %91, %92 : vector<8x128xf32>
    %94 = arith.mulf %93, %16 : vector<8x128xf32>
    %95 = math.tanh %94 : vector<8x128xf32>
    %96 = arith.mulf %95, %16 : vector<8x128xf32>
    %97 = arith.addf %96, %19 : vector<8x128xf32>
    %98 = vector.extract_strided_slice %97 {offsets = [0, 0], sizes = [8, 32], strides = [1, 1]} : vector<8x128xf32> to vector<8x32xf32>
    %99 = vector.extract_strided_slice %97 {offsets = [0, 32], sizes = [8, 32], strides = [1, 1]} : vector<8x128xf32> to vector<8x32xf32>
    %100 = vector.extract_strided_slice %97 {offsets = [0, 64], sizes = [8, 32], strides = [1, 1]} : vector<8x128xf32> to vector<8x32xf32>
    %101 = vector.extract_strided_slice %97 {offsets = [0, 96], sizes = [8, 32], strides = [1, 1]} : vector<8x128xf32> to vector<8x32xf32>
    %102 = arith.mulf %99, %87 : vector<8x32xf32>
    %103 = arith.mulf %98, %100 : vector<8x32xf32>
    %104 = arith.addf %102, %103 : vector<8x32xf32>
    %105 = math.tanh %104 : vector<8x32xf32>
    %106 = arith.mulf %101, %105 : vector<8x32xf32>
    %107 = vector.extract_strided_slice %6 {offsets = [0, 5, 0], sizes = [8, 1, 128], strides = [1, 1, 1]} : vector<8x8x128xf32> to vector<8x1x128xf32>
    %108 = vector.shape_cast %107 : vector<8x1x128xf32> to vector<8x128xf32>
    %cst_18 = arith.constant dense<0.000000e+00> : vector<8x128xf32>
    %109 = tpu.matmul %106, %7, %cst_18 {dimension_numbers = #tpu.dot_dimension_numbers<[1], [0], [0], [1], [0, 0, 1, 1], [], []>, precision = #tpu.contract_precision<fp32>} : vector<8x32xf32>, vector<32x128xf32>, vector<8x128xf32> -> vector<8x128xf32>
    %110 = arith.addf %108, %109 : vector<8x128xf32>
    %111 = arith.mulf %110, %16 : vector<8x128xf32>
    %112 = math.tanh %111 : vector<8x128xf32>
    %113 = arith.mulf %112, %16 : vector<8x128xf32>
    %114 = arith.addf %113, %19 : vector<8x128xf32>
    %115 = vector.extract_strided_slice %114 {offsets = [0, 0], sizes = [8, 32], strides = [1, 1]} : vector<8x128xf32> to vector<8x32xf32>
    %116 = vector.extract_strided_slice %114 {offsets = [0, 32], sizes = [8, 32], strides = [1, 1]} : vector<8x128xf32> to vector<8x32xf32>
    %117 = vector.extract_strided_slice %114 {offsets = [0, 64], sizes = [8, 32], strides = [1, 1]} : vector<8x128xf32> to vector<8x32xf32>
    %118 = vector.extract_strided_slice %114 {offsets = [0, 96], sizes = [8, 32], strides = [1, 1]} : vector<8x128xf32> to vector<8x32xf32>
    %119 = arith.mulf %116, %104 : vector<8x32xf32>
    %120 = arith.mulf %115, %117 : vector<8x32xf32>
    %121 = arith.addf %119, %120 : vector<8x32xf32>
    %122 = math.tanh %121 : vector<8x32xf32>
    %123 = arith.mulf %118, %122 : vector<8x32xf32>
    %124 = vector.extract_strided_slice %6 {offsets = [0, 6, 0], sizes = [8, 1, 128], strides = [1, 1, 1]} : vector<8x8x128xf32> to vector<8x1x128xf32>
    %125 = vector.shape_cast %124 : vector<8x1x128xf32> to vector<8x128xf32>
    %cst_19 = arith.constant dense<0.000000e+00> : vector<8x128xf32>
    %126 = tpu.matmul %123, %7, %cst_19 {dimension_numbers = #tpu.dot_dimension_numbers<[1], [0], [0], [1], [0, 0, 1, 1], [], []>, precision = #tpu.contract_precision<fp32>} : vector<8x32xf32>, vector<32x128xf32>, vector<8x128xf32> -> vector<8x128xf32>
    %127 = arith.addf %125, %126 : vector<8x128xf32>
    %128 = arith.mulf %127, %16 : vector<8x128xf32>
    %129 = math.tanh %128 : vector<8x128xf32>
    %130 = arith.mulf %129, %16 : vector<8x128xf32>
    %131 = arith.addf %130, %19 : vector<8x128xf32>
    %132 = vector.extract_strided_slice %131 {offsets = [0, 0], sizes = [8, 32], strides = [1, 1]} : vector<8x128xf32> to vector<8x32xf32>
    %133 = vector.extract_strided_slice %131 {offsets = [0, 32], sizes = [8, 32], strides = [1, 1]} : vector<8x128xf32> to vector<8x32xf32>
    %134 = vector.extract_strided_slice %131 {offsets = [0, 64], sizes = [8, 32], strides = [1, 1]} : vector<8x128xf32> to vector<8x32xf32>
    %135 = vector.extract_strided_slice %131 {offsets = [0, 96], sizes = [8, 32], strides = [1, 1]} : vector<8x128xf32> to vector<8x32xf32>
    %136 = arith.mulf %133, %121 : vector<8x32xf32>
    %137 = arith.mulf %132, %134 : vector<8x32xf32>
    %138 = arith.addf %136, %137 : vector<8x32xf32>
    %139 = math.tanh %138 : vector<8x32xf32>
    %140 = arith.mulf %135, %139 : vector<8x32xf32>
    %141 = vector.extract_strided_slice %6 {offsets = [0, 7, 0], sizes = [8, 1, 128], strides = [1, 1, 1]} : vector<8x8x128xf32> to vector<8x1x128xf32>
    %142 = vector.shape_cast %141 : vector<8x1x128xf32> to vector<8x128xf32>
    %cst_20 = arith.constant dense<0.000000e+00> : vector<8x128xf32>
    %143 = tpu.matmul %140, %7, %cst_20 {dimension_numbers = #tpu.dot_dimension_numbers<[1], [0], [0], [1], [0, 0, 1, 1], [], []>, precision = #tpu.contract_precision<fp32>} : vector<8x32xf32>, vector<32x128xf32>, vector<8x128xf32> -> vector<8x128xf32>
    %144 = arith.addf %142, %143 : vector<8x128xf32>
    %145 = arith.mulf %144, %16 : vector<8x128xf32>
    %146 = math.tanh %145 : vector<8x128xf32>
    %147 = arith.mulf %146, %16 : vector<8x128xf32>
    %148 = arith.addf %147, %19 : vector<8x128xf32>
    %149 = vector.extract_strided_slice %148 {offsets = [0, 0], sizes = [8, 32], strides = [1, 1]} : vector<8x128xf32> to vector<8x32xf32>
    %150 = vector.extract_strided_slice %148 {offsets = [0, 32], sizes = [8, 32], strides = [1, 1]} : vector<8x128xf32> to vector<8x32xf32>
    %151 = vector.extract_strided_slice %148 {offsets = [0, 64], sizes = [8, 32], strides = [1, 1]} : vector<8x128xf32> to vector<8x32xf32>
    %152 = vector.extract_strided_slice %148 {offsets = [0, 96], sizes = [8, 32], strides = [1, 1]} : vector<8x128xf32> to vector<8x32xf32>
    %153 = arith.mulf %150, %138 : vector<8x32xf32>
    %154 = arith.mulf %149, %151 : vector<8x32xf32>
    %155 = arith.addf %153, %154 : vector<8x32xf32>
    %156 = math.tanh %155 : vector<8x32xf32>
    %157 = arith.mulf %152, %156 : vector<8x32xf32>
    %c0_21 = arith.constant 0 : index
    %c0_22 = arith.constant 0 : index
    %158 = vector.load %arg4[%c0_21, %c0_22] : memref<32x4xf32, #tpu.memory_space<vmem>>, vector<32x4xf32>
    %cst_23 = arith.constant dense<0.000000e+00> : vector<8x4xf32>
    %159 = tpu.matmul %157, %158, %cst_23 {dimension_numbers = #tpu.dot_dimension_numbers<[1], [0], [0], [1], [0, 0, 1, 1], [], []>, precision = #tpu.contract_precision<fp32>} : vector<8x32xf32>, vector<32x4xf32>, vector<8x4xf32> -> vector<8x4xf32>
    %c0_24 = arith.constant 0 : index
    %c0_25 = arith.constant 0 : index
    %160 = vector.load %arg5[%c0_24, %c0_25] : memref<1x4xf32, #tpu.memory_space<vmem>>, vector<1x4xf32>
    %161 = vector.broadcast %160 : vector<1x4xf32> to vector<8x4xf32>
    %162 = arith.addf %159, %161 : vector<8x4xf32>
    %c0_26 = arith.constant 0 : index
    %c0_27 = arith.constant 0 : index
    %163 = vector.load %arg6[%c0_26, %c0_27] : memref<8x4xf32, #tpu.memory_space<vmem>>, vector<8x4xf32>
    tpu.vector_store %arg6[%c0_26, %c0_27], %162 {strides = array<i32>} : memref<8x4xf32, #tpu.memory_space<vmem>>, vector<8x4xf32>,
    return
  }
}

</mosaic_0001>

<llo_original>
// kernel: lstm_model_forward.1
$region0: #{lstm_model_forward.1}
  #allocation0 [shape = 'u32[]', space=smem, size = 0x4, offset = 0x4, fixed_abs, tag = 'smem constant byte address 0x4 - core index']
  #allocation1 [shape = 'u32[72,128]{1,0:T(1,128)}', space=vmem, size = 0x9000, scoped, tag = 'internal scratch']
  %s0 = inlined_call_operand.hbm [shape: f32[64,16], index: 0, kind: input, shape index: {}]
  %s1 = inlined_call_operand.hbm [shape: f32[16,128], index: 1, kind: input, shape index: {}]
  %s2 = inlined_call_operand.vmem [shape: f32[32,128], index: 2, kind: input, shape index: {}]
  %s3 = inlined_call_operand.vmem [shape: f32[1,128], index: 3, kind: input, shape index: {}]
  %s4 = inlined_call_operand.vmem [shape: f32[32,4], index: 4, kind: input, shape index: {}]
  %s5 = inlined_call_operand.vmem [shape: f32[1,4], index: 5, kind: input, shape index: {}]
  %s6 = inlined_call_operand.vmem [shape: f32[8,4], index: 6, kind: output, shape index: {}]
  %s7 = sld [smem:[#allocation0]]
  $region42: #{lstm_model_forward.1} parent=0
    _
  %s9 = ssub.s32 1, %s7
  %s10 = scalar_select 0, %s9, %s7
  $region1: #{lstm_model_forward.1} parent=0
    #allocation2 [shape = 'u8[32768]{0}', space=vmem, size = 0x8000, scoped, tag = 'input window, operand 0, single buffered']
    #allocation3 [shape = 's32[1]{0}', space=sflag, size = 0x4, scoped, tag = 'scoped memory for lstm_model_forward.1']
    #allocation4 [shape = 'u8[8192]{0}', space=vmem, size = 0x2000, scoped, tag = 'input window, operand 1, single buffered']
    #allocation5 [shape = 's32[1]{0}', space=sflag, size = 0x4, scoped, tag = 'scoped memory for lstm_model_forward.1']
    %11 = vsyncpa [#allocation3], 0
    %12 = vsyncpa [#allocation5], 0
    // Predicated region
    $region2: #{lstm_model_forward.1} parent=1 // pred_check
      _
    $region3: #{lstm_model_forward.1} parent=1 // pred_check_branch
      %14 = sbr.rel (0) target = $region5
    $region4: #{lstm_model_forward.1} parent=1 // pred_region
      %16 = vsyncadd [#allocation3], 0
      %s17 = sshll.u32 %s0, 4
      %s18 = int_to_ptr.hbm [resolvable:$true] %s17
      %s19 = sshll.u32 [#allocation2], 4
      %s20 = int_to_ptr.vmem [resolvable:$true] %s19
      %25 = dma.hbm_to_vmem [thread:$0]  %s18, 1024, %s20, [#allocation3], 128, 128, 8
    $region5: #{lstm_model_forward.1} parent=1 // pred_fallthru
      _
    // Predicated region
    $region6: #{lstm_model_forward.1} parent=1 // pred_check
      _
    $region7: #{lstm_model_forward.1} parent=1 // pred_check_branch
      %27 = sbr.rel (0) target = $region9
    $region8: #{lstm_model_forward.1} parent=1 // pred_region
      %29 = vsyncadd [#allocation5], 0
      %s30 = sshll.u32 %s1, 4
      %s31 = int_to_ptr.hbm [resolvable:$true] %s30
      %s32 = sshll.u32 [#allocation4], 4
      %s33 = int_to_ptr.vmem [resolvable:$true] %s32
      %38 = dma.hbm_to_vmem [thread:$0]  %s31, 256, %s33, [#allocation5], 128, 128, 8
    $region9: #{lstm_model_forward.1} parent=1 // pred_fallthru
      _
    // Predicated region
    $region10: #{lstm_model_forward.1} parent=1 // pred_check
      _
    $region11: #{lstm_model_forward.1} parent=1 // pred_check_branch
      %40 = sbr.rel (0) target = $region13
    $region12: #{lstm_model_forward.1} parent=1 // pred_region
      _
    $region13: #{lstm_model_forward.1} parent=1 // pred_fallthru
      _
    // Predicated region
    $region14: #{lstm_model_forward.1} parent=1 // pred_check
      _
    $region15: #{lstm_model_forward.1} parent=1 // pred_check_branch
      %42 = sbr.rel (0) target = $region17
    $region16: #{lstm_model_forward.1} parent=1 // pred_region
      _
    $region17: #{lstm_model_forward.1} parent=1 // pred_fallthru
      _
    // Predicated region
    $region18: #{lstm_model_forward.1} parent=1 // pred_check
      _
    $region19: #{lstm_model_forward.1} parent=1 // pred_check_branch
      %44 = sbr.rel (0) target = $region21
    $region20: #{lstm_model_forward.1} parent=1 // pred_region
      _
    $region21: #{lstm_model_forward.1} parent=1 // pred_fallthru
      _
    // Predicated region
    $region22: #{lstm_model_forward.1} parent=1 // pred_check
      _
    $region23: #{lstm_model_forward.1} parent=1 // pred_check_branch
      %46 = sbr.rel (0) target = $region25
    $region24: #{lstm_model_forward.1} parent=1 // pred_region
      _
    $region25: #{lstm_model_forward.1} parent=1 // pred_fallthru
      _
    // Predicated region
    $region26: #{lstm_model_forward.1} parent=1 // pred_check
      _
    $region27: #{lstm_model_forward.1} parent=1 // pred_check_branch
      %48 = sbr.rel (0) target = $region29
    $region28: #{lstm_model_forward.1} parent=1 // pred_region
      %50 = dma.done [#allocation3], 1024
    $region29: #{lstm_model_forward.1} parent=1 // pred_fallthru
      _
    // Predicated region
    $region30: #{lstm_model_forward.1} parent=1 // pred_check
      _
    $region31: #{lstm_model_forward.1} parent=1 // pred_check_branch
      %52 = sbr.rel (0) target = $region33
    $region32: #{lstm_model_forward.1} parent=1 // pred_region
      %54 = dma.done [#allocation5], 256
    $region33: #{lstm_model_forward.1} parent=1 // pred_fallthru
      _
    %v55 = vld [vmem:[#allocation2] sm:$0xff]
    %v56 = vld [vmem:[#allocation2 + $0x8] sm:$0xff]
    %v57 = vld [vmem:[#allocation2 + $0x10] sm:$0xff]
    %v58 = vld [vmem:[#allocation2 + $0x18] sm:$0xff]
    %v59 = vld [vmem:[#allocation2 + $0x20] sm:$0xff]
    %v60 = vld [vmem:[#allocation2 + $0x28] sm:$0xff]
    %v61 = vld [vmem:[#allocation2 + $0x30] sm:$0xff]
    %v62 = vld [vmem:[#allocation2 + $0x38] sm:$0xff]
    %v63 = vld [vmem:[#allocation4] sm:$0xff]
    %v64 = vld [vmem:[#allocation4 + $0x8] sm:$0xff]
    %v65 = vld [vmem:[%s3] sm:$0x1]
    %v67 = vperm.slane %v65, 0
    %vm69 = vcmask 130048
    %v71 = vsel %vm69, %v55, 0
    %v74 = vsel %vm69, %v56, 0
    %v77 = vsel %vm69, %v57, 0
    %v80 = vsel %vm69, %v58, 0
    %v83 = vsel %vm69, %v59, 0
    %v86 = vsel %vm69, %v60, 0
    %v89 = vsel %vm69, %v61, 0
    %v92 = vsel %vm69, %v62, 0
    %94 = vmatpush.msra.mxu0 0.0
    %95 = vmatpush.msra.mxu0 0.0
    %96 = vmatpush.msra.mxu0 0.0
    %97 = vmatpush.msra.mxu0 0.0
    %98 = vmatpush.msra.mxu0 0.0
    %99 = vmatpush.msra.mxu0 0.0
    %100 = vmatpush.msra.mxu0 0.0
    %101 = vmatpush.msra.mxu0 0.0
    %102 = vmatpush.msra.mxu0 0.0
    %103 = vmatpush.msra.mxu0 0.0
    %104 = vmatpush.msra.mxu0 0.0
    %105 = vmatpush.msra.mxu0 0.0
    %106 = vmatpush.msra.mxu0 0.0
    %107 = vmatpush.msra.mxu0 0.0
    %v108 = vand.u32 %v64, 4294901760
    %109 = vmatpush.msra.mxu0 %v108
    %v110 = vand.u32 %v63, 4294901760
    %111 = vmatpush.msra.mxu0 %v110
    %v112 = vand.u32 %v71, 4294901760
    %v113 = vsub.f32 %v71, %v112
    %v114 = vand.u32 %v113, 4294901760
    %v115 = vsub.f32 %v113, %v114
    %v116 = vand.u32 %v115, 4294901760
    %117 = vmatmul.f32.gmra.mxu0 %v116
    %v118 = vpop.f32.mrf.mxu0
    %v119 = vadd.f32 %v67, %v118
    %v120 = vand.u32 %v74, 4294901760
    %v121 = vsub.f32 %v74, %v120
    %v122 = vand.u32 %v121, 4294901760
    %v123 = vsub.f32 %v121, %v122
    %v124 = vand.u32 %v123, 4294901760
    %125 = vmatmul.f32.gmra.mxu0 %v124
    %v126 = vpop.f32.mrf.mxu0
    %v127 = vadd.f32 %v67, %v126
    %v128 = vand.u32 %v77, 4294901760
    %v129 = vsub.f32 %v77, %v128
    %v130 = vand.u32 %v129, 4294901760
    %v131 = vsub.f32 %v129, %v130
    %v132 = vand.u32 %v131, 4294901760
    %133 = vmatmul.f32.gmra.mxu0 %v132
    %v134 = vpop.f32.mrf.mxu0
    %v135 = vadd.f32 %v67, %v134
    %v136 = vand.u32 %v80, 4294901760
    %v137 = vsub.f32 %v80, %v136
    %v138 = vand.u32 %v137, 4294901760
    %v139 = vsub.f32 %v137, %v138
    %v140 = vand.u32 %v139, 4294901760
    %141 = vmatmul.f32.gmra.mxu0 %v140
    %v142 = vpop.f32.mrf.mxu0
    %v143 = vadd.f32 %v67, %v142
    %v144 = vand.u32 %v83, 4294901760
    %v145 = vsub.f32 %v83, %v144
    %v146 = vand.u32 %v145, 4294901760
    %v147 = vsub.f32 %v145, %v146
    %v148 = vand.u32 %v147, 4294901760
    %149 = vmatmul.f32.gmra.mxu0 %v148
    %v150 = vpop.f32.mrf.mxu0
    %v151 = vadd.f32 %v67, %v150
    %v152 = vand.u32 %v86, 4294901760
    %v153 = vsub.f32 %v86, %v152
    %v154 = vand.u32 %v153, 4294901760
    %v155 = vsub.f32 %v153, %v154
    %v156 = vand.u32 %v155, 4294901760
    %157 = vmatmul.f32.gmra.mxu0 %v156
    %v158 = vpop.f32.mrf.mxu0
    %v159 = vadd.f32 %v67, %v158
    %v160 = vand.u32 %v89, 4294901760
    %v161 = vsub.f32 %v89, %v160
    %v162 = vand.u32 %v161, 4294901760
    %v163 = vsub.f32 %v161, %v162
    %v164 = vand.u32 %v163, 4294901760
    %165 = vmatmul.f32.gmra.mxu0 %v164
    %v166 = vpop.f32.mrf.mxu0
    %v167 = vadd.f32 %v67, %v166
    %v168 = vand.u32 %v92, 4294901760
    %v169 = vsub.f32 %v92, %v168
    %v170 = vand.u32 %v169, 4294901760
    %v171 = vsub.f32 %v169, %v170
    %v172 = vand.u32 %v171, 4294901760
    %173 = vmatmul.f32.gmra.mxu0 %v172
    %v174 = vpop.f32.mrf.mxu0
    %v175 = vadd.f32 %v67, %v174
    %176 = vdwg.mxu0
    %177 = vmatpush.msra.mxu0 0.0
    %178 = vmatpush.msra.mxu0 0.0
    %179 = vmatpush.msra.mxu0 0.0
    %180 = vmatpush.msra.mxu0 0.0
    %181 = vmatpush.msra.mxu0 0.0
    %182 = vmatpush.msra.mxu0 0.0
    %183 = vmatpush.msra.mxu0 0.0
    %184 = vmatpush.msra.mxu0 0.0
    %185 = vmatpush.msra.mxu0 0.0
    %186 = vmatpush.msra.mxu0 0.0
    %187 = vmatpush.msra.mxu0 0.0
    %188 = vmatpush.msra.mxu0 0.0
    %189 = vmatpush.msra.mxu0 0.0
    %190 = vmatpush.msra.mxu0 0.0
    %v191 = vand.u32 %v64, 4294901760
    %v192 = vsub.f32 %v64, %v191
    %v193 = vand.u32 %v192, 4294901760
    %v194 = vsub.f32 %v192, %v193
    %v195 = vand.u32 %v194, 4294901760
    %196 = vmatpush.msra.mxu0 %v195
    %v197 = vand.u32 %v63, 4294901760
    %v198 = vsub.f32 %v63, %v197
    %v199 = vand.u32 %v198, 4294901760
    %v200 = vsub.f32 %v198, %v199
    %v201 = vand.u32 %v200, 4294901760
    %202 = vmatpush.msra.mxu0 %v201
    %v203 = vand.u32 %v71, 4294901760
    %204 = vmatmul.f32.gmra.mxu0 %v203
    %v205 = vpop.f32.mrf.mxu0
    %v206 = vadd.f32 %v119, %v205
    %v207 = vand.u32 %v74, 4294901760
    %208 = vmatmul.f32.gmra.mxu0 %v207
    %v209 = vpop.f32.mrf.mxu0
    %v210 = vadd.f32 %v127, %v209
    %v211 = vand.u32 %v77, 4294901760
    %212 = vmatmul.f32.gmra.mxu0 %v211
    %v213 = vpop.f32.mrf.mxu0
    %v214 = vadd.f32 %v135, %v213
    %v215 = vand.u32 %v80, 4294901760
    %216 = vmatmul.f32.gmra.mxu0 %v215
    %v217 = vpop.f32.mrf.mxu0
    %v218 = vadd.f32 %v143, %v217
    %v219 = vand.u32 %v83, 4294901760
    %220 = vmatmul.f32.gmra.mxu0 %v219
    %v221 = vpop.f32.mrf.mxu0
    %v222 = vadd.f32 %v151, %v221
    %v223 = vand.u32 %v86, 4294901760
    %224 = vmatmul.f32.gmra.mxu0 %v223
    %v225 = vpop.f32.mrf.mxu0
    %v226 = vadd.f32 %v159, %v225
    %v227 = vand.u32 %v89, 4294901760
    %228 = vmatmul.f32.gmra.mxu0 %v227
    %v229 = vpop.f32.mrf.mxu0
    %v230 = vadd.f32 %v167, %v229
    %v231 = vand.u32 %v92, 4294901760
    %232 = vmatmul.f32.gmra.mxu0 %v231
    %v233 = vpop.f32.mrf.mxu0
    %v234 = vadd.f32 %v175, %v233
    %235 = vdwg.mxu0
    %236 = vmatpush.msra.mxu0 0.0
    %237 = vmatpush.msra.mxu0 0.0
    %238 = vmatpush.msra.mxu0 0.0
    %239 = vmatpush.msra.mxu0 0.0
    %240 = vmatpush.msra.mxu0 0.0
    %241 = vmatpush.msra.mxu0 0.0
    %242 = vmatpush.msra.mxu0 0.0
    %243 = vmatpush.msra.mxu0 0.0
    %244 = vmatpush.msra.mxu0 0.0
    %245 = vmatpush.msra.mxu0 0.0
    %246 = vmatpush.msra.mxu0 0.0
    %247 = vmatpush.msra.mxu0 0.0
    %248 = vmatpush.msra.mxu0 0.0
    %249 = vmatpush.msra.mxu0 0.0
    %v250 = vand.u32 %v64, 4294901760
    %v251 = vsub.f32 %v64, %v250
    %252 = vmatpush.msra.mxu0 %v251
    %v253 = vand.u32 %v63, 4294901760
    %v254 = vsub.f32 %v63, %v253
    %255 = vmatpush.msra.mxu0 %v254
    %v256 = vand.u32 %v71, 4294901760
    %v257 = vsub.f32 %v71, %v256
    %258 = vmatmul.f32.gmra.mxu0 %v257
    %v259 = vpop.f32.mrf.mxu0
    %v260 = vadd.f32 %v206, %v259
    %v261 = vand.u32 %v74, 4294901760
    %v262 = vsub.f32 %v74, %v261
    %263 = vmatmul.f32.gmra.mxu0 %v262
    %v264 = vpop.f32.mrf.mxu0
    %v265 = vadd.f32 %v210, %v264
    %v266 = vand.u32 %v77, 4294901760
    %v267 = vsub.f32 %v77, %v266
    %268 = vmatmul.f32.gmra.mxu0 %v267
    %v269 = vpop.f32.mrf.mxu0
    %v270 = vadd.f32 %v214, %v269
    %v271 = vand.u32 %v80, 4294901760
    %v272 = vsub.f32 %v80, %v271
    %273 = vmatmul.f32.gmra.mxu0 %v272
    %v274 = vpop.f32.mrf.mxu0
    %v275 = vadd.f32 %v218, %v274
    %v276 = vand.u32 %v83, 4294901760
    %v277 = vsub.f32 %v83, %v276
    %278 = vmatmul.f32.gmra.mxu0 %v277
    %v279 = vpop.f32.mrf.mxu0
    %v280 = vadd.f32 %v222, %v279
    %v281 = vand.u32 %v86, 4294901760
    %v282 = vsub.f32 %v86, %v281
    %283 = vmatmul.f32.gmra.mxu0 %v282
    %v284 = vpop.f32.mrf.mxu0
    %v285 = vadd.f32 %v226, %v284
    %v286 = vand.u32 %v89, 4294901760
    %v287 = vsub.f32 %v89, %v286
    %288 = vmatmul.f32.gmra.mxu0 %v287
    %v289 = vpop.f32.mrf.mxu0
    %v290 = vadd.f32 %v230, %v289
    %v291 = vand.u32 %v92, 4294901760
    %v292 = vsub.f32 %v92, %v291
    %293 = vmatmul.f32.gmra.mxu0 %v292
    %v294 = vpop.f32.mrf.mxu0
    %v295 = vadd.f32 %v234, %v294
    %296 = vdwg.mxu0
    %297 = vmatpush.msra.mxu0 0.0
    %298 = vmatpush.msra.mxu0 0.0
    %299 = vmatpush.msra.mxu0 0.0
    %300 = vmatpush.msra.mxu0 0.0
    %301 = vmatpush.msra.mxu0 0.0
    %302 = vmatpush.msra.mxu0 0.0
    %303 = vmatpush.msra.mxu0 0.0
    %304 = vmatpush.msra.mxu0 0.0
    %305 = vmatpush.msra.mxu0 0.0
    %306 = vmatpush.msra.mxu0 0.0
    %307 = vmatpush.msra.mxu0 0.0
    %308 = vmatpush.msra.mxu0 0.0
    %309 = vmatpush.msra.mxu0 0.0
    %310 = vmatpush.msra.mxu0 0.0
    %v311 = vand.u32 %v64, 4294901760
    %312 = vmatpush.msra.mxu0 %v311
    %v313 = vand.u32 %v63, 4294901760
    %314 = vmatpush.msra.mxu0 %v313
    %v315 = vand.u32 %v71, 4294901760
    %v316 = vsub.f32 %v71, %v315
    %v317 = vand.u32 %v316, 4294901760
    %318 = vmatmul.f32.gmra.mxu0 %v317
    %v319 = vpop.f32.mrf.mxu0
    %v320 = vadd.f32 %v260, %v319
    %v321 = vand.u32 %v74, 4294901760
    %v322 = vsub.f32 %v74, %v321
    %v323 = vand.u32 %v322, 4294901760
    %324 = vmatmul.f32.gmra.mxu0 %v323
    %v325 = vpop.f32.mrf.mxu0
    %v326 = vadd.f32 %v265, %v325
    %v327 = vand.u32 %v77, 4294901760
    %v328 = vsub.f32 %v77, %v327
    %v329 = vand.u32 %v328, 4294901760
    %330 = vmatmul.f32.gmra.mxu0 %v329
    %v331 = vpop.f32.mrf.mxu0
    %v332 = vadd.f32 %v270, %v331
    %v333 = vand.u32 %v80, 4294901760
    %v334 = vsub.f32 %v80, %v333
    %v335 = vand.u32 %v334, 4294901760
    %336 = vmatmul.f32.gmra.mxu0 %v335
    %v337 = vpop.f32.mrf.mxu0
    %v338 = vadd.f32 %v275, %v337
    %v339 = vand.u32 %v83, 4294901760
    %v340 = vsub.f32 %v83, %v339
    %v341 = vand.u32 %v340, 4294901760
    %342 = vmatmul.f32.gmra.mxu0 %v341
    %v343 = vpop.f32.mrf.mxu0
    %v344 = vadd.f32 %v280, %v343
    %v345 = vand.u32 %v86, 4294901760
    %v346 = vsub.f32 %v86, %v345
    %v347 = vand.u32 %v346, 4294901760
    %348 = vmatmul.f32.gmra.mxu0 %v347
    %v349 = vpop.f32.mrf.mxu0
    %v350 = vadd.f32 %v285, %v349
    %v351 = vand.u32 %v89, 4294901760
    %v352 = vsub.f32 %v89, %v351
    %v353 = vand.u32 %v352, 4294901760
    %354 = vmatmul.f32.gmra.mxu0 %v353
    %v355 = vpop.f32.mrf.mxu0
    %v356 = vadd.f32 %v290, %v355
    %v357 = vand.u32 %v92, 4294901760
    %v358 = vsub.f32 %v92, %v357
    %v359 = vand.u32 %v358, 4294901760
    %360 = vmatmul.f32.gmra.mxu0 %v359
    %v361 = vpop.f32.mrf.mxu0
    %v362 = vadd.f32 %v295, %v361
    %363 = vdwg.mxu0
    %364 = vmatpush.msra.mxu0 0.0
    %365 = vmatpush.msra.mxu0 0.0
    %366 = vmatpush.msra.mxu0 0.0
    %367 = vmatpush.msra.mxu0 0.0
    %368 = vmatpush.msra.mxu0 0.0
    %369 = vmatpush.msra.mxu0 0.0
    %370 = vmatpush.msra.mxu0 0.0
    %371 = vmatpush.msra.mxu0 0.0
    %372 = vmatpush.msra.mxu0 0.0
    %373 = vmatpush.msra.mxu0 0.0
    %374 = vmatpush.msra.mxu0 0.0
    %375 = vmatpush.msra.mxu0 0.0
    %376 = vmatpush.msra.mxu0 0.0
    %377 = vmatpush.msra.mxu0 0.0
    %v378 = vand.u32 %v64, 4294901760
    %v379 = vsub.f32 %v64, %v378
    %v380 = vand.u32 %v379, 4294901760
    %381 = vmatpush.msra.mxu0 %v380
    %v382 = vand.u32 %v63, 4294901760
    %v383 = vsub.f32 %v63, %v382
    %v384 = vand.u32 %v383, 4294901760
    %385 = vmatpush.msra.mxu0 %v384
    %v386 = vand.u32 %v71, 4294901760
    %387 = vmatmul.f32.gmra.mxu0 %v386
    %v388 = vpop.f32.mrf.mxu0
    %v389 = vadd.f32 %v320, %v388
    %v390 = vand.u32 %v74, 4294901760
    %391 = vmatmul.f32.gmra.mxu0 %v390
    %v392 = vpop.f32.mrf.mxu0
    %v393 = vadd.f32 %v326, %v392
    %v394 = vand.u32 %v77, 4294901760
    %395 = vmatmul.f32.gmra.mxu0 %v394
    %v396 = vpop.f32.mrf.mxu0
    %v397 = vadd.f32 %v332, %v396
    %v398 = vand.u32 %v80, 4294901760
    %399 = vmatmul.f32.gmra.mxu0 %v398
    %v400 = vpop.f32.mrf.mxu0
    %v401 = vadd.f32 %v338, %v400
    %v402 = vand.u32 %v83, 4294901760
    %403 = vmatmul.f32.gmra.mxu0 %v402
    %v404 = vpop.f32.mrf.mxu0
    %v405 = vadd.f32 %v344, %v404
    %v406 = vand.u32 %v86, 4294901760
    %407 = vmatmul.f32.gmra.mxu0 %v406
    %v408 = vpop.f32.mrf.mxu0
    %v409 = vadd.f32 %v350, %v408
    %v410 = vand.u32 %v89, 4294901760
    %411 = vmatmul.f32.gmra.mxu0 %v410
    %v412 = vpop.f32.mrf.mxu0
    %v413 = vadd.f32 %v356, %v412
    %v414 = vand.u32 %v92, 4294901760
    %415 = vmatmul.f32.gmra.mxu0 %v414
    %v416 = vpop.f32.mrf.mxu0
    %v417 = vadd.f32 %v362, %v416
    %418 = vdwg.mxu0
    %419 = vmatpush.msra.mxu0 0.0
    %420 = vmatpush.msra.mxu0 0.0
    %421 = vmatpush.msra.mxu0 0.0
    %422 = vmatpush.msra.mxu0 0.0
    %423 = vmatpush.msra.mxu0 0.0
    %424 = vmatpush.msra.mxu0 0.0
    %425 = vmatpush.msra.mxu0 0.0
    %426 = vmatpush.msra.mxu0 0.0
    %427 = vmatpush.msra.mxu0 0.0
    %428 = vmatpush.msra.mxu0 0.0
    %429 = vmatpush.msra.mxu0 0.0
    %430 = vmatpush.msra.mxu0 0.0
    %431 = vmatpush.msra.mxu0 0.0
    %432 = vmatpush.msra.mxu0 0.0
    %v433 = vand.u32 %v64, 4294901760
    %434 = vmatpush.msra.mxu0 %v433
    %v435 = vand.u32 %v63, 4294901760
    %436 = vmatpush.msra.mxu0 %v435
    %v437 = vand.u32 %v71, 4294901760
    %438 = vmatmul.f32.gmra.mxu0 %v437
    %v439 = vpop.f32.mrf.mxu0
    %v440 = vadd.f32 %v389, %v439
    %v441 = vand.u32 %v74, 4294901760
    %442 = vmatmul.f32.gmra.mxu0 %v441
    %v443 = vpop.f32.mrf.mxu0
    %v444 = vadd.f32 %v393, %v443
    %v445 = vand.u32 %v77, 4294901760
    %446 = vmatmul.f32.gmra.mxu0 %v445
    %v447 = vpop.f32.mrf.mxu0
    %v448 = vadd.f32 %v397, %v447
    %v449 = vand.u32 %v80, 4294901760
    %450 = vmatmul.f32.gmra.mxu0 %v449
    %v451 = vpop.f32.mrf.mxu0
    %v452 = vadd.f32 %v401, %v451
    %v453 = vand.u32 %v83, 4294901760
    %454 = vmatmul.f32.gmra.mxu0 %v453
    %v455 = vpop.f32.mrf.mxu0
    %v456 = vadd.f32 %v405, %v455
    %v457 = vand.u32 %v86, 4294901760
    %458 = vmatmul.f32.gmra.mxu0 %v457
    %v459 = vpop.f32.mrf.mxu0
    %v460 = vadd.f32 %v409, %v459
    %v461 = vand.u32 %v89, 4294901760
    %462 = vmatmul.f32.gmra.mxu0 %v461
    %v463 = vpop.f32.mrf.mxu0
    %v464 = vadd.f32 %v413, %v463
    %v465 = vand.u32 %v92, 4294901760
    %466 = vmatmul.f32.gmra.mxu0 %v465
    %v467 = vpop.f32.mrf.mxu0
    %v468 = vadd.f32 %v417, %v467
    %469 = vdwg.mxu0
    %v470 = vld [vmem:[%s2] sm:$0xff]
    %v471 = vld [vmem:[%s2 + $0x8] sm:$0xff]
    %v472 = vld [vmem:[%s2 + $0x10] sm:$0xff]
    %v473 = vld [vmem:[%s2 + $0x18] sm:$0xff]
    %v474 = vlaneseq
    %v475 = vand.u32 %v474, 127
    %vm476 = vcmp.ge.s32.totalorder %v475, 64
    %vm477 = vcmp.lt.s32.totalorder %v475, 96
    %vm478 = vmand %vm476, %vm477
    %v479 = vsel %vm478, 1.0, 0.5
    %v480 = vsel %vm478, 0.0, 0.5
    %vm481 = vcmask 261120
    %v483 = vsel %vm481, 0.0, 0
    %485 = vmatpush.msra.mxu0 0.0
    %486 = vmatpush.msra.mxu0 0.0
    %487 = vmatpush.msra.mxu0 0.0
    %488 = vmatpush.msra.mxu0 0.0
    %489 = vmatpush.msra.mxu0 0.0
    %490 = vmatpush.msra.mxu0 0.0
    %491 = vmatpush.msra.mxu0 0.0
    %492 = vmatpush.msra.mxu0 0.0
    %493 = vmatpush.msra.mxu0 0.0
    %494 = vmatpush.msra.mxu0 0.0
    %495 = vmatpush.msra.mxu0 0.0
    %496 = vmatpush.msra.mxu0 0.0
    %v497 = vand.u32 %v473, 4294901760
    %498 = vmatpush.msra.mxu0 %v497
    %v499 = vand.u32 %v472, 4294901760
    %500 = vmatpush.msra.mxu0 %v499
    %v501 = vand.u32 %v471, 4294901760
    %502 = vmatpush.msra.mxu0 %v501
    %v503 = vand.u32 %v470, 4294901760
    %504 = vmatpush.msra.mxu0 %v503
    %v505 = vand.u32 %v483, 4294901760
    %v506 = vsub.f32 %v483, %v505
    %v507 = vand.u32 %v506, 4294901760
    %v508 = vsub.f32 %v506, %v507
    %v509 = vand.u32 %v508, 4294901760
    %510 = vmatmul.f32.gmra.mxu0 %v509
    %v511 = vpop.f32.mrf.mxu0
    %v512 = vadd.f32 0.0, %v511
    %513 = vdwg.mxu0
    %514 = vmatpush.msra.mxu0 0.0
    %515 = vmatpush.msra.mxu0 0.0
    %516 = vmatpush.msra.mxu0 0.0
    %517 = vmatpush.msra.mxu0 0.0
    %518 = vmatpush.msra.mxu0 0.0
    %519 = vmatpush.msra.mxu0 0.0
    %520 = vmatpush.msra.mxu0 0.0
    %521 = vmatpush.msra.mxu0 0.0
    %522 = vmatpush.msra.mxu0 0.0
    %523 = vmatpush.msra.mxu0 0.0
    %524 = vmatpush.msra.mxu0 0.0
    %525 = vmatpush.msra.mxu0 0.0
    %v526 = vand.u32 %v473, 4294901760
    %v527 = vsub.f32 %v473, %v526
    %v528 = vand.u32 %v527, 4294901760
    %v529 = vsub.f32 %v527, %v528
    %v530 = vand.u32 %v529, 4294901760
    %531 = vmatpush.msra.mxu0 %v530
    %v532 = vand.u32 %v472, 4294901760
    %v533 = vsub.f32 %v472, %v532
    %v534 = vand.u32 %v533, 4294901760
    %v535 = vsub.f32 %v533, %v534
    %v536 = vand.u32 %v535, 4294901760
    %537 = vmatpush.msra.mxu0 %v536
    %v538 = vand.u32 %v471, 4294901760
    %v539 = vsub.f32 %v471, %v538
    %v540 = vand.u32 %v539, 4294901760
    %v541 = vsub.f32 %v539, %v540
    %v542 = vand.u32 %v541, 4294901760
    %543 = vmatpush.msra.mxu0 %v542
    %v544 = vand.u32 %v470, 4294901760
    %v545 = vsub.f32 %v470, %v544
    %v546 = vand.u32 %v545, 4294901760
    %v547 = vsub.f32 %v545, %v546
    %v548 = vand.u32 %v547, 4294901760
    %549 = vmatpush.msra.mxu0 %v548
    %v550 = vand.u32 %v483, 4294901760
    %551 = vmatmul.f32.gmra.mxu0 %v550
    %v552 = vpop.f32.mrf.mxu0
    %v553 = vadd.f32 %v512, %v552
    %554 = vdwg.mxu0
    %555 = vmatpush.msra.mxu0 0.0
    %556 = vmatpush.msra.mxu0 0.0
    %557 = vmatpush.msra.mxu0 0.0
    %558 = vmatpush.msra.mxu0 0.0
    %559 = vmatpush.msra.mxu0 0.0
    %560 = vmatpush.msra.mxu0 0.0
    %561 = vmatpush.msra.mxu0 0.0
    %562 = vmatpush.msra.mxu0 0.0
    %563 = vmatpush.msra.mxu0 0.0
    %564 = vmatpush.msra.mxu0 0.0
    %565 = vmatpush.msra.mxu0 0.0
    %566 = vmatpush.msra.mxu0 0.0
    %v567 = vand.u32 %v473, 4294901760
    %v568 = vsub.f32 %v473, %v567
    %569 = vmatpush.msra.mxu0 %v568
    %v570 = vand.u32 %v472, 4294901760
    %v571 = vsub.f32 %v472, %v570
    %572 = vmatpush.msra.mxu0 %v571
    %v573 = vand.u32 %v471, 4294901760
    %v574 = vsub.f32 %v471, %v573
    %575 = vmatpush.msra.mxu0 %v574
    %v576 = vand.u32 %v470, 4294901760
    %v577 = vsub.f32 %v470, %v576
    %578 = vmatpush.msra.mxu0 %v577
    %v579 = vand.u32 %v483, 4294901760
    %v580 = vsub.f32 %v483, %v579
    %581 = vmatmul.f32.gmra.mxu0 %v580
    %v582 = vpop.f32.mrf.mxu0
    %v583 = vadd.f32 %v553, %v582
    %584 = vdwg.mxu0
    %585 = vmatpush.msra.mxu0 0.0
    %586 = vmatpush.msra.mxu0 0.0
    %587 = vmatpush.msra.mxu0 0.0
    %588 = vmatpush.msra.mxu0 0.0
    %589 = vmatpush.msra.mxu0 0.0
    %590 = vmatpush.msra.mxu0 0.0
    %591 = vmatpush.msra.mxu0 0.0
    %592 = vmatpush.msra.mxu0 0.0
    %593 = vmatpush.msra.mxu0 0.0
    %594 = vmatpush.msra.mxu0 0.0
    %595 = vmatpush.msra.mxu0 0.0
    %596 = vmatpush.msra.mxu0 0.0
    %v597 = vand.u32 %v473, 4294901760
    %598 = vmatpush.msra.mxu0 %v597
    %v599 = vand.u32 %v472, 4294901760
    %600 = vmatpush.msra.mxu0 %v599
    %v601 = vand.u32 %v471, 4294901760
    %602 = vmatpush.msra.mxu0 %v601
    %v603 = vand.u32 %v470, 4294901760
    %604 = vmatpush.msra.mxu0 %v603
    %v605 = vand.u32 %v483, 4294901760
    %v606 = vsub.f32 %v483, %v605
    %v607 = vand.u32 %v606, 4294901760
    %608 = vmatmul.f32.gmra.mxu0 %v607
    %v609 = vpop.f32.mrf.mxu0
    %v610 = vadd.f32 %v583, %v609
    %611 = vdwg.mxu0
    %612 = vmatpush.msra.mxu0 0.0
    %613 = vmatpush.msra.mxu0 0.0
    %614 = vmatpush.msra.mxu0 0.0
    %615 = vmatpush.msra.mxu0 0.0
    %616 = vmatpush.msra.mxu0 0.0
    %617 = vmatpush.msra.mxu0 0.0
    %618 = vmatpush.msra.mxu0 0.0
    %619 = vmatpush.msra.mxu0 0.0
    %620 = vmatpush.msra.mxu0 0.0
    %621 = vmatpush.msra.mxu0 0.0
    %622 = vmatpush.msra.mxu0 0.0
    %623 = vmatpush.msra.mxu0 0.0
    %v624 = vand.u32 %v473, 4294901760
    %v625 = vsub.f32 %v473, %v624
    %v626 = vand.u32 %v625, 4294901760
    %627 = vmatpush.msra.mxu0 %v626
    %v628 = vand.u32 %v472, 4294901760
    %v629 = vsub.f32 %v472, %v628
    %v630 = vand.u32 %v629, 4294901760
    %631 = vmatpush.msra.mxu0 %v630
    %v632 = vand.u32 %v471, 4294901760
    %v633 = vsub.f32 %v471, %v632
    %v634 = vand.u32 %v633, 4294901760
    %635 = vmatpush.msra.mxu0 %v634
    %v636 = vand.u32 %v470, 4294901760
    %v637 = vsub.f32 %v470, %v636
    %v638 = vand.u32 %v637, 4294901760
    %639 = vmatpush.msra.mxu0 %v638
    %v640 = vand.u32 %v483, 4294901760
    %641 = vmatmul.f32.gmra.mxu0 %v640
    %v642 = vpop.f32.mrf.mxu0
    %v643 = vadd.f32 %v610, %v642
    %644 = vdwg.mxu0
    %645 = vmatpush.msra.mxu0 0.0
    %646 = vmatpush.msra.mxu0 0.0
    %647 = vmatpush.msra.mxu0 0.0
    %648 = vmatpush.msra.mxu0 0.0
    %649 = vmatpush.msra.mxu0 0.0
    %650 = vmatpush.msra.mxu0 0.0
    %651 = vmatpush.msra.mxu0 0.0
    %652 = vmatpush.msra.mxu0 0.0
    %653 = vmatpush.msra.mxu0 0.0
    %654 = vmatpush.msra.mxu0 0.0
    %655 = vmatpush.msra.mxu0 0.0
    %656 = vmatpush.msra.mxu0 0.0
    %v657 = vand.u32 %v473, 4294901760
    %658 = vmatpush.msra.mxu0 %v657
    %v659 = vand.u32 %v472, 4294901760
    %660 = vmatpush.msra.mxu0 %v659
    %v661 = vand.u32 %v471, 4294901760
    %662 = vmatpush.msra.mxu0 %v661
    %v663 = vand.u32 %v470, 4294901760
    %664 = vmatpush.msra.mxu0 %v663
    %v665 = vand.u32 %v483, 4294901760
    %666 = vmatmul.f32.gmra.mxu0 %v665
    %v667 = vpop.f32.mrf.mxu0
    %v668 = vadd.f32 %v643, %v667
    %669 = vdwg.mxu0
    %v671 = vrot.slane %v668, 1
    %v672 = vrot.slane %v668, 2
    %v673 = vrot.slane %v668, 3
    %v674 = vrot.slane %v668, 4
    %v675 = vrot.slane %v668, 5
    %v676 = vrot.slane %v668, 6
    %v677 = vrot.slane %v668, 7
    %v686 = vadd.f32 %v440, %v668
    %v687 = vadd.f32 %v444, %v671
    %v688 = vadd.f32 %v448, %v672
    %v689 = vadd.f32 %v452, %v673
    %v690 = vadd.f32 %v456, %v674
    %v691 = vadd.f32 %v460, %v675
    %v692 = vadd.f32 %v464, %v676
    %v693 = vadd.f32 %v468, %v677
    %v694 = vmul.f32 %v686, %v479
    %v695 = vmul.f32 %v687, %v479
    %v696 = vmul.f32 %v688, %v479
    %v697 = vmul.f32 %v689, %v479
    %v698 = vmul.f32 %v690, %v479
    %v699 = vmul.f32 %v691, %v479
    %v700 = vmul.f32 %v692, %v479
    %v701 = vmul.f32 %v693, %v479
    %v702 = vtanh.pop %v694
    %v703 = vtanh.pop %v695
    %v704 = vtanh.pop %v696
    %v705 = vtanh.pop %v697
    %v706 = vtanh.pop %v698
    %v707 = vtanh.pop %v699
    %v708 = vtanh.pop %v700
    %v709 = vtanh.pop %v701
    %v710 = vmul.f32 %v702, %v479
    %v711 = vmul.f32 %v703, %v479
    %v712 = vmul.f32 %v704, %v479
    %v713 = vmul.f32 %v705, %v479
    %v714 = vmul.f32 %v706, %v479
    %v715 = vmul.f32 %v707, %v479
    %v716 = vmul.f32 %v708, %v479
    %v717 = vmul.f32 %v709, %v479
    %v718 = vadd.f32 %v710, %v480
    %v719 = vadd.f32 %v711, %v480
    %v720 = vadd.f32 %v712, %v480
    %v721 = vadd.f32 %v713, %v480
    %v722 = vadd.f32 %v714, %v480
    %v723 = vadd.f32 %v715, %v480
    %v724 = vadd.f32 %v716, %v480
    %v725 = vadd.f32 %v717, %v480
    %v726 = vmul.f32 %v718, 0.0
    %v727 = vmul.f32 %v719, 0.0
    %v728 = vmul.f32 %v720, 0.0
    %v729 = vmul.f32 %v721, 0.0
    %v730 = vmul.f32 %v722, 0.0
    %v731 = vmul.f32 %v723, 0.0
    %v732 = vmul.f32 %v724, 0.0
    %v733 = vmul.f32 %v725, 0.0
    %742 = vrot.lane.b32.xlu0 %v718, 64
    %v743 = vpop.permute.xlu0 %742
    %744 = vrot.lane.b32.xlu0 %v719, 64
    %v745 = vpop.permute.xlu0 %744
    %746 = vrot.lane.b32.xlu0 %v720, 64
    %v747 = vpop.permute.xlu0 %746
    %748 = vrot.lane.b32.xlu0 %v721, 64
    %v749 = vpop.permute.xlu0 %748
    %750 = vrot.lane.b32.xlu0 %v722, 64
    %v751 = vpop.permute.xlu0 %750
    %752 = vrot.lane.b32.xlu0 %v723, 64
    %v753 = vpop.permute.xlu0 %752
    %754 = vrot.lane.b32.xlu0 %v724, 64
    %v755 = vpop.permute.xlu0 %754
    %756 = vrot.lane.b32.xlu0 %v725, 64
    %v757 = vpop.permute.xlu0 %756
    %v766 = vmul.f32 %v718, %v743
    %v767 = vmul.f32 %v719, %v745
    %v768 = vmul.f32 %v720, %v747
    %v769 = vmul.f32 %v721, %v749
    %v770 = vmul.f32 %v722, %v751
    %v771 = vmul.f32 %v723, %v753
    %v772 = vmul.f32 %v724, %v755
    %v773 = vmul.f32 %v725, %v757
    %782 = vrot.lane.b32.xlu0 %v766, 32
    %v783 = vpop.permute.xlu0 %782
    %784 = vrot.lane.b32.xlu0 %v767, 32
    %v785 = vpop.permute.xlu0 %784
    %786 = vrot.lane.b32.xlu0 %v768, 32
    %v787 = vpop.permute.xlu0 %786
    %788 = vrot.lane.b32.xlu0 %v769, 32
    %v789 = vpop.permute.xlu0 %788
    %790 = vrot.lane.b32.xlu0 %v770, 32
    %v791 = vpop.permute.xlu0 %790
    %792 = vrot.lane.b32.xlu0 %v771, 32
    %v793 = vpop.permute.xlu0 %792
    %794 = vrot.lane.b32.xlu0 %v772, 32
    %v795 = vpop.permute.xlu0 %794
    %796 = vrot.lane.b32.xlu0 %v773, 32
    %v797 = vpop.permute.xlu0 %796
    %v806 = vadd.f32 %v726, %v783
    %v807 = vadd.f32 %v727, %v785
    %v808 = vadd.f32 %v728, %v787
    %v809 = vadd.f32 %v729, %v789
    %v810 = vadd.f32 %v730, %v791
    %v811 = vadd.f32 %v731, %v793
    %v812 = vadd.f32 %v732, %v795
    %v813 = vadd.f32 %v733, %v797
    %v814 = vtanh.pop %v806
    %v815 = vtanh.pop %v807
    %v816 = vtanh.pop %v808
    %v817 = vtanh.pop %v809
    %v818 = vtanh.pop %v810
    %v819 = vtanh.pop %v811
    %v820 = vtanh.pop %v812
    %v821 = vtanh.pop %v813
    %830 = vrot.lane.b32.xlu0 %v814, 64
    %v831 = vpop.permute.xlu0 %830
    %832 = vrot.lane.b32.xlu0 %v815, 64
    %v833 = vpop.permute.xlu0 %832
    %834 = vrot.lane.b32.xlu0 %v816, 64
    %v835 = vpop.permute.xlu0 %834
    %836 = vrot.lane.b32.xlu0 %v817, 64
    %v837 = vpop.permute.xlu0 %836
    %838 = vrot.lane.b32.xlu0 %v818, 64
    %v839 = vpop.permute.xlu0 %838
    %840 = vrot.lane.b32.xlu0 %v819, 64
    %v841 = vpop.permute.xlu0 %840
    %842 = vrot.lane.b32.xlu0 %v820, 64
    %v843 = vpop.permute.xlu0 %842
    %844 = vrot.lane.b32.xlu0 %v821, 64
    %v845 = vpop.permute.xlu0 %844
    %v854 = vmul.f32 %v718, %v831
    %v855 = vmul.f32 %v719, %v833
    %v856 = vmul.f32 %v720, %v835
    %v857 = vmul.f32 %v721, %v837
    %v858 = vmul.f32 %v722, %v839
    %v859 = vmul.f32 %v723, %v841
    %v860 = vmul.f32 %v724, %v843
    %v861 = vmul.f32 %v725, %v845
    %v870 = vrot.slane %v855, 7
    %vm871 = vcmask 1041409
    %v872 = vsel %vm871, %v870, %v854
    %v873 = vrot.slane %v856, 6
    %vm874 = vcmask 1042434
    %v875 = vsel %vm874, %v873, %v872
    %v876 = vrot.slane %v857, 5
    %vm877 = vcmask 1043459
    %v878 = vsel %vm877, %v876, %v875
    %v879 = vrot.slane %v858, 4
    %vm880 = vcmask 1044484
    %v881 = vsel %vm880, %v879, %v878
    %v882 = vrot.slane %v859, 3
    %vm883 = vcmask 1045509
    %v884 = vsel %vm883, %v882, %v881
    %v885 = vrot.slane %v860, 2
    %vm886 = vcmask 1046534
    %v887 = vsel %vm886, %v885, %v884
    %v888 = vrot.slane %v861, 1
    %vm889 = vcmask 1047559
    %v890 = vsel %vm889, %v888, %v887
    %891 = vrot.lane.b32.xlu0 %v890, 32
    %v892 = vpop.permute.xlu0 %891
    %v893 = vsel %vm481, %v892, 0
    %895 = vmatpush.msra.mxu0 0.0
    %896 = vmatpush.msra.mxu0 0.0
    %897 = vmatpush.msra.mxu0 0.0
    %898 = vmatpush.msra.mxu0 0.0
    %899 = vmatpush.msra.mxu0 0.0
    %900 = vmatpush.msra.mxu0 0.0
    %901 = vmatpush.msra.mxu0 0.0
    %902 = vmatpush.msra.mxu0 0.0
    %903 = vmatpush.msra.mxu0 0.0
    %904 = vmatpush.msra.mxu0 0.0
    %905 = vmatpush.msra.mxu0 0.0
    %906 = vmatpush.msra.mxu0 0.0
    %v907 = vand.u32 %v473, 4294901760
    %908 = vmatpush.msra.mxu0 %v907
    %v909 = vand.u32 %v472, 4294901760
    %910 = vmatpush.msra.mxu0 %v909
    %v911 = vand.u32 %v471, 4294901760
    %912 = vmatpush.msra.mxu0 %v911
    %v913 = vand.u32 %v470, 4294901760
    %914 = vmatpush.msra.mxu0 %v913
    %v915 = vand.u32 %v893, 4294901760
    %v916 = vsub.f32 %v893, %v915
    %v917 = vand.u32 %v916, 4294901760
    %v918 = vsub.f32 %v916, %v917
    %v919 = vand.u32 %v918, 4294901760
    %920 = vmatmul.f32.gmra.mxu0 %v919
    %v921 = vpop.f32.mrf.mxu0
    %v922 = vadd.f32 0.0, %v921
    %923 = vdwg.mxu0
    %924 = vmatpush.msra.mxu0 0.0
    %925 = vmatpush.msra.mxu0 0.0
    %926 = vmatpush.msra.mxu0 0.0
    %927 = vmatpush.msra.mxu0 0.0
    %928 = vmatpush.msra.mxu0 0.0
    %929 = vmatpush.msra.mxu0 0.0
    %930 = vmatpush.msra.mxu0 0.0
    %931 = vmatpush.msra.mxu0 0.0
    %932 = vmatpush.msra.mxu0 0.0
    %933 = vmatpush.msra.mxu0 0.0
    %934 = vmatpush.msra.mxu0 0.0
    %935 = vmatpush.msra.mxu0 0.0
    %v936 = vand.u32 %v473, 4294901760
    %v937 = vsub.f32 %v473, %v936
    %v938 = vand.u32 %v937, 4294901760
    %v939 = vsub.f32 %v937, %v938
    %v940 = vand.u32 %v939, 4294901760
    %941 = vmatpush.msra.mxu0 %v940
    %v942 = vand.u32 %v472, 4294901760
    %v943 = vsub.f32 %v472, %v942
    %v944 = vand.u32 %v943, 4294901760
    %v945 = vsub.f32 %v943, %v944
    %v946 = vand.u32 %v945, 4294901760
    %947 = vmatpush.msra.mxu0 %v946
    %v948 = vand.u32 %v471, 4294901760
    %v949 = vsub.f32 %v471, %v948
    %v950 = vand.u32 %v949, 4294901760
    %v951 = vsub.f32 %v949, %v950
    %v952 = vand.u32 %v951, 4294901760
    %953 = vmatpush.msra.mxu0 %v952
    %v954 = vand.u32 %v470, 4294901760
    %v955 = vsub.f32 %v470, %v954
    %v956 = vand.u32 %v955, 4294901760
    %v957 = vsub.f32 %v955, %v956
    %v958 = vand.u32 %v957, 4294901760
    %959 = vmatpush.msra.mxu0 %v958
    %v960 = vand.u32 %v893, 4294901760
    %961 = vmatmul.f32.gmra.mxu0 %v960
    %v962 = vpop.f32.mrf.mxu0
    %v963 = vadd.f32 %v922, %v962
    %964 = vdwg.mxu0
    %965 = vmatpush.msra.mxu0 0.0
    %966 = vmatpush.msra.mxu0 0.0
    %967 = vmatpush.msra.mxu0 0.0
    %968 = vmatpush.msra.mxu0 0.0
    %969 = vmatpush.msra.mxu0 0.0
    %970 = vmatpush.msra.mxu0 0.0
    %971 = vmatpush.msra.mxu0 0.0
    %972 = vmatpush.msra.mxu0 0.0
    %973 = vmatpush.msra.mxu0 0.0
    %974 = vmatpush.msra.mxu0 0.0
    %975 = vmatpush.msra.mxu0 0.0
    %976 = vmatpush.msra.mxu0 0.0
    %v977 = vand.u32 %v473, 4294901760
    %v978 = vsub.f32 %v473, %v977
    %979 = vmatpush.msra.mxu0 %v978
    %v980 = vand.u32 %v472, 4294901760
    %v981 = vsub.f32 %v472, %v980
    %982 = vmatpush.msra.mxu0 %v981
    %v983 = vand.u32 %v471, 4294901760
    %v984 = vsub.f32 %v471, %v983
    %985 = vmatpush.msra.mxu0 %v984
    %v986 = vand.u32 %v470, 4294901760
    %v987 = vsub.f32 %v470, %v986
    %988 = vmatpush.msra.mxu0 %v987
    %v989 = vand.u32 %v893, 4294901760
    %v990 = vsub.f32 %v893, %v989
    %991 = vmatmul.f32.gmra.mxu0 %v990
    %v992 = vpop.f32.mrf.mxu0
    %v993 = vadd.f32 %v963, %v992
    %994 = vdwg.mxu0
    %995 = vmatpush.msra.mxu0 0.0
    %996 = vmatpush.msra.mxu0 0.0
    %997 = vmatpush.msra.mxu0 0.0
    %998 = vmatpush.msra.mxu0 0.0
    %999 = vmatpush.msra.mxu0 0.0
    %1000 = vmatpush.msra.mxu0 0.0
    %1001 = vmatpush.msra.mxu0 0.0
    %1002 = vmatpush.msra.mxu0 0.0
    %1003 = vmatpush.msra.mxu0 0.0
    %1004 = vmatpush.msra.mxu0 0.0
    %1005 = vmatpush.msra.mxu0 0.0
    %1006 = vmatpush.msra.mxu0 0.0
    %v1007 = vand.u32 %v473, 4294901760
    %1008 = vmatpush.msra.mxu0 %v1007
    %v1009 = vand.u32 %v472, 4294901760
    %1010 = vmatpush.msra.mxu0 %v1009
    %v1011 = vand.u32 %v471, 4294901760
    %1012 = vmatpush.msra.mxu0 %v1011
    %v1013 = vand.u32 %v470, 4294901760
    %1014 = vmatpush.msra.mxu0 %v1013
    %v1015 = vand.u32 %v893, 4294901760
    %v1016 = vsub.f32 %v893, %v1015
    %v1017 = vand.u32 %v1016, 4294901760
    %1018 = vmatmul.f32.gmra.mxu0 %v1017
    %v1019 = vpop.f32.mrf.mxu0
    %v1020 = vadd.f32 %v993, %v1019
    %1021 = vdwg.mxu0
    %1022 = vmatpush.msra.mxu0 0.0
    %1023 = vmatpush.msra.mxu0 0.0
    %1024 = vmatpush.msra.mxu0 0.0
    %1025 = vmatpush.msra.mxu0 0.0
    %1026 = vmatpush.msra.mxu0 0.0
    %1027 = vmatpush.msra.mxu0 0.0
    %1028 = vmatpush.msra.mxu0 0.0
    %1029 = vmatpush.msra.mxu0 0.0
    %1030 = vmatpush.msra.mxu0 0.0
    %1031 = vmatpush.msra.mxu0 0.0
    %1032 = vmatpush.msra.mxu0 0.0
    %1033 = vmatpush.msra.mxu0 0.0
    %v1034 = vand.u32 %v473, 4294901760
    %v1035 = vsub.f32 %v473, %v1034
    %v1036 = vand.u32 %v1035, 4294901760
    %1037 = vmatpush.msra.mxu0 %v1036
    %v1038 = vand.u32 %v472, 4294901760
    %v1039 = vsub.f32 %v472, %v1038
    %v1040 = vand.u32 %v1039, 4294901760
    %1041 = vmatpush.msra.mxu0 %v1040
    %v1042 = vand.u32 %v471, 4294901760
    %v1043 = vsub.f32 %v471, %v1042
    %v1044 = vand.u32 %v1043, 4294901760
    %1045 = vmatpush.msra.mxu0 %v1044
    %v1046 = vand.u32 %v470, 4294901760
    %v1047 = vsub.f32 %v470, %v1046
    %v1048 = vand.u32 %v1047, 4294901760
    %1049 = vmatpush.msra.mxu0 %v1048
    %v1050 = vand.u32 %v893, 4294901760
    %1051 = vmatmul.f32.gmra.mxu0 %v1050
    %v1052 = vpop.f32.mrf.mxu0
    %v1053 = vadd.f32 %v1020, %v1052
    %1054 = vdwg.mxu0
    %1055 = vmatpush.msra.mxu0 0.0
    %1056 = vmatpush.msra.mxu0 0.0
    %1057 = vmatpush.msra.mxu0 0.0
    %1058 = vmatpush.msra.mxu0 0.0
    %1059 = vmatpush.msra.mxu0 0.0
    %1060 = vmatpush.msra.mxu0 0.0
    %1061 = vmatpush.msra.mxu0 0.0
    %1062 = vmatpush.msra.mxu0 0.0
    %1063 = vmatpush.msra.mxu0 0.0
    %1064 = vmatpush.msra.mxu0 0.0
    %1065 = vmatpush.msra.mxu0 0.0
    %1066 = vmatpush.msra.mxu0 0.0
    %v1067 = vand.u32 %v473, 4294901760
    %1068 = vmatpush.msra.mxu0 %v1067
    %v1069 = vand.u32 %v472, 4294901760
    %1070 = vmatpush.msra.mxu0 %v1069
    %v1071 = vand.u32 %v471, 4294901760
    %1072 = vmatpush.msra.mxu0 %v1071
    %v1073 = vand.u32 %v470, 4294901760
    %1074 = vmatpush.msra.mxu0 %v1073
    %v1075 = vand.u32 %v893, 4294901760
    %1076 = vmatmul.f32.gmra.mxu0 %v1075
    %v1077 = vpop.f32.mrf.mxu0
    %v1078 = vadd.f32 %v1053, %v1077
    %1079 = vdwg.mxu0
    %v1081 = vrot.slane %v1078, 7
    %v1082 = vrot.slane %v1078, 1
    %v1083 = vrot.slane %v1078, 2
    %v1084 = vrot.slane %v1078, 3
    %v1085 = vrot.slane %v1078, 4
    %v1086 = vrot.slane %v1078, 5
    %v1087 = vrot.slane %v1078, 6
    %v1096 = vadd.f32 %v440, %v1081
    %v1097 = vadd.f32 %v444, %v1078
    %v1098 = vadd.f32 %v448, %v1082
    %v1099 = vadd.f32 %v452, %v1083
    %v1100 = vadd.f32 %v456, %v1084
    %v1101 = vadd.f32 %v460, %v1085
    %v1102 = vadd.f32 %v464, %v1086
    %v1103 = vadd.f32 %v468, %v1087
    %v1104 = vmul.f32 %v1096, %v479
    %v1105 = vmul.f32 %v1097, %v479
    %v1106 = vmul.f32 %v1098, %v479
    %v1107 = vmul.f32 %v1099, %v479
    %v1108 = vmul.f32 %v1100, %v479
    %v1109 = vmul.f32 %v1101, %v479
    %v1110 = vmul.f32 %v1102, %v479
    %v1111 = vmul.f32 %v1103, %v479
    %v1112 = vtanh.pop %v1104
    %v1113 = vtanh.pop %v1105
    %v1114 = vtanh.pop %v1106
    %v1115 = vtanh.pop %v1107
    %v1116 = vtanh.pop %v1108
    %v1117 = vtanh.pop %v1109
    %v1118 = vtanh.pop %v1110
    %v1119 = vtanh.pop %v1111
    %v1120 = vmul.f32 %v1112, %v479
    %v1121 = vmul.f32 %v1113, %v479
    %v1122 = vmul.f32 %v1114, %v479
    %v1123 = vmul.f32 %v1115, %v479
    %v1124 = vmul.f32 %v1116, %v479
    %v1125 = vmul.f32 %v1117, %v479
    %v1126 = vmul.f32 %v1118, %v479
    %v1127 = vmul.f32 %v1119, %v479
    %v1128 = vadd.f32 %v1120, %v480
    %v1129 = vadd.f32 %v1121, %v480
    %v1130 = vadd.f32 %v1122, %v480
    %v1131 = vadd.f32 %v1123, %v480
    %v1132 = vadd.f32 %v1124, %v480
    %v1133 = vadd.f32 %v1125, %v480
    %v1134 = vadd.f32 %v1126, %v480
    %v1135 = vadd.f32 %v1127, %v480
    %v1144 = vrot.slane %v806, 7
    %v1145 = vrot.slane %v807, 7
    %v1146 = vrot.slane %v808, 7
    %v1147 = vrot.slane %v809, 7
    %v1148 = vrot.slane %v810, 7
    %v1149 = vrot.slane %v811, 7
    %v1150 = vrot.slane %v812, 7
    %v1151 = vrot.slane %v813, 7
    %v1160 = vmul.f32 %v1128, %v1144
    %v1161 = vmul.f32 %v1129, %v1145
    %v1162 = vmul.f32 %v1130, %v1146
    %v1163 = vmul.f32 %v1131, %v1147
    %v1164 = vmul.f32 %v1132, %v1148
    %v1165 = vmul.f32 %v1133, %v1149
    %v1166 = vmul.f32 %v1134, %v1150
    %v1167 = vmul.f32 %v1135, %v1151
    %1176 = vrot.lane.b32.xlu0 %v1128, 64
    %v1177 = vpop.permute.xlu0 %1176
    %1178 = vrot.lane.b32.xlu0 %v1129, 64
    %v1179 = vpop.permute.xlu0 %1178
    %1180 = vrot.lane.b32.xlu0 %v1130, 64
    %v1181 = vpop.permute.xlu0 %1180
    %1182 = vrot.lane.b32.xlu0 %v1131, 64
    %v1183 = vpop.permute.xlu0 %1182
    %1184 = vrot.lane.b32.xlu0 %v1132, 64
    %v1185 = vpop.permute.xlu0 %1184
    %1186 = vrot.lane.b32.xlu0 %v1133, 64
    %v1187 = vpop.permute.xlu0 %1186
    %1188 = vrot.lane.b32.xlu0 %v1134, 64
    %v1189 = vpop.permute.xlu0 %1188
    %1190 = vrot.lane.b32.xlu0 %v1135, 64
    %v1191 = vpop.permute.xlu0 %1190
    %v1200 = vmul.f32 %v1128, %v1177
    %v1201 = vmul.f32 %v1129, %v1179
    %v1202 = vmul.f32 %v1130, %v1181
    %v1203 = vmul.f32 %v1131, %v1183
    %v1204 = vmul.f32 %v1132, %v1185
    %v1205 = vmul.f32 %v1133, %v1187
    %v1206 = vmul.f32 %v1134, %v1189
    %v1207 = vmul.f32 %v1135, %v1191
    %1216 = vrot.lane.b32.xlu0 %v1200, 32
    %v1217 = vpop.permute.xlu0 %1216
    %1218 = vrot.lane.b32.xlu0 %v1201, 32
    %v1219 = vpop.permute.xlu0 %1218
    %1220 = vrot.lane.b32.xlu0 %v1202, 32
    %v1221 = vpop.permute.xlu0 %1220
    %1222 = vrot.lane.b32.xlu0 %v1203, 32
    %v1223 = vpop.permute.xlu0 %1222
    %1224 = vrot.lane.b32.xlu0 %v1204, 32
    %v1225 = vpop.permute.xlu0 %1224
    %1226 = vrot.lane.b32.xlu0 %v1205, 32
    %v1227 = vpop.permute.xlu0 %1226
    %1228 = vrot.lane.b32.xlu0 %v1206, 32
    %v1229 = vpop.permute.xlu0 %1228
    %1230 = vrot.lane.b32.xlu0 %v1207, 32
    %v1231 = vpop.permute.xlu0 %1230
    %v1240 = vadd.f32 %v1160, %v1217
    %v1241 = vadd.f32 %v1161, %v1219
    %v1242 = vadd.f32 %v1162, %v1221
    %v1243 = vadd.f32 %v1163, %v1223
    %v1244 = vadd.f32 %v1164, %v1225
    %v1245 = vadd.f32 %v1165, %v1227
    %v1246 = vadd.f32 %v1166, %v1229
    %v1247 = vadd.f32 %v1167, %v1231
    %v1248 = vtanh.pop %v1240
    %v1249 = vtanh.pop %v1241
    %v1250 = vtanh.pop %v1242
    %v1251 = vtanh.pop %v1243
    %v1252 = vtanh.pop %v1244
    %v1253 = vtanh.pop %v1245
    %v1254 = vtanh.pop %v1246
    %v1255 = vtanh.pop %v1247
    %1264 = vrot.lane.b32.xlu0 %v1248, 64
    %v1265 = vpop.permute.xlu0 %1264
    %1266 = vrot.lane.b32.xlu0 %v1249, 64
    %v1267 = vpop.permute.xlu0 %1266
    %1268 = vrot.lane.b32.xlu0 %v1250, 64
    %v1269 = vpop.permute.xlu0 %1268
    %1270 = vrot.lane.b32.xlu0 %v1251, 64
    %v1271 = vpop.permute.xlu0 %1270
    %1272 = vrot.lane.b32.xlu0 %v1252, 64
    %v1273 = vpop.permute.xlu0 %1272
    %1274 = vrot.lane.b32.xlu0 %v1253, 64
    %v1275 = vpop.permute.xlu0 %1274
    %1276 = vrot.lane.b32.xlu0 %v1254, 64
    %v1277 = vpop.permute.xlu0 %1276
    %1278 = vrot.lane.b32.xlu0 %v1255, 64
    %v1279 = vpop.permute.xlu0 %1278
    %v1288 = vmul.f32 %v1128, %v1265
    %v1289 = vmul.f32 %v1129, %v1267
    %v1290 = vmul.f32 %v1130, %v1269
    %v1291 = vmul.f32 %v1131, %v1271
    %v1292 = vmul.f32 %v1132, %v1273
    %v1293 = vmul.f32 %v1133, %v1275
    %v1294 = vmul.f32 %v1134, %v1277
    %v1295 = vmul.f32 %v1135, %v1279
    %v1304 = vrot.slane %v1288, 1
    %v1305 = vsel %vm871, %v1289, %v1304
    %v1306 = vrot.slane %v1290, 7
    %v1307 = vsel %vm874, %v1306, %v1305
    %v1308 = vrot.slane %v1291, 6
    %v1309 = vsel %vm877, %v1308, %v1307
    %v1310 = vrot.slane %v1292, 5
    %v1311 = vsel %vm880, %v1310, %v1309
    %v1312 = vrot.slane %v1293, 4
    %v1313 = vsel %vm883, %v1312, %v1311
    %v1314 = vrot.slane %v1294, 3
    %v1315 = vsel %vm886, %v1314, %v1313
    %v1316 = vrot.slane %v1295, 2
    %v1317 = vsel %vm889, %v1316, %v1315
    %1318 = vrot.lane.b32.xlu0 %v1317, 32
    %v1319 = vpop.permute.xlu0 %1318
    %v1320 = vsel %vm481, %v1319, 0
    %1322 = vmatpush.msra.mxu0 0.0
    %1323 = vmatpush.msra.mxu0 0.0
    %1324 = vmatpush.msra.mxu0 0.0
    %1325 = vmatpush.msra.mxu0 0.0
    %1326 = vmatpush.msra.mxu0 0.0
    %1327 = vmatpush.msra.mxu0 0.0
    %1328 = vmatpush.msra.mxu0 0.0
    %1329 = vmatpush.msra.mxu0 0.0
    %1330 = vmatpush.msra.mxu0 0.0
    %1331 = vmatpush.msra.mxu0 0.0
    %1332 = vmatpush.msra.mxu0 0.0
    %1333 = vmatpush.msra.mxu0 0.0
    %v1334 = vand.u32 %v473, 4294901760
    %1335 = vmatpush.msra.mxu0 %v1334
    %v1336 = vand.u32 %v472, 4294901760
    %1337 = vmatpush.msra.mxu0 %v1336
    %v1338 = vand.u32 %v471, 4294901760
    %1339 = vmatpush.msra.mxu0 %v1338
    %v1340 = vand.u32 %v470, 4294901760
    %1341 = vmatpush.msra.mxu0 %v1340
    %v1342 = vand.u32 %v1320, 4294901760
    %v1343 = vsub.f32 %v1320, %v1342
    %v1344 = vand.u32 %v1343, 4294901760
    %v1345 = vsub.f32 %v1343, %v1344
    %v1346 = vand.u32 %v1345, 4294901760
    %1347 = vmatmul.f32.gmra.mxu0 %v1346
    %v1348 = vpop.f32.mrf.mxu0
    %v1349 = vadd.f32 0.0, %v1348
    %1350 = vdwg.mxu0
    %1351 = vmatpush.msra.mxu0 0.0
    %1352 = vmatpush.msra.mxu0 0.0
    %1353 = vmatpush.msra.mxu0 0.0
    %1354 = vmatpush.msra.mxu0 0.0
    %1355 = vmatpush.msra.mxu0 0.0
    %1356 = vmatpush.msra.mxu0 0.0
    %1357 = vmatpush.msra.mxu0 0.0
    %1358 = vmatpush.msra.mxu0 0.0
    %1359 = vmatpush.msra.mxu0 0.0
    %1360 = vmatpush.msra.mxu0 0.0
    %1361 = vmatpush.msra.mxu0 0.0
    %1362 = vmatpush.msra.mxu0 0.0
    %v1363 = vand.u32 %v473, 4294901760
    %v1364 = vsub.f32 %v473, %v1363
    %v1365 = vand.u32 %v1364, 4294901760
    %v1366 = vsub.f32 %v1364, %v1365
    %v1367 = vand.u32 %v1366, 4294901760
    %1368 = vmatpush.msra.mxu0 %v1367
    %v1369 = vand.u32 %v472, 4294901760
    %v1370 = vsub.f32 %v472, %v1369
    %v1371 = vand.u32 %v1370, 4294901760
    %v1372 = vsub.f32 %v1370, %v1371
    %v1373 = vand.u32 %v1372, 4294901760
    %1374 = vmatpush.msra.mxu0 %v1373
    %v1375 = vand.u32 %v471, 4294901760
    %v1376 = vsub.f32 %v471, %v1375
    %v1377 = vand.u32 %v1376, 4294901760
    %v1378 = vsub.f32 %v1376, %v1377
    %v1379 = vand.u32 %v1378, 4294901760
    %1380 = vmatpush.msra.mxu0 %v1379
    %v1381 = vand.u32 %v470, 4294901760
    %v1382 = vsub.f32 %v470, %v1381
    %v1383 = vand.u32 %v1382, 4294901760
    %v1384 = vsub.f32 %v1382, %v1383
    %v1385 = vand.u32 %v1384, 4294901760
    %1386 = vmatpush.msra.mxu0 %v1385
    %v1387 = vand.u32 %v1320, 4294901760
    %1388 = vmatmul.f32.gmra.mxu0 %v1387
    %v1389 = vpop.f32.mrf.mxu0
    %v1390 = vadd.f32 %v1349, %v1389
    %1391 = vdwg.mxu0
    %1392 = vmatpush.msra.mxu0 0.0
    %1393 = vmatpush.msra.mxu0 0.0
    %1394 = vmatpush.msra.mxu0 0.0
    %1395 = vmatpush.msra.mxu0 0.0
    %1396 = vmatpush.msra.mxu0 0.0
    %1397 = vmatpush.msra.mxu0 0.0
    %1398 = vmatpush.msra.mxu0 0.0
    %1399 = vmatpush.msra.mxu0 0.0
    %1400 = vmatpush.msra.mxu0 0.0
    %1401 = vmatpush.msra.mxu0 0.0
    %1402 = vmatpush.msra.mxu0 0.0
    %1403 = vmatpush.msra.mxu0 0.0
    %v1404 = vand.u32 %v473, 4294901760
    %v1405 = vsub.f32 %v473, %v1404
    %1406 = vmatpush.msra.mxu0 %v1405
    %v1407 = vand.u32 %v472, 4294901760
    %v1408 = vsub.f32 %v472, %v1407
    %1409 = vmatpush.msra.mxu0 %v1408
    %v1410 = vand.u32 %v471, 4294901760
    %v1411 = vsub.f32 %v471, %v1410
    %1412 = vmatpush.msra.mxu0 %v1411
    %v1413 = vand.u32 %v470, 4294901760
    %v1414 = vsub.f32 %v470, %v1413
    %1415 = vmatpush.msra.mxu0 %v1414
    %v1416 = vand.u32 %v1320, 4294901760
    %v1417 = vsub.f32 %v1320, %v1416
    %1418 = vmatmul.f32.gmra.mxu0 %v1417
    %v1419 = vpop.f32.mrf.mxu0
    %v1420 = vadd.f32 %v1390, %v1419
    %1421 = vdwg.mxu0
    %1422 = vmatpush.msra.mxu0 0.0
    %1423 = vmatpush.msra.mxu0 0.0
    %1424 = vmatpush.msra.mxu0 0.0
    %1425 = vmatpush.msra.mxu0 0.0
    %1426 = vmatpush.msra.mxu0 0.0
    %1427 = vmatpush.msra.mxu0 0.0
    %1428 = vmatpush.msra.mxu0 0.0
    %1429 = vmatpush.msra.mxu0 0.0
    %1430 = vmatpush.msra.mxu0 0.0
    %1431 = vmatpush.msra.mxu0 0.0
    %1432 = vmatpush.msra.mxu0 0.0
    %1433 = vmatpush.msra.mxu0 0.0
    %v1434 = vand.u32 %v473, 4294901760
    %1435 = vmatpush.msra.mxu0 %v1434
    %v1436 = vand.u32 %v472, 4294901760
    %1437 = vmatpush.msra.mxu0 %v1436
    %v1438 = vand.u32 %v471, 4294901760
    %1439 = vmatpush.msra.mxu0 %v1438
    %v1440 = vand.u32 %v470, 4294901760
    %1441 = vmatpush.msra.mxu0 %v1440
    %v1442 = vand.u32 %v1320, 4294901760
    %v1443 = vsub.f32 %v1320, %v1442
    %v1444 = vand.u32 %v1443, 4294901760
    %1445 = vmatmul.f32.gmra.mxu0 %v1444
    %v1446 = vpop.f32.mrf.mxu0
    %v1447 = vadd.f32 %v1420, %v1446
    %1448 = vdwg.mxu0
    %1449 = vmatpush.msra.mxu0 0.0
    %1450 = vmatpush.msra.mxu0 0.0
    %1451 = vmatpush.msra.mxu0 0.0
    %1452 = vmatpush.msra.mxu0 0.0
    %1453 = vmatpush.msra.mxu0 0.0
    %1454 = vmatpush.msra.mxu0 0.0
    %1455 = vmatpush.msra.mxu0 0.0
    %1456 = vmatpush.msra.mxu0 0.0
    %1457 = vmatpush.msra.mxu0 0.0
    %1458 = vmatpush.msra.mxu0 0.0
    %1459 = vmatpush.msra.mxu0 0.0
    %1460 = vmatpush.msra.mxu0 0.0
    %v1461 = vand.u32 %v473, 4294901760
    %v1462 = vsub.f32 %v473, %v1461
    %v1463 = vand.u32 %v1462, 4294901760
    %1464 = vmatpush.msra.mxu0 %v1463
    %v1465 = vand.u32 %v472, 4294901760
    %v1466 = vsub.f32 %v472, %v1465
    %v1467 = vand.u32 %v1466, 4294901760
    %1468 = vmatpush.msra.mxu0 %v1467
    %v1469 = vand.u32 %v471, 4294901760
    %v1470 = vsub.f32 %v471, %v1469
    %v1471 = vand.u32 %v1470, 4294901760
    %1472 = vmatpush.msra.mxu0 %v1471
    %v1473 = vand.u32 %v470, 4294901760
    %v1474 = vsub.f32 %v470, %v1473
    %v1475 = vand.u32 %v1474, 4294901760
    %1476 = vmatpush.msra.mxu0 %v1475
    %v1477 = vand.u32 %v1320, 4294901760
    %1478 = vmatmul.f32.gmra.mxu0 %v1477
    %v1479 = vpop.f32.mrf.mxu0
    %v1480 = vadd.f32 %v1447, %v1479
    %1481 = vdwg.mxu0
    %1482 = vmatpush.msra.mxu0 0.0
    %1483 = vmatpush.msra.mxu0 0.0
    %1484 = vmatpush.msra.mxu0 0.0
    %1485 = vmatpush.msra.mxu0 0.0
    %1486 = vmatpush.msra.mxu0 0.0
    %1487 = vmatpush.msra.mxu0 0.0
    %1488 = vmatpush.msra.mxu0 0.0
    %1489 = vmatpush.msra.mxu0 0.0
    %1490 = vmatpush.msra.mxu0 0.0
    %1491 = vmatpush.msra.mxu0 0.0
    %1492 = vmatpush.msra.mxu0 0.0
    %1493 = vmatpush.msra.mxu0 0.0
    %v1494 = vand.u32 %v473, 4294901760
    %1495 = vmatpush.msra.mxu0 %v1494
    %v1496 = vand.u32 %v472, 4294901760
    %1497 = vmatpush.msra.mxu0 %v1496
    %v1498 = vand.u32 %v471, 4294901760
    %1499 = vmatpush.msra.mxu0 %v1498
    %v1500 = vand.u32 %v470, 4294901760
    %1501 = vmatpush.msra.mxu0 %v1500
    %v1502 = vand.u32 %v1320, 4294901760
    %1503 = vmatmul.f32.gmra.mxu0 %v1502
    %v1504 = vpop.f32.mrf.mxu0
    %v1505 = vadd.f32 %v1480, %v1504
    %1506 = vdwg.mxu0
    %v1508 = vrot.slane %v1505, 6
    %v1509 = vrot.slane %v1505, 7
    %v1510 = vrot.slane %v1505, 1
    %v1511 = vrot.slane %v1505, 2
    %v1512 = vrot.slane %v1505, 3
    %v1513 = vrot.slane %v1505, 4
    %v1514 = vrot.slane %v1505, 5
    %v1523 = vadd.f32 %v440, %v1508
    %v1524 = vadd.f32 %v444, %v1509
    %v1525 = vadd.f32 %v448, %v1505
    %v1526 = vadd.f32 %v452, %v1510
    %v1527 = vadd.f32 %v456, %v1511
    %v1528 = vadd.f32 %v460, %v1512
    %v1529 = vadd.f32 %v464, %v1513
    %v1530 = vadd.f32 %v468, %v1514
    %v1531 = vmul.f32 %v1523, %v479
    %v1532 = vmul.f32 %v1524, %v479
    %v1533 = vmul.f32 %v1525, %v479
    %v1534 = vmul.f32 %v1526, %v479
    %v1535 = vmul.f32 %v1527, %v479
    %v1536 = vmul.f32 %v1528, %v479
    %v1537 = vmul.f32 %v1529, %v479
    %v1538 = vmul.f32 %v1530, %v479
    %v1539 = vtanh.pop %v1531
    %v1540 = vtanh.pop %v1532
    %v1541 = vtanh.pop %v1533
    %v1542 = vtanh.pop %v1534
    %v1543 = vtanh.pop %v1535
    %v1544 = vtanh.pop %v1536
    %v1545 = vtanh.pop %v1537
    %v1546 = vtanh.pop %v1538
    %v1547 = vmul.f32 %v1539, %v479
    %v1548 = vmul.f32 %v1540, %v479
    %v1549 = vmul.f32 %v1541, %v479
    %v1550 = vmul.f32 %v1542, %v479
    %v1551 = vmul.f32 %v1543, %v479
    %v1552 = vmul.f32 %v1544, %v479
    %v1553 = vmul.f32 %v1545, %v479
    %v1554 = vmul.f32 %v1546, %v479
    %v1555 = vadd.f32 %v1547, %v480
    %v1556 = vadd.f32 %v1548, %v480
    %v1557 = vadd.f32 %v1549, %v480
    %v1558 = vadd.f32 %v1550, %v480
    %v1559 = vadd.f32 %v1551, %v480
    %v1560 = vadd.f32 %v1552, %v480
    %v1561 = vadd.f32 %v1553, %v480
    %v1562 = vadd.f32 %v1554, %v480
    %v1571 = vrot.slane %v1240, 7
    %v1572 = vrot.slane %v1241, 7
    %v1573 = vrot.slane %v1242, 7
    %v1574 = vrot.slane %v1243, 7
    %v1575 = vrot.slane %v1244, 7
    %v1576 = vrot.slane %v1245, 7
    %v1577 = vrot.slane %v1246, 7
    %v1578 = vrot.slane %v1247, 7
    %v1587 = vmul.f32 %v1555, %v1571
    %v1588 = vmul.f32 %v1556, %v1572
    %v1589 = vmul.f32 %v1557, %v1573
    %v1590 = vmul.f32 %v1558, %v1574
    %v1591 = vmul.f32 %v1559, %v1575
    %v1592 = vmul.f32 %v1560, %v1576
    %v1593 = vmul.f32 %v1561, %v1577
    %v1594 = vmul.f32 %v1562, %v1578
    %1603 = vrot.lane.b32.xlu0 %v1555, 64
    %v1604 = vpop.permute.xlu0 %1603
    %1605 = vrot.lane.b32.xlu0 %v1556, 64
    %v1606 = vpop.permute.xlu0 %1605
    %1607 = vrot.lane.b32.xlu0 %v1557, 64
    %v1608 = vpop.permute.xlu0 %1607
    %1609 = vrot.lane.b32.xlu0 %v1558, 64
    %v1610 = vpop.permute.xlu0 %1609
    %1611 = vrot.lane.b32.xlu0 %v1559, 64
    %v1612 = vpop.permute.xlu0 %1611
    %1613 = vrot.lane.b32.xlu0 %v1560, 64
    %v1614 = vpop.permute.xlu0 %1613
    %1615 = vrot.lane.b32.xlu0 %v1561, 64
    %v1616 = vpop.permute.xlu0 %1615
    %1617 = vrot.lane.b32.xlu0 %v1562, 64
    %v1618 = vpop.permute.xlu0 %1617
    %v1627 = vmul.f32 %v1555, %v1604
    %v1628 = vmul.f32 %v1556, %v1606
    %v1629 = vmul.f32 %v1557, %v1608
    %v1630 = vmul.f32 %v1558, %v1610
    %v1631 = vmul.f32 %v1559, %v1612
    %v1632 = vmul.f32 %v1560, %v1614
    %v1633 = vmul.f32 %v1561, %v1616
    %v1634 = vmul.f32 %v1562, %v1618
    %1643 = vrot.lane.b32.xlu0 %v1627, 32
    %v1644 = vpop.permute.xlu0 %1643
    %1645 = vrot.lane.b32.xlu0 %v1628, 32
    %v1646 = vpop.permute.xlu0 %1645
    %1647 = vrot.lane.b32.xlu0 %v1629, 32
    %v1648 = vpop.permute.xlu0 %1647
    %1649 = vrot.lane.b32.xlu0 %v1630, 32
    %v1650 = vpop.permute.xlu0 %1649
    %1651 = vrot.lane.b32.xlu0 %v1631, 32
    %v1652 = vpop.permute.xlu0 %1651
    %1653 = vrot.lane.b32.xlu0 %v1632, 32
    %v1654 = vpop.permute.xlu0 %1653
    %1655 = vrot.lane.b32.xlu0 %v1633, 32
    %v1656 = vpop.permute.xlu0 %1655
    %1657 = vrot.lane.b32.xlu0 %v1634, 32
    %v1658 = vpop.permute.xlu0 %1657
    %v1667 = vadd.f32 %v1587, %v1644
    %v1668 = vadd.f32 %v1588, %v1646
    %v1669 = vadd.f32 %v1589, %v1648
    %v1670 = vadd.f32 %v1590, %v1650
    %v1671 = vadd.f32 %v1591, %v1652
    %v1672 = vadd.f32 %v1592, %v1654
    %v1673 = vadd.f32 %v1593, %v1656
    %v1674 = vadd.f32 %v1594, %v1658
    %v1675 = vtanh.pop %v1667
    %v1676 = vtanh.pop %v1668
    %v1677 = vtanh.pop %v1669
    %v1678 = vtanh.pop %v1670
    %v1679 = vtanh.pop %v1671
    %v1680 = vtanh.pop %v1672
    %v1681 = vtanh.pop %v1673
    %v1682 = vtanh.pop %v1674
    %1691 = vrot.lane.b32.xlu0 %v1675, 64
    %v1692 = vpop.permute.xlu0 %1691
    %1693 = vrot.lane.b32.xlu0 %v1676, 64
    %v1694 = vpop.permute.xlu0 %1693
    %1695 = vrot.lane.b32.xlu0 %v1677, 64
    %v1696 = vpop.permute.xlu0 %1695
    %1697 = vrot.lane.b32.xlu0 %v1678, 64
    %v1698 = vpop.permute.xlu0 %1697
    %1699 = vrot.lane.b32.xlu0 %v1679, 64
    %v1700 = vpop.permute.xlu0 %1699
    %1701 = vrot.lane.b32.xlu0 %v1680, 64
    %v1702 = vpop.permute.xlu0 %1701
    %1703 = vrot.lane.b32.xlu0 %v1681, 64
    %v1704 = vpop.permute.xlu0 %1703
    %1705 = vrot.lane.b32.xlu0 %v1682, 64
    %v1706 = vpop.permute.xlu0 %1705
    %v1715 = vmul.f32 %v1555, %v1692
    %v1716 = vmul.f32 %v1556, %v1694
    %v1717 = vmul.f32 %v1557, %v1696
    %v1718 = vmul.f32 %v1558, %v1698
    %v1719 = vmul.f32 %v1559, %v1700
    %v1720 = vmul.f32 %v1560, %v1702
    %v1721 = vmul.f32 %v1561, %v1704
    %v1722 = vmul.f32 %v1562, %v1706
    %v1731 = vrot.slane %v1715, 2
    %v1732 = vrot.slane %v1716, 1
    %v1733 = vsel %vm871, %v1732, %v1731
    %v1734 = vsel %vm874, %v1717, %v1733
    %v1735 = vrot.slane %v1718, 7
    %v1736 = vsel %vm877, %v1735, %v1734
    %v1737 = vrot.slane %v1719, 6
    %v1738 = vsel %vm880, %v1737, %v1736
    %v1739 = vrot.slane %v1720, 5
    %v1740 = vsel %vm883, %v1739, %v1738
    %v1741 = vrot.slane %v1721, 4
    %v1742 = vsel %vm886, %v1741, %v1740
    %v1743 = vrot.slane %v1722, 3
    %v1744 = vsel %vm889, %v1743, %v1742
    %1745 = vrot.lane.b32.xlu0 %v1744, 32
    %v1746 = vpop.permute.xlu0 %1745
    %v1747 = vsel %vm481, %v1746, 0
    %1749 = vmatpush.msra.mxu0 0.0
    %1750 = vmatpush.msra.mxu0 0.0
    %1751 = vmatpush.msra.mxu0 0.0
    %1752 = vmatpush.msra.mxu0 0.0
    %1753 = vmatpush.msra.mxu0 0.0
    %1754 = vmatpush.msra.mxu0 0.0
    %1755 = vmatpush.msra.mxu0 0.0
    %1756 = vmatpush.msra.mxu0 0.0
    %1757 = vmatpush.msra.mxu0 0.0
    %1758 = vmatpush.msra.mxu0 0.0
    %1759 = vmatpush.msra.mxu0 0.0
    %1760 = vmatpush.msra.mxu0 0.0
    %v1761 = vand.u32 %v473, 4294901760
    %1762 = vmatpush.msra.mxu0 %v1761
    %v1763 = vand.u32 %v472, 4294901760
    %1764 = vmatpush.msra.mxu0 %v1763
    %v1765 = vand.u32 %v471, 4294901760
    %1766 = vmatpush.msra.mxu0 %v1765
    %v1767 = vand.u32 %v470, 4294901760
    %1768 = vmatpush.msra.mxu0 %v1767
    %v1769 = vand.u32 %v1747, 4294901760
    %v1770 = vsub.f32 %v1747, %v1769
    %v1771 = vand.u32 %v1770, 4294901760
    %v1772 = vsub.f32 %v1770, %v1771
    %v1773 = vand.u32 %v1772, 4294901760
    %1774 = vmatmul.f32.gmra.mxu0 %v1773
    %v1775 = vpop.f32.mrf.mxu0
    %v1776 = vadd.f32 0.0, %v1775
    %1777 = vdwg.mxu0
    %1778 = vmatpush.msra.mxu0 0.0
    %1779 = vmatpush.msra.mxu0 0.0
    %1780 = vmatpush.msra.mxu0 0.0
    %1781 = vmatpush.msra.mxu0 0.0
    %1782 = vmatpush.msra.mxu0 0.0
    %1783 = vmatpush.msra.mxu0 0.0
    %1784 = vmatpush.msra.mxu0 0.0
    %1785 = vmatpush.msra.mxu0 0.0
    %1786 = vmatpush.msra.mxu0 0.0
    %1787 = vmatpush.msra.mxu0 0.0
    %1788 = vmatpush.msra.mxu0 0.0
    %1789 = vmatpush.msra.mxu0 0.0
    %v1790 = vand.u32 %v473, 4294901760
    %v1791 = vsub.f32 %v473, %v1790
    %v1792 = vand.u32 %v1791, 4294901760
    %v1793 = vsub.f32 %v1791, %v1792
    %v1794 = vand.u32 %v1793, 4294901760
    %1795 = vmatpush.msra.mxu0 %v1794
    %v1796 = vand.u32 %v472, 4294901760
    %v1797 = vsub.f32 %v472, %v1796
    %v1798 = vand.u32 %v1797, 4294901760
    %v1799 = vsub.f32 %v1797, %v1798
    %v1800 = vand.u32 %v1799, 4294901760
    %1801 = vmatpush.msra.mxu0 %v1800
    %v1802 = vand.u32 %v471, 4294901760
    %v1803 = vsub.f32 %v471, %v1802
    %v1804 = vand.u32 %v1803, 4294901760
    %v1805 = vsub.f32 %v1803, %v1804
    %v1806 = vand.u32 %v1805, 4294901760
    %1807 = vmatpush.msra.mxu0 %v1806
    %v1808 = vand.u32 %v470, 4294901760
    %v1809 = vsub.f32 %v470, %v1808
    %v1810 = vand.u32 %v1809, 4294901760
    %v1811 = vsub.f32 %v1809, %v1810
    %v1812 = vand.u32 %v1811, 4294901760
    %1813 = vmatpush.msra.mxu0 %v1812
    %v1814 = vand.u32 %v1747, 4294901760
    %1815 = vmatmul.f32.gmra.mxu0 %v1814
    %v1816 = vpop.f32.mrf.mxu0
    %v1817 = vadd.f32 %v1776, %v1816
    %1818 = vdwg.mxu0
    %1819 = vmatpush.msra.mxu0 0.0
    %1820 = vmatpush.msra.mxu0 0.0
    %1821 = vmatpush.msra.mxu0 0.0
    %1822 = vmatpush.msra.mxu0 0.0
    %1823 = vmatpush.msra.mxu0 0.0
    %1824 = vmatpush.msra.mxu0 0.0
    %1825 = vmatpush.msra.mxu0 0.0
    %1826 = vmatpush.msra.mxu0 0.0
    %1827 = vmatpush.msra.mxu0 0.0
    %1828 = vmatpush.msra.mxu0 0.0
    %1829 = vmatpush.msra.mxu0 0.0
    %1830 = vmatpush.msra.mxu0 0.0
    %v1831 = vand.u32 %v473, 4294901760
    %v1832 = vsub.f32 %v473, %v1831
    %1833 = vmatpush.msra.mxu0 %v1832
    %v1834 = vand.u32 %v472, 4294901760
    %v1835 = vsub.f32 %v472, %v1834
    %1836 = vmatpush.msra.mxu0 %v1835
    %v1837 = vand.u32 %v471, 4294901760
    %v1838 = vsub.f32 %v471, %v1837
    %1839 = vmatpush.msra.mxu0 %v1838
    %v1840 = vand.u32 %v470, 4294901760
    %v1841 = vsub.f32 %v470, %v1840
    %1842 = vmatpush.msra.mxu0 %v1841
    %v1843 = vand.u32 %v1747, 4294901760
    %v1844 = vsub.f32 %v1747, %v1843
    %1845 = vmatmul.f32.gmra.mxu0 %v1844
    %v1846 = vpop.f32.mrf.mxu0
    %v1847 = vadd.f32 %v1817, %v1846
    %1848 = vdwg.mxu0
    %1849 = vmatpush.msra.mxu0 0.0
    %1850 = vmatpush.msra.mxu0 0.0
    %1851 = vmatpush.msra.mxu0 0.0
    %1852 = vmatpush.msra.mxu0 0.0
    %1853 = vmatpush.msra.mxu0 0.0
    %1854 = vmatpush.msra.mxu0 0.0
    %1855 = vmatpush.msra.mxu0 0.0
    %1856 = vmatpush.msra.mxu0 0.0
    %1857 = vmatpush.msra.mxu0 0.0
    %1858 = vmatpush.msra.mxu0 0.0
    %1859 = vmatpush.msra.mxu0 0.0
    %1860 = vmatpush.msra.mxu0 0.0
    %v1861 = vand.u32 %v473, 4294901760
    %1862 = vmatpush.msra.mxu0 %v1861
    %v1863 = vand.u32 %v472, 4294901760
    %1864 = vmatpush.msra.mxu0 %v1863
    %v1865 = vand.u32 %v471, 4294901760
    %1866 = vmatpush.msra.mxu0 %v1865
    %v1867 = vand.u32 %v470, 4294901760
    %1868 = vmatpush.msra.mxu0 %v1867
    %v1869 = vand.u32 %v1747, 4294901760
    %v1870 = vsub.f32 %v1747, %v1869
    %v1871 = vand.u32 %v1870, 4294901760
    %1872 = vmatmul.f32.gmra.mxu0 %v1871
    %v1873 = vpop.f32.mrf.mxu0
    %v1874 = vadd.f32 %v1847, %v1873
    %1875 = vdwg.mxu0
    %1876 = vmatpush.msra.mxu0 0.0
    %1877 = vmatpush.msra.mxu0 0.0
    %1878 = vmatpush.msra.mxu0 0.0
    %1879 = vmatpush.msra.mxu0 0.0
    %1880 = vmatpush.msra.mxu0 0.0
    %1881 = vmatpush.msra.mxu0 0.0
    %1882 = vmatpush.msra.mxu0 0.0
    %1883 = vmatpush.msra.mxu0 0.0
    %1884 = vmatpush.msra.mxu0 0.0
    %1885 = vmatpush.msra.mxu0 0.0
    %1886 = vmatpush.msra.mxu0 0.0
    %1887 = vmatpush.msra.mxu0 0.0
    %v1888 = vand.u32 %v473, 4294901760
    %v1889 = vsub.f32 %v473, %v1888
    %v1890 = vand.u32 %v1889, 4294901760
    %1891 = vmatpush.msra.mxu0 %v1890
    %v1892 = vand.u32 %v472, 4294901760
    %v1893 = vsub.f32 %v472, %v1892
    %v1894 = vand.u32 %v1893, 4294901760
    %1895 = vmatpush.msra.mxu0 %v1894
    %v1896 = vand.u32 %v471, 4294901760
    %v1897 = vsub.f32 %v471, %v1896
    %v1898 = vand.u32 %v1897, 4294901760
    %1899 = vmatpush.msra.mxu0 %v1898
    %v1900 = vand.u32 %v470, 4294901760
    %v1901 = vsub.f32 %v470, %v1900
    %v1902 = vand.u32 %v1901, 4294901760
    %1903 = vmatpush.msra.mxu0 %v1902
    %v1904 = vand.u32 %v1747, 4294901760
    %1905 = vmatmul.f32.gmra.mxu0 %v1904
    %v1906 = vpop.f32.mrf.mxu0
    %v1907 = vadd.f32 %v1874, %v1906
    %1908 = vdwg.mxu0
    %1909 = vmatpush.msra.mxu0 0.0
    %1910 = vmatpush.msra.mxu0 0.0
    %1911 = vmatpush.msra.mxu0 0.0
    %1912 = vmatpush.msra.mxu0 0.0
    %1913 = vmatpush.msra.mxu0 0.0
    %1914 = vmatpush.msra.mxu0 0.0
    %1915 = vmatpush.msra.mxu0 0.0
    %1916 = vmatpush.msra.mxu0 0.0
    %1917 = vmatpush.msra.mxu0 0.0
    %1918 = vmatpush.msra.mxu0 0.0
    %1919 = vmatpush.msra.mxu0 0.0
    %1920 = vmatpush.msra.mxu0 0.0
    %v1921 = vand.u32 %v473, 4294901760
    %1922 = vmatpush.msra.mxu0 %v1921
    %v1923 = vand.u32 %v472, 4294901760
    %1924 = vmatpush.msra.mxu0 %v1923
    %v1925 = vand.u32 %v471, 4294901760
    %1926 = vmatpush.msra.mxu0 %v1925
    %v1927 = vand.u32 %v470, 4294901760
    %1928 = vmatpush.msra.mxu0 %v1927
    %v1929 = vand.u32 %v1747, 4294901760
    %1930 = vmatmul.f32.gmra.mxu0 %v1929
    %v1931 = vpop.f32.mrf.mxu0
    %v1932 = vadd.f32 %v1907, %v1931
    %1933 = vdwg.mxu0
    %v1935 = vrot.slane %v1932, 5
    %v1936 = vrot.slane %v1932, 6
    %v1937 = vrot.slane %v1932, 7
    %v1938 = vrot.slane %v1932, 1
    %v1939 = vrot.slane %v1932, 2
    %v1940 = vrot.slane %v1932, 3
    %v1941 = vrot.slane %v1932, 4
    %v1950 = vadd.f32 %v440, %v1935
    %v1951 = vadd.f32 %v444, %v1936
    %v1952 = vadd.f32 %v448, %v1937
    %v1953 = vadd.f32 %v452, %v1932
    %v1954 = vadd.f32 %v456, %v1938
    %v1955 = vadd.f32 %v460, %v1939
    %v1956 = vadd.f32 %v464, %v1940
    %v1957 = vadd.f32 %v468, %v1941
    %v1958 = vmul.f32 %v1950, %v479
    %v1959 = vmul.f32 %v1951, %v479
    %v1960 = vmul.f32 %v1952, %v479
    %v1961 = vmul.f32 %v1953, %v479
    %v1962 = vmul.f32 %v1954, %v479
    %v1963 = vmul.f32 %v1955, %v479
    %v1964 = vmul.f32 %v1956, %v479
    %v1965 = vmul.f32 %v1957, %v479
    %v1966 = vtanh.pop %v1958
    %v1967 = vtanh.pop %v1959
    %v1968 = vtanh.pop %v1960
    %v1969 = vtanh.pop %v1961
    %v1970 = vtanh.pop %v1962
    %v1971 = vtanh.pop %v1963
    %v1972 = vtanh.pop %v1964
    %v1973 = vtanh.pop %v1965
    %v1974 = vmul.f32 %v1966, %v479
    %v1975 = vmul.f32 %v1967, %v479
    %v1976 = vmul.f32 %v1968, %v479
    %v1977 = vmul.f32 %v1969, %v479
    %v1978 = vmul.f32 %v1970, %v479
    %v1979 = vmul.f32 %v1971, %v479
    %v1980 = vmul.f32 %v1972, %v479
    %v1981 = vmul.f32 %v1973, %v479
    %v1982 = vadd.f32 %v1974, %v480
    %v1983 = vadd.f32 %v1975, %v480
    %v1984 = vadd.f32 %v1976, %v480
    %v1985 = vadd.f32 %v1977, %v480
    %v1986 = vadd.f32 %v1978, %v480
    %v1987 = vadd.f32 %v1979, %v480
    %v1988 = vadd.f32 %v1980, %v480
    %v1989 = vadd.f32 %v1981, %v480
    %v1998 = vrot.slane %v1667, 7
    %v1999 = vrot.slane %v1668, 7
    %v2000 = vrot.slane %v1669, 7
    %v2001 = vrot.slane %v1670, 7
    %v2002 = vrot.slane %v1671, 7
    %v2003 = vrot.slane %v1672, 7
    %v2004 = vrot.slane %v1673, 7
    %v2005 = vrot.slane %v1674, 7
    %v2014 = vmul.f32 %v1982, %v1998
    %v2015 = vmul.f32 %v1983, %v1999
    %v2016 = vmul.f32 %v1984, %v2000
    %v2017 = vmul.f32 %v1985, %v2001
    %v2018 = vmul.f32 %v1986, %v2002
    %v2019 = vmul.f32 %v1987, %v2003
    %v2020 = vmul.f32 %v1988, %v2004
    %v2021 = vmul.f32 %v1989, %v2005
    %2030 = vrot.lane.b32.xlu0 %v1982, 64
    %v2031 = vpop.permute.xlu0 %2030
    %2032 = vrot.lane.b32.xlu0 %v1983, 64
    %v2033 = vpop.permute.xlu0 %2032
    %2034 = vrot.lane.b32.xlu0 %v1984, 64
    %v2035 = vpop.permute.xlu0 %2034
    %2036 = vrot.lane.b32.xlu0 %v1985, 64
    %v2037 = vpop.permute.xlu0 %2036
    %2038 = vrot.lane.b32.xlu0 %v1986, 64
    %v2039 = vpop.permute.xlu0 %2038
    %2040 = vrot.lane.b32.xlu0 %v1987, 64
    %v2041 = vpop.permute.xlu0 %2040
    %2042 = vrot.lane.b32.xlu0 %v1988, 64
    %v2043 = vpop.permute.xlu0 %2042
    %2044 = vrot.lane.b32.xlu0 %v1989, 64
    %v2045 = vpop.permute.xlu0 %2044
    %v2054 = vmul.f32 %v1982, %v2031
    %v2055 = vmul.f32 %v1983, %v2033
    %v2056 = vmul.f32 %v1984, %v2035
    %v2057 = vmul.f32 %v1985, %v2037
    %v2058 = vmul.f32 %v1986, %v2039
    %v2059 = vmul.f32 %v1987, %v2041
    %v2060 = vmul.f32 %v1988, %v2043
    %v2061 = vmul.f32 %v1989, %v2045
    %2070 = vrot.lane.b32.xlu0 %v2054, 32
    %v2071 = vpop.permute.xlu0 %2070
    %2072 = vrot.lane.b32.xlu0 %v2055, 32
    %v2073 = vpop.permute.xlu0 %2072
    %2074 = vrot.lane.b32.xlu0 %v2056, 32
    %v2075 = vpop.permute.xlu0 %2074
    %2076 = vrot.lane.b32.xlu0 %v2057, 32
    %v2077 = vpop.permute.xlu0 %2076
    %2078 = vrot.lane.b32.xlu0 %v2058, 32
    %v2079 = vpop.permute.xlu0 %2078
    %2080 = vrot.lane.b32.xlu0 %v2059, 32
    %v2081 = vpop.permute.xlu0 %2080
    %2082 = vrot.lane.b32.xlu0 %v2060, 32
    %v2083 = vpop.permute.xlu0 %2082
    %2084 = vrot.lane.b32.xlu0 %v2061, 32
    %v2085 = vpop.permute.xlu0 %2084
    %v2094 = vadd.f32 %v2014, %v2071
    %v2095 = vadd.f32 %v2015, %v2073
    %v2096 = vadd.f32 %v2016, %v2075
    %v2097 = vadd.f32 %v2017, %v2077
    %v2098 = vadd.f32 %v2018, %v2079
    %v2099 = vadd.f32 %v2019, %v2081
    %v2100 = vadd.f32 %v2020, %v2083
    %v2101 = vadd.f32 %v2021, %v2085
    %v2102 = vtanh.pop %v2094
    %v2103 = vtanh.pop %v2095
    %v2104 = vtanh.pop %v2096
    %v2105 = vtanh.pop %v2097
    %v2106 = vtanh.pop %v2098
    %v2107 = vtanh.pop %v2099
    %v2108 = vtanh.pop %v2100
    %v2109 = vtanh.pop %v2101
    %2118 = vrot.lane.b32.xlu0 %v2102, 64
    %v2119 = vpop.permute.xlu0 %2118
    %2120 = vrot.lane.b32.xlu0 %v2103, 64
    %v2121 = vpop.permute.xlu0 %2120
    %2122 = vrot.lane.b32.xlu0 %v2104, 64
    %v2123 = vpop.permute.xlu0 %2122
    %2124 = vrot.lane.b32.xlu0 %v2105, 64
    %v2125 = vpop.permute.xlu0 %2124
    %2126 = vrot.lane.b32.xlu0 %v2106, 64
    %v2127 = vpop.permute.xlu0 %2126
    %2128 = vrot.lane.b32.xlu0 %v2107, 64
    %v2129 = vpop.permute.xlu0 %2128
    %2130 = vrot.lane.b32.xlu0 %v2108, 64
    %v2131 = vpop.permute.xlu0 %2130
    %2132 = vrot.lane.b32.xlu0 %v2109, 64
    %v2133 = vpop.permute.xlu0 %2132
    %v2142 = vmul.f32 %v1982, %v2119
    %v2143 = vmul.f32 %v1983, %v2121
    %v2144 = vmul.f32 %v1984, %v2123
    %v2145 = vmul.f32 %v1985, %v2125
    %v2146 = vmul.f32 %v1986, %v2127
    %v2147 = vmul.f32 %v1987, %v2129
    %v2148 = vmul.f32 %v1988, %v2131
    %v2149 = vmul.f32 %v1989, %v2133
    %v2158 = vrot.slane %v2142, 3
    %v2159 = vrot.slane %v2143, 2
    %v2160 = vsel %vm871, %v2159, %v2158
    %v2161 = vrot.slane %v2144, 1
    %v2162 = vsel %vm874, %v2161, %v2160
    %v2163 = vsel %vm877, %v2145, %v2162
    %v2164 = vrot.slane %v2146, 7
    %v2165 = vsel %vm880, %v2164, %v2163
    %v2166 = vrot.slane %v2147, 6
    %v2167 = vsel %vm883, %v2166, %v2165
    %v2168 = vrot.slane %v2148, 5
    %v2169 = vsel %vm886, %v2168, %v2167
    %v2170 = vrot.slane %v2149, 4
    %v2171 = vsel %vm889, %v2170, %v2169
    %2172 = vrot.lane.b32.xlu0 %v2171, 32
    %v2173 = vpop.permute.xlu0 %2172
    %v2174 = vsel %vm481, %v2173, 0
    %2176 = vmatpush.msra.mxu0 0.0
    %2177 = vmatpush.msra.mxu0 0.0
    %2178 = vmatpush.msra.mxu0 0.0
    %2179 = vmatpush.msra.mxu0 0.0
    %2180 = vmatpush.msra.mxu0 0.0
    %2181 = vmatpush.msra.mxu0 0.0
    %2182 = vmatpush.msra.mxu0 0.0
    %2183 = vmatpush.msra.mxu0 0.0
    %2184 = vmatpush.msra.mxu0 0.0
    %2185 = vmatpush.msra.mxu0 0.0
    %2186 = vmatpush.msra.mxu0 0.0
    %2187 = vmatpush.msra.mxu0 0.0
    %v2188 = vand.u32 %v473, 4294901760
    %2189 = vmatpush.msra.mxu0 %v2188
    %v2190 = vand.u32 %v472, 4294901760
    %2191 = vmatpush.msra.mxu0 %v2190
    %v2192 = vand.u32 %v471, 4294901760
    %2193 = vmatpush.msra.mxu0 %v2192
    %v2194 = vand.u32 %v470, 4294901760
    %2195 = vmatpush.msra.mxu0 %v2194
    %v2196 = vand.u32 %v2174, 4294901760
    %v2197 = vsub.f32 %v2174, %v2196
    %v2198 = vand.u32 %v2197, 4294901760
    %v2199 = vsub.f32 %v2197, %v2198
    %v2200 = vand.u32 %v2199, 4294901760
    %2201 = vmatmul.f32.gmra.mxu0 %v2200
    %v2202 = vpop.f32.mrf.mxu0
    %v2203 = vadd.f32 0.0, %v2202
    %2204 = vdwg.mxu0
    %2205 = vmatpush.msra.mxu0 0.0
    %2206 = vmatpush.msra.mxu0 0.0
    %2207 = vmatpush.msra.mxu0 0.0
    %2208 = vmatpush.msra.mxu0 0.0
    %2209 = vmatpush.msra.mxu0 0.0
    %2210 = vmatpush.msra.mxu0 0.0
    %2211 = vmatpush.msra.mxu0 0.0
    %2212 = vmatpush.msra.mxu0 0.0
    %2213 = vmatpush.msra.mxu0 0.0
    %2214 = vmatpush.msra.mxu0 0.0
    %2215 = vmatpush.msra.mxu0 0.0
    %2216 = vmatpush.msra.mxu0 0.0
    %v2217 = vand.u32 %v473, 4294901760
    %v2218 = vsub.f32 %v473, %v2217
    %v2219 = vand.u32 %v2218, 4294901760
    %v2220 = vsub.f32 %v2218, %v2219
    %v2221 = vand.u32 %v2220, 4294901760
    %2222 = vmatpush.msra.mxu0 %v2221
    %v2223 = vand.u32 %v472, 4294901760
    %v2224 = vsub.f32 %v472, %v2223
    %v2225 = vand.u32 %v2224, 4294901760
    %v2226 = vsub.f32 %v2224, %v2225
    %v2227 = vand.u32 %v2226, 4294901760
    %2228 = vmatpush.msra.mxu0 %v2227
    %v2229 = vand.u32 %v471, 4294901760
    %v2230 = vsub.f32 %v471, %v2229
    %v2231 = vand.u32 %v2230, 4294901760
    %v2232 = vsub.f32 %v2230, %v2231
    %v2233 = vand.u32 %v2232, 4294901760
    %2234 = vmatpush.msra.mxu0 %v2233
    %v2235 = vand.u32 %v470, 4294901760
    %v2236 = vsub.f32 %v470, %v2235
    %v2237 = vand.u32 %v2236, 4294901760
    %v2238 = vsub.f32 %v2236, %v2237
    %v2239 = vand.u32 %v2238, 4294901760
    %2240 = vmatpush.msra.mxu0 %v2239
    %v2241 = vand.u32 %v2174, 4294901760
    %2242 = vmatmul.f32.gmra.mxu0 %v2241
    %v2243 = vpop.f32.mrf.mxu0
    %v2244 = vadd.f32 %v2203, %v2243
    %2245 = vdwg.mxu0
    %2246 = vmatpush.msra.mxu0 0.0
    %2247 = vmatpush.msra.mxu0 0.0
    %2248 = vmatpush.msra.mxu0 0.0
    %2249 = vmatpush.msra.mxu0 0.0
    %2250 = vmatpush.msra.mxu0 0.0
    %2251 = vmatpush.msra.mxu0 0.0
    %2252 = vmatpush.msra.mxu0 0.0
    %2253 = vmatpush.msra.mxu0 0.0
    %2254 = vmatpush.msra.mxu0 0.0
    %2255 = vmatpush.msra.mxu0 0.0
    %2256 = vmatpush.msra.mxu0 0.0
    %2257 = vmatpush.msra.mxu0 0.0
    %v2258 = vand.u32 %v473, 4294901760
    %v2259 = vsub.f32 %v473, %v2258
    %2260 = vmatpush.msra.mxu0 %v2259
    %v2261 = vand.u32 %v472, 4294901760
    %v2262 = vsub.f32 %v472, %v2261
    %2263 = vmatpush.msra.mxu0 %v2262
    %v2264 = vand.u32 %v471, 4294901760
    %v2265 = vsub.f32 %v471, %v2264
    %2266 = vmatpush.msra.mxu0 %v2265
    %v2267 = vand.u32 %v470, 4294901760
    %v2268 = vsub.f32 %v470, %v2267
    %2269 = vmatpush.msra.mxu0 %v2268
    %v2270 = vand.u32 %v2174, 4294901760
    %v2271 = vsub.f32 %v2174, %v2270
    %2272 = vmatmul.f32.gmra.mxu0 %v2271
    %v2273 = vpop.f32.mrf.mxu0
    %v2274 = vadd.f32 %v2244, %v2273
    %2275 = vdwg.mxu0
    %2276 = vmatpush.msra.mxu0 0.0
    %2277 = vmatpush.msra.mxu0 0.0
    %2278 = vmatpush.msra.mxu0 0.0
    %2279 = vmatpush.msra.mxu0 0.0
    %2280 = vmatpush.msra.mxu0 0.0
    %2281 = vmatpush.msra.mxu0 0.0
    %2282 = vmatpush.msra.mxu0 0.0
    %2283 = vmatpush.msra.mxu0 0.0
    %2284 = vmatpush.msra.mxu0 0.0
    %2285 = vmatpush.msra.mxu0 0.0
    %2286 = vmatpush.msra.mxu0 0.0
    %2287 = vmatpush.msra.mxu0 0.0
    %v2288 = vand.u32 %v473, 4294901760
    %2289 = vmatpush.msra.mxu0 %v2288
    %v2290 = vand.u32 %v472, 4294901760
    %2291 = vmatpush.msra.mxu0 %v2290
    %v2292 = vand.u32 %v471, 4294901760
    %2293 = vmatpush.msra.mxu0 %v2292
    %v2294 = vand.u32 %v470, 4294901760
    %2295 = vmatpush.msra.mxu0 %v2294
    %v2296 = vand.u32 %v2174, 4294901760
    %v2297 = vsub.f32 %v2174, %v2296
    %v2298 = vand.u32 %v2297, 4294901760
    %2299 = vmatmul.f32.gmra.mxu0 %v2298
    %v2300 = vpop.f32.mrf.mxu0
    %v2301 = vadd.f32 %v2274, %v2300
    %2302 = vdwg.mxu0
    %2303 = vmatpush.msra.mxu0 0.0
    %2304 = vmatpush.msra.mxu0 0.0
    %2305 = vmatpush.msra.mxu0 0.0
    %2306 = vmatpush.msra.mxu0 0.0
    %2307 = vmatpush.msra.mxu0 0.0
    %2308 = vmatpush.msra.mxu0 0.0
    %2309 = vmatpush.msra.mxu0 0.0
    %2310 = vmatpush.msra.mxu0 0.0
    %2311 = vmatpush.msra.mxu0 0.0
    %2312 = vmatpush.msra.mxu0 0.0
    %2313 = vmatpush.msra.mxu0 0.0
    %2314 = vmatpush.msra.mxu0 0.0
    %v2315 = vand.u32 %v473, 4294901760
    %v2316 = vsub.f32 %v473, %v2315
    %v2317 = vand.u32 %v2316, 4294901760
    %2318 = vmatpush.msra.mxu0 %v2317
    %v2319 = vand.u32 %v472, 4294901760
    %v2320 = vsub.f32 %v472, %v2319
    %v2321 = vand.u32 %v2320, 4294901760
    %2322 = vmatpush.msra.mxu0 %v2321
    %v2323 = vand.u32 %v471, 4294901760
    %v2324 = vsub.f32 %v471, %v2323
    %v2325 = vand.u32 %v2324, 4294901760
    %2326 = vmatpush.msra.mxu0 %v2325
    %v2327 = vand.u32 %v470, 4294901760
    %v2328 = vsub.f32 %v470, %v2327
    %v2329 = vand.u32 %v2328, 4294901760
    %2330 = vmatpush.msra.mxu0 %v2329
    %v2331 = vand.u32 %v2174, 4294901760
    %2332 = vmatmul.f32.gmra.mxu0 %v2331
    %v2333 = vpop.f32.mrf.mxu0
    %v2334 = vadd.f32 %v2301, %v2333
    %2335 = vdwg.mxu0
    %2336 = vmatpush.msra.mxu0 0.0
    %2337 = vmatpush.msra.mxu0 0.0
    %2338 = vmatpush.msra.mxu0 0.0
    %2339 = vmatpush.msra.mxu0 0.0
    %2340 = vmatpush.msra.mxu0 0.0
    %2341 = vmatpush.msra.mxu0 0.0
    %2342 = vmatpush.msra.mxu0 0.0
    %2343 = vmatpush.msra.mxu0 0.0
    %2344 = vmatpush.msra.mxu0 0.0
    %2345 = vmatpush.msra.mxu0 0.0
    %2346 = vmatpush.msra.mxu0 0.0
    %2347 = vmatpush.msra.mxu0 0.0
    %v2348 = vand.u32 %v473, 4294901760
    %2349 = vmatpush.msra.mxu0 %v2348
    %v2350 = vand.u32 %v472, 4294901760
    %2351 = vmatpush.msra.mxu0 %v2350
    %v2352 = vand.u32 %v471, 4294901760
    %2353 = vmatpush.msra.mxu0 %v2352
    %v2354 = vand.u32 %v470, 4294901760
    %2355 = vmatpush.msra.mxu0 %v2354
    %v2356 = vand.u32 %v2174, 4294901760
    %2357 = vmatmul.f32.gmra.mxu0 %v2356
    %v2358 = vpop.f32.mrf.mxu0
    %v2359 = vadd.f32 %v2334, %v2358
    %2360 = vdwg.mxu0
    %v2362 = vrot.slane %v2359, 4
    %v2363 = vrot.slane %v2359, 5
    %v2364 = vrot.slane %v2359, 6
    %v2365 = vrot.slane %v2359, 7
    %v2366 = vrot.slane %v2359, 1
    %v2367 = vrot.slane %v2359, 2
    %v2368 = vrot.slane %v2359, 3
    %v2377 = vadd.f32 %v440, %v2362
    %v2378 = vadd.f32 %v444, %v2363
    %v2379 = vadd.f32 %v448, %v2364
    %v2380 = vadd.f32 %v452, %v2365
    %v2381 = vadd.f32 %v456, %v2359
    %v2382 = vadd.f32 %v460, %v2366
    %v2383 = vadd.f32 %v464, %v2367
    %v2384 = vadd.f32 %v468, %v2368
    %v2385 = vmul.f32 %v2377, %v479
    %v2386 = vmul.f32 %v2378, %v479
    %v2387 = vmul.f32 %v2379, %v479
    %v2388 = vmul.f32 %v2380, %v479
    %v2389 = vmul.f32 %v2381, %v479
    %v2390 = vmul.f32 %v2382, %v479
    %v2391 = vmul.f32 %v2383, %v479
    %v2392 = vmul.f32 %v2384, %v479
    %v2393 = vtanh.pop %v2385
    %v2394 = vtanh.pop %v2386
    %v2395 = vtanh.pop %v2387
    %v2396 = vtanh.pop %v2388
    %v2397 = vtanh.pop %v2389
    %v2398 = vtanh.pop %v2390
    %v2399 = vtanh.pop %v2391
    %v2400 = vtanh.pop %v2392
    %v2401 = vmul.f32 %v2393, %v479
    %v2402 = vmul.f32 %v2394, %v479
    %v2403 = vmul.f32 %v2395, %v479
    %v2404 = vmul.f32 %v2396, %v479
    %v2405 = vmul.f32 %v2397, %v479
    %v2406 = vmul.f32 %v2398, %v479
    %v2407 = vmul.f32 %v2399, %v479
    %v2408 = vmul.f32 %v2400, %v479
    %v2409 = vadd.f32 %v2401, %v480
    %v2410 = vadd.f32 %v2402, %v480
    %v2411 = vadd.f32 %v2403, %v480
    %v2412 = vadd.f32 %v2404, %v480
    %v2413 = vadd.f32 %v2405, %v480
    %v2414 = vadd.f32 %v2406, %v480
    %v2415 = vadd.f32 %v2407, %v480
    %v2416 = vadd.f32 %v2408, %v480
    %v2425 = vrot.slane %v2094, 7
    %v2426 = vrot.slane %v2095, 7
    %v2427 = vrot.slane %v2096, 7
    %v2428 = vrot.slane %v2097, 7
    %v2429 = vrot.slane %v2098, 7
    %v2430 = vrot.slane %v2099, 7
    %v2431 = vrot.slane %v2100, 7
    %v2432 = vrot.slane %v2101, 7
    %v2441 = vmul.f32 %v2409, %v2425
    %v2442 = vmul.f32 %v2410, %v2426
    %v2443 = vmul.f32 %v2411, %v2427
    %v2444 = vmul.f32 %v2412, %v2428
    %v2445 = vmul.f32 %v2413, %v2429
    %v2446 = vmul.f32 %v2414, %v2430
    %v2447 = vmul.f32 %v2415, %v2431
    %v2448 = vmul.f32 %v2416, %v2432
    %2457 = vrot.lane.b32.xlu0 %v2409, 64
    %v2458 = vpop.permute.xlu0 %2457
    %2459 = vrot.lane.b32.xlu0 %v2410, 64
    %v2460 = vpop.permute.xlu0 %2459
    %2461 = vrot.lane.b32.xlu0 %v2411, 64
    %v2462 = vpop.permute.xlu0 %2461
    %2463 = vrot.lane.b32.xlu0 %v2412, 64
    %v2464 = vpop.permute.xlu0 %2463
    %2465 = vrot.lane.b32.xlu0 %v2413, 64
    %v2466 = vpop.permute.xlu0 %2465
    %2467 = vrot.lane.b32.xlu0 %v2414, 64
    %v2468 = vpop.permute.xlu0 %2467
    %2469 = vrot.lane.b32.xlu0 %v2415, 64
    %v2470 = vpop.permute.xlu0 %2469
    %2471 = vrot.lane.b32.xlu0 %v2416, 64
    %v2472 = vpop.permute.xlu0 %2471
    %v2481 = vmul.f32 %v2409, %v2458
    %v2482 = vmul.f32 %v2410, %v2460
    %v2483 = vmul.f32 %v2411, %v2462
    %v2484 = vmul.f32 %v2412, %v2464
    %v2485 = vmul.f32 %v2413, %v2466
    %v2486 = vmul.f32 %v2414, %v2468
    %v2487 = vmul.f32 %v2415, %v2470
    %v2488 = vmul.f32 %v2416, %v2472
    %2497 = vrot.lane.b32.xlu0 %v2481, 32
    %v2498 = vpop.permute.xlu0 %2497
    %2499 = vrot.lane.b32.xlu0 %v2482, 32
    %v2500 = vpop.permute.xlu0 %2499
    %2501 = vrot.lane.b32.xlu0 %v2483, 32
    %v2502 = vpop.permute.xlu0 %2501
    %2503 = vrot.lane.b32.xlu0 %v2484, 32
    %v2504 = vpop.permute.xlu0 %2503
    %2505 = vrot.lane.b32.xlu0 %v2485, 32
    %v2506 = vpop.permute.xlu0 %2505
    %2507 = vrot.lane.b32.xlu0 %v2486, 32
    %v2508 = vpop.permute.xlu0 %2507
    %2509 = vrot.lane.b32.xlu0 %v2487, 32
    %v2510 = vpop.permute.xlu0 %2509
    %2511 = vrot.lane.b32.xlu0 %v2488, 32
    %v2512 = vpop.permute.xlu0 %2511
    %v2521 = vadd.f32 %v2441, %v2498
    %v2522 = vadd.f32 %v2442, %v2500
    %v2523 = vadd.f32 %v2443, %v2502
    %v2524 = vadd.f32 %v2444, %v2504
    %v2525 = vadd.f32 %v2445, %v2506
    %v2526 = vadd.f32 %v2446, %v2508
    %v2527 = vadd.f32 %v2447, %v2510
    %v2528 = vadd.f32 %v2448, %v2512
    %v2529 = vtanh.pop %v2521
    %v2530 = vtanh.pop %v2522
    %v2531 = vtanh.pop %v2523
    %v2532 = vtanh.pop %v2524
    %v2533 = vtanh.pop %v2525
    %v2534 = vtanh.pop %v2526
    %v2535 = vtanh.pop %v2527
    %v2536 = vtanh.pop %v2528
    %2545 = vrot.lane.b32.xlu0 %v2529, 64
    %v2546 = vpop.permute.xlu0 %2545
    %2547 = vrot.lane.b32.xlu0 %v2530, 64
    %v2548 = vpop.permute.xlu0 %2547
    %2549 = vrot.lane.b32.xlu0 %v2531, 64
    %v2550 = vpop.permute.xlu0 %2549
    %2551 = vrot.lane.b32.xlu0 %v2532, 64
    %v2552 = vpop.permute.xlu0 %2551
    %2553 = vrot.lane.b32.xlu0 %v2533, 64
    %v2554 = vpop.permute.xlu0 %2553
    %2555 = vrot.lane.b32.xlu0 %v2534, 64
    %v2556 = vpop.permute.xlu0 %2555
    %2557 = vrot.lane.b32.xlu0 %v2535, 64
    %v2558 = vpop.permute.xlu0 %2557
    %2559 = vrot.lane.b32.xlu0 %v2536, 64
    %v2560 = vpop.permute.xlu0 %2559
    %v2569 = vmul.f32 %v2409, %v2546
    %v2570 = vmul.f32 %v2410, %v2548
    %v2571 = vmul.f32 %v2411, %v2550
    %v2572 = vmul.f32 %v2412, %v2552
    %v2573 = vmul.f32 %v2413, %v2554
    %v2574 = vmul.f32 %v2414, %v2556
    %v2575 = vmul.f32 %v2415, %v2558
    %v2576 = vmul.f32 %v2416, %v2560
    %v2585 = vrot.slane %v2569, 4
    %v2586 = vrot.slane %v2570, 3
    %v2587 = vsel %vm871, %v2586, %v2585
    %v2588 = vrot.slane %v2571, 2
    %v2589 = vsel %vm874, %v2588, %v2587
    %v2590 = vrot.slane %v2572, 1
    %v2591 = vsel %vm877, %v2590, %v2589
    %v2592 = vsel %vm880, %v2573, %v2591
    %v2593 = vrot.slane %v2574, 7
    %v2594 = vsel %vm883, %v2593, %v2592
    %v2595 = vrot.slane %v2575, 6
    %v2596 = vsel %vm886, %v2595, %v2594
    %v2597 = vrot.slane %v2576, 5
    %v2598 = vsel %vm889, %v2597, %v2596
    %2599 = vrot.lane.b32.xlu0 %v2598, 32
    %v2600 = vpop.permute.xlu0 %2599
    %v2601 = vsel %vm481, %v2600, 0
    %2603 = vmatpush.msra.mxu0 0.0
    %2604 = vmatpush.msra.mxu0 0.0
    %2605 = vmatpush.msra.mxu0 0.0
    %2606 = vmatpush.msra.mxu0 0.0
    %2607 = vmatpush.msra.mxu0 0.0
    %2608 = vmatpush.msra.mxu0 0.0
    %2609 = vmatpush.msra.mxu0 0.0
    %2610 = vmatpush.msra.mxu0 0.0
    %2611 = vmatpush.msra.mxu0 0.0
    %2612 = vmatpush.msra.mxu0 0.0
    %2613 = vmatpush.msra.mxu0 0.0
    %2614 = vmatpush.msra.mxu0 0.0
    %v2615 = vand.u32 %v473, 4294901760
    %2616 = vmatpush.msra.mxu0 %v2615
    %v2617 = vand.u32 %v472, 4294901760
    %2618 = vmatpush.msra.mxu0 %v2617
    %v2619 = vand.u32 %v471, 4294901760
    %2620 = vmatpush.msra.mxu0 %v2619
    %v2621 = vand.u32 %v470, 4294901760
    %2622 = vmatpush.msra.mxu0 %v2621
    %v2623 = vand.u32 %v2601, 4294901760
    %v2624 = vsub.f32 %v2601, %v2623
    %v2625 = vand.u32 %v2624, 4294901760
    %v2626 = vsub.f32 %v2624, %v2625
    %v2627 = vand.u32 %v2626, 4294901760
    %2628 = vmatmul.f32.gmra.mxu0 %v2627
    %v2629 = vpop.f32.mrf.mxu0
    %v2630 = vadd.f32 0.0, %v2629
    %2631 = vdwg.mxu0
    %2632 = vmatpush.msra.mxu0 0.0
    %2633 = vmatpush.msra.mxu0 0.0
    %2634 = vmatpush.msra.mxu0 0.0
    %2635 = vmatpush.msra.mxu0 0.0
    %2636 = vmatpush.msra.mxu0 0.0
    %2637 = vmatpush.msra.mxu0 0.0
    %2638 = vmatpush.msra.mxu0 0.0
    %2639 = vmatpush.msra.mxu0 0.0
    %2640 = vmatpush.msra.mxu0 0.0
    %2641 = vmatpush.msra.mxu0 0.0
    %2642 = vmatpush.msra.mxu0 0.0
    %2643 = vmatpush.msra.mxu0 0.0
    %v2644 = vand.u32 %v473, 4294901760
    %v2645 = vsub.f32 %v473, %v2644
    %v2646 = vand.u32 %v2645, 4294901760
    %v2647 = vsub.f32 %v2645, %v2646
    %v2648 = vand.u32 %v2647, 4294901760
    %2649 = vmatpush.msra.mxu0 %v2648
    %v2650 = vand.u32 %v472, 4294901760
    %v2651 = vsub.f32 %v472, %v2650
    %v2652 = vand.u32 %v2651, 4294901760
    %v2653 = vsub.f32 %v2651, %v2652
    %v2654 = vand.u32 %v2653, 4294901760
    %2655 = vmatpush.msra.mxu0 %v2654
    %v2656 = vand.u32 %v471, 4294901760
    %v2657 = vsub.f32 %v471, %v2656
    %v2658 = vand.u32 %v2657, 4294901760
    %v2659 = vsub.f32 %v2657, %v2658
    %v2660 = vand.u32 %v2659, 4294901760
    %2661 = vmatpush.msra.mxu0 %v2660
    %v2662 = vand.u32 %v470, 4294901760
    %v2663 = vsub.f32 %v470, %v2662
    %v2664 = vand.u32 %v2663, 4294901760
    %v2665 = vsub.f32 %v2663, %v2664
    %v2666 = vand.u32 %v2665, 4294901760
    %2667 = vmatpush.msra.mxu0 %v2666
    %v2668 = vand.u32 %v2601, 4294901760
    %2669 = vmatmul.f32.gmra.mxu0 %v2668
    %v2670 = vpop.f32.mrf.mxu0
    %v2671 = vadd.f32 %v2630, %v2670
    %2672 = vdwg.mxu0
    %2673 = vmatpush.msra.mxu0 0.0
    %2674 = vmatpush.msra.mxu0 0.0
    %2675 = vmatpush.msra.mxu0 0.0
    %2676 = vmatpush.msra.mxu0 0.0
    %2677 = vmatpush.msra.mxu0 0.0
    %2678 = vmatpush.msra.mxu0 0.0
    %2679 = vmatpush.msra.mxu0 0.0
    %2680 = vmatpush.msra.mxu0 0.0
    %2681 = vmatpush.msra.mxu0 0.0
    %2682 = vmatpush.msra.mxu0 0.0
    %2683 = vmatpush.msra.mxu0 0.0
    %2684 = vmatpush.msra.mxu0 0.0
    %v2685 = vand.u32 %v473, 4294901760
    %v2686 = vsub.f32 %v473, %v2685
    %2687 = vmatpush.msra.mxu0 %v2686
    %v2688 = vand.u32 %v472, 4294901760
    %v2689 = vsub.f32 %v472, %v2688
    %2690 = vmatpush.msra.mxu0 %v2689
    %v2691 = vand.u32 %v471, 4294901760
    %v2692 = vsub.f32 %v471, %v2691
    %2693 = vmatpush.msra.mxu0 %v2692
    %v2694 = vand.u32 %v470, 4294901760
    %v2695 = vsub.f32 %v470, %v2694
    %2696 = vmatpush.msra.mxu0 %v2695
    %v2697 = vand.u32 %v2601, 4294901760
    %v2698 = vsub.f32 %v2601, %v2697
    %2699 = vmatmul.f32.gmra.mxu0 %v2698
    %v2700 = vpop.f32.mrf.mxu0
    %v2701 = vadd.f32 %v2671, %v2700
    %2702 = vdwg.mxu0
    %2703 = vmatpush.msra.mxu0 0.0
    %2704 = vmatpush.msra.mxu0 0.0
    %2705 = vmatpush.msra.mxu0 0.0
    %2706 = vmatpush.msra.mxu0 0.0
    %2707 = vmatpush.msra.mxu0 0.0
    %2708 = vmatpush.msra.mxu0 0.0
    %2709 = vmatpush.msra.mxu0 0.0
    %2710 = vmatpush.msra.mxu0 0.0
    %2711 = vmatpush.msra.mxu0 0.0
    %2712 = vmatpush.msra.mxu0 0.0
    %2713 = vmatpush.msra.mxu0 0.0
    %2714 = vmatpush.msra.mxu0 0.0
    %v2715 = vand.u32 %v473, 4294901760
    %2716 = vmatpush.msra.mxu0 %v2715
    %v2717 = vand.u32 %v472, 4294901760
    %2718 = vmatpush.msra.mxu0 %v2717
    %v2719 = vand.u32 %v471, 4294901760
    %2720 = vmatpush.msra.mxu0 %v2719
    %v2721 = vand.u32 %v470, 4294901760
    %2722 = vmatpush.msra.mxu0 %v2721
    %v2723 = vand.u32 %v2601, 4294901760
    %v2724 = vsub.f32 %v2601, %v2723
    %v2725 = vand.u32 %v2724, 4294901760
    %2726 = vmatmul.f32.gmra.mxu0 %v2725
    %v2727 = vpop.f32.mrf.mxu0
    %v2728 = vadd.f32 %v2701, %v2727
    %2729 = vdwg.mxu0
    %2730 = vmatpush.msra.mxu0 0.0
    %2731 = vmatpush.msra.mxu0 0.0
    %2732 = vmatpush.msra.mxu0 0.0
    %2733 = vmatpush.msra.mxu0 0.0
    %2734 = vmatpush.msra.mxu0 0.0
    %2735 = vmatpush.msra.mxu0 0.0
    %2736 = vmatpush.msra.mxu0 0.0
    %2737 = vmatpush.msra.mxu0 0.0
    %2738 = vmatpush.msra.mxu0 0.0
    %2739 = vmatpush.msra.mxu0 0.0
    %2740 = vmatpush.msra.mxu0 0.0
    %2741 = vmatpush.msra.mxu0 0.0
    %v2742 = vand.u32 %v473, 4294901760
    %v2743 = vsub.f32 %v473, %v2742
    %v2744 = vand.u32 %v2743, 4294901760
    %2745 = vmatpush.msra.mxu0 %v2744
    %v2746 = vand.u32 %v472, 4294901760
    %v2747 = vsub.f32 %v472, %v2746
    %v2748 = vand.u32 %v2747, 4294901760
    %2749 = vmatpush.msra.mxu0 %v2748
    %v2750 = vand.u32 %v471, 4294901760
    %v2751 = vsub.f32 %v471, %v2750
    %v2752 = vand.u32 %v2751, 4294901760
    %2753 = vmatpush.msra.mxu0 %v2752
    %v2754 = vand.u32 %v470, 4294901760
    %v2755 = vsub.f32 %v470, %v2754
    %v2756 = vand.u32 %v2755, 4294901760
    %2757 = vmatpush.msra.mxu0 %v2756
    %v2758 = vand.u32 %v2601, 4294901760
    %2759 = vmatmul.f32.gmra.mxu0 %v2758
    %v2760 = vpop.f32.mrf.mxu0
    %v2761 = vadd.f32 %v2728, %v2760
    %2762 = vdwg.mxu0
    %2763 = vmatpush.msra.mxu0 0.0
    %2764 = vmatpush.msra.mxu0 0.0
    %2765 = vmatpush.msra.mxu0 0.0
    %2766 = vmatpush.msra.mxu0 0.0
    %2767 = vmatpush.msra.mxu0 0.0
    %2768 = vmatpush.msra.mxu0 0.0
    %2769 = vmatpush.msra.mxu0 0.0
    %2770 = vmatpush.msra.mxu0 0.0
    %2771 = vmatpush.msra.mxu0 0.0
    %2772 = vmatpush.msra.mxu0 0.0
    %2773 = vmatpush.msra.mxu0 0.0
    %2774 = vmatpush.msra.mxu0 0.0
    %v2775 = vand.u32 %v473, 4294901760
    %2776 = vmatpush.msra.mxu0 %v2775
    %v2777 = vand.u32 %v472, 4294901760
    %2778 = vmatpush.msra.mxu0 %v2777
    %v2779 = vand.u32 %v471, 4294901760
    %2780 = vmatpush.msra.mxu0 %v2779
    %v2781 = vand.u32 %v470, 4294901760
    %2782 = vmatpush.msra.mxu0 %v2781
    %v2783 = vand.u32 %v2601, 4294901760
    %2784 = vmatmul.f32.gmra.mxu0 %v2783
    %v2785 = vpop.f32.mrf.mxu0
    %v2786 = vadd.f32 %v2761, %v2785
    %2787 = vdwg.mxu0
    %v2789 = vrot.slane %v2786, 3
    %v2790 = vrot.slane %v2786, 4
    %v2791 = vrot.slane %v2786, 5
    %v2792 = vrot.slane %v2786, 6
    %v2793 = vrot.slane %v2786, 7
    %v2794 = vrot.slane %v2786, 1
    %v2795 = vrot.slane %v2786, 2
    %v2804 = vadd.f32 %v440, %v2789
    %v2805 = vadd.f32 %v444, %v2790
    %v2806 = vadd.f32 %v448, %v2791
    %v2807 = vadd.f32 %v452, %v2792
    %v2808 = vadd.f32 %v456, %v2793
    %v2809 = vadd.f32 %v460, %v2786
    %v2810 = vadd.f32 %v464, %v2794
    %v2811 = vadd.f32 %v468, %v2795
    %v2812 = vmul.f32 %v2804, %v479
    %v2813 = vmul.f32 %v2805, %v479
    %v2814 = vmul.f32 %v2806, %v479
    %v2815 = vmul.f32 %v2807, %v479
    %v2816 = vmul.f32 %v2808, %v479
    %v2817 = vmul.f32 %v2809, %v479
    %v2818 = vmul.f32 %v2810, %v479
    %v2819 = vmul.f32 %v2811, %v479
    %v2820 = vtanh.pop %v2812
    %v2821 = vtanh.pop %v2813
    %v2822 = vtanh.pop %v2814
    %v2823 = vtanh.pop %v2815
    %v2824 = vtanh.pop %v2816
    %v2825 = vtanh.pop %v2817
    %v2826 = vtanh.pop %v2818
    %v2827 = vtanh.pop %v2819
    %v2828 = vmul.f32 %v2820, %v479
    %v2829 = vmul.f32 %v2821, %v479
    %v2830 = vmul.f32 %v2822, %v479
    %v2831 = vmul.f32 %v2823, %v479
    %v2832 = vmul.f32 %v2824, %v479
    %v2833 = vmul.f32 %v2825, %v479
    %v2834 = vmul.f32 %v2826, %v479
    %v2835 = vmul.f32 %v2827, %v479
    %v2836 = vadd.f32 %v2828, %v480
    %v2837 = vadd.f32 %v2829, %v480
    %v2838 = vadd.f32 %v2830, %v480
    %v2839 = vadd.f32 %v2831, %v480
    %v2840 = vadd.f32 %v2832, %v480
    %v2841 = vadd.f32 %v2833, %v480
    %v2842 = vadd.f32 %v2834, %v480
    %v2843 = vadd.f32 %v2835, %v480
    %v2852 = vrot.slane %v2521, 7
    %v2853 = vrot.slane %v2522, 7
    %v2854 = vrot.slane %v2523, 7
    %v2855 = vrot.slane %v2524, 7
    %v2856 = vrot.slane %v2525, 7
    %v2857 = vrot.slane %v2526, 7
    %v2858 = vrot.slane %v2527, 7
    %v2859 = vrot.slane %v2528, 7
    %v2868 = vmul.f32 %v2836, %v2852
    %v2869 = vmul.f32 %v2837, %v2853
    %v2870 = vmul.f32 %v2838, %v2854
    %v2871 = vmul.f32 %v2839, %v2855
    %v2872 = vmul.f32 %v2840, %v2856
    %v2873 = vmul.f32 %v2841, %v2857
    %v2874 = vmul.f32 %v2842, %v2858
    %v2875 = vmul.f32 %v2843, %v2859
    %2884 = vrot.lane.b32.xlu0 %v2836, 64
    %v2885 = vpop.permute.xlu0 %2884
    %2886 = vrot.lane.b32.xlu0 %v2837, 64
    %v2887 = vpop.permute.xlu0 %2886
    %2888 = vrot.lane.b32.xlu0 %v2838, 64
    %v2889 = vpop.permute.xlu0 %2888
    %2890 = vrot.lane.b32.xlu0 %v2839, 64
    %v2891 = vpop.permute.xlu0 %2890
    %2892 = vrot.lane.b32.xlu0 %v2840, 64
    %v2893 = vpop.permute.xlu0 %2892
    %2894 = vrot.lane.b32.xlu0 %v2841, 64
    %v2895 = vpop.permute.xlu0 %2894
    %2896 = vrot.lane.b32.xlu0 %v2842, 64
    %v2897 = vpop.permute.xlu0 %2896
    %2898 = vrot.lane.b32.xlu0 %v2843, 64
    %v2899 = vpop.permute.xlu0 %2898
    %v2908 = vmul.f32 %v2836, %v2885
    %v2909 = vmul.f32 %v2837, %v2887
    %v2910 = vmul.f32 %v2838, %v2889
    %v2911 = vmul.f32 %v2839, %v2891
    %v2912 = vmul.f32 %v2840, %v2893
    %v2913 = vmul.f32 %v2841, %v2895
    %v2914 = vmul.f32 %v2842, %v2897
    %v2915 = vmul.f32 %v2843, %v2899
    %2924 = vrot.lane.b32.xlu0 %v2908, 32
    %v2925 = vpop.permute.xlu0 %2924
    %2926 = vrot.lane.b32.xlu0 %v2909, 32
    %v2927 = vpop.permute.xlu0 %2926
    %2928 = vrot.lane.b32.xlu0 %v2910, 32
    %v2929 = vpop.permute.xlu0 %2928
    %2930 = vrot.lane.b32.xlu0 %v2911, 32
    %v2931 = vpop.permute.xlu0 %2930
    %2932 = vrot.lane.b32.xlu0 %v2912, 32
    %v2933 = vpop.permute.xlu0 %2932
    %2934 = vrot.lane.b32.xlu0 %v2913, 32
    %v2935 = vpop.permute.xlu0 %2934
    %2936 = vrot.lane.b32.xlu0 %v2914, 32
    %v2937 = vpop.permute.xlu0 %2936
    %2938 = vrot.lane.b32.xlu0 %v2915, 32
    %v2939 = vpop.permute.xlu0 %2938
    %v2948 = vadd.f32 %v2868, %v2925
    %v2949 = vadd.f32 %v2869, %v2927
    %v2950 = vadd.f32 %v2870, %v2929
    %v2951 = vadd.f32 %v2871, %v2931
    %v2952 = vadd.f32 %v2872, %v2933
    %v2953 = vadd.f32 %v2873, %v2935
    %v2954 = vadd.f32 %v2874, %v2937
    %v2955 = vadd.f32 %v2875, %v2939
    %v2956 = vtanh.pop %v2948
    %v2957 = vtanh.pop %v2949
    %v2958 = vtanh.pop %v2950
    %v2959 = vtanh.pop %v2951
    %v2960 = vtanh.pop %v2952
    %v2961 = vtanh.pop %v2953
    %v2962 = vtanh.pop %v2954
    %v2963 = vtanh.pop %v2955
    %2972 = vrot.lane.b32.xlu0 %v2956, 64
    %v2973 = vpop.permute.xlu0 %2972
    %2974 = vrot.lane.b32.xlu0 %v2957, 64
    %v2975 = vpop.permute.xlu0 %2974
    %2976 = vrot.lane.b32.xlu0 %v2958, 64
    %v2977 = vpop.permute.xlu0 %2976
    %2978 = vrot.lane.b32.xlu0 %v2959, 64
    %v2979 = vpop.permute.xlu0 %2978
    %2980 = vrot.lane.b32.xlu0 %v2960, 64
    %v2981 = vpop.permute.xlu0 %2980
    %2982 = vrot.lane.b32.xlu0 %v2961, 64
    %v2983 = vpop.permute.xlu0 %2982
    %2984 = vrot.lane.b32.xlu0 %v2962, 64
    %v2985 = vpop.permute.xlu0 %2984
    %2986 = vrot.lane.b32.xlu0 %v2963, 64
    %v2987 = vpop.permute.xlu0 %2986
    %v2996 = vmul.f32 %v2836, %v2973
    %v2997 = vmul.f32 %v2837, %v2975
    %v2998 = vmul.f32 %v2838, %v2977
    %v2999 = vmul.f32 %v2839, %v2979
    %v3000 = vmul.f32 %v2840, %v2981
    %v3001 = vmul.f32 %v2841, %v2983
    %v3002 = vmul.f32 %v2842, %v2985
    %v3003 = vmul.f32 %v2843, %v2987
    %v3012 = vrot.slane %v2996, 5
    %v3013 = vrot.slane %v2997, 4
    %v3014 = vsel %vm871, %v3013, %v3012
    %v3015 = vrot.slane %v2998, 3
    %v3016 = vsel %vm874, %v3015, %v3014
    %v3017 = vrot.slane %v2999, 2
    %v3018 = vsel %vm877, %v3017, %v3016
    %v3019 = vrot.slane %v3000, 1
    %v3020 = vsel %vm880, %v3019, %v3018
    %v3021 = vsel %vm883, %v3001, %v3020
    %v3022 = vrot.slane %v3002, 7
    %v3023 = vsel %vm886, %v3022, %v3021
    %v3024 = vrot.slane %v3003, 6
    %v3025 = vsel %vm889, %v3024, %v3023
    %3026 = vrot.lane.b32.xlu0 %v3025, 32
    %v3027 = vpop.permute.xlu0 %3026
    %v3028 = vsel %vm481, %v3027, 0
    %3030 = vmatpush.msra.mxu0 0.0
    %3031 = vmatpush.msra.mxu0 0.0
    %3032 = vmatpush.msra.mxu0 0.0
    %3033 = vmatpush.msra.mxu0 0.0
    %3034 = vmatpush.msra.mxu0 0.0
    %3035 = vmatpush.msra.mxu0 0.0
    %3036 = vmatpush.msra.mxu0 0.0
    %3037 = vmatpush.msra.mxu0 0.0
    %3038 = vmatpush.msra.mxu0 0.0
    %3039 = vmatpush.msra.mxu0 0.0
    %3040 = vmatpush.msra.mxu0 0.0
    %3041 = vmatpush.msra.mxu0 0.0
    %v3042 = vand.u32 %v473, 4294901760
    %3043 = vmatpush.msra.mxu0 %v3042
    %v3044 = vand.u32 %v472, 4294901760
    %3045 = vmatpush.msra.mxu0 %v3044
    %v3046 = vand.u32 %v471, 4294901760
    %3047 = vmatpush.msra.mxu0 %v3046
    %v3048 = vand.u32 %v470, 4294901760
    %3049 = vmatpush.msra.mxu0 %v3048
    %v3050 = vand.u32 %v3028, 4294901760
    %v3051 = vsub.f32 %v3028, %v3050
    %v3052 = vand.u32 %v3051, 4294901760
    %v3053 = vsub.f32 %v3051, %v3052
    %v3054 = vand.u32 %v3053, 4294901760
    %3055 = vmatmul.f32.gmra.mxu0 %v3054
    %v3056 = vpop.f32.mrf.mxu0
    %v3057 = vadd.f32 0.0, %v3056
    %3058 = vdwg.mxu0
    %3059 = vmatpush.msra.mxu0 0.0
    %3060 = vmatpush.msra.mxu0 0.0
    %3061 = vmatpush.msra.mxu0 0.0
    %3062 = vmatpush.msra.mxu0 0.0
    %3063 = vmatpush.msra.mxu0 0.0
    %3064 = vmatpush.msra.mxu0 0.0
    %3065 = vmatpush.msra.mxu0 0.0
    %3066 = vmatpush.msra.mxu0 0.0
    %3067 = vmatpush.msra.mxu0 0.0
    %3068 = vmatpush.msra.mxu0 0.0
    %3069 = vmatpush.msra.mxu0 0.0
    %3070 = vmatpush.msra.mxu0 0.0
    %v3071 = vand.u32 %v473, 4294901760
    %v3072 = vsub.f32 %v473, %v3071
    %v3073 = vand.u32 %v3072, 4294901760
    %v3074 = vsub.f32 %v3072, %v3073
    %v3075 = vand.u32 %v3074, 4294901760
    %3076 = vmatpush.msra.mxu0 %v3075
    %v3077 = vand.u32 %v472, 4294901760
    %v3078 = vsub.f32 %v472, %v3077
    %v3079 = vand.u32 %v3078, 4294901760
    %v3080 = vsub.f32 %v3078, %v3079
    %v3081 = vand.u32 %v3080, 4294901760
    %3082 = vmatpush.msra.mxu0 %v3081
    %v3083 = vand.u32 %v471, 4294901760
    %v3084 = vsub.f32 %v471, %v3083
    %v3085 = vand.u32 %v3084, 4294901760
    %v3086 = vsub.f32 %v3084, %v3085
    %v3087 = vand.u32 %v3086, 4294901760
    %3088 = vmatpush.msra.mxu0 %v3087
    %v3089 = vand.u32 %v470, 4294901760
    %v3090 = vsub.f32 %v470, %v3089
    %v3091 = vand.u32 %v3090, 4294901760
    %v3092 = vsub.f32 %v3090, %v3091
    %v3093 = vand.u32 %v3092, 4294901760
    %3094 = vmatpush.msra.mxu0 %v3093
    %v3095 = vand.u32 %v3028, 4294901760
    %3096 = vmatmul.f32.gmra.mxu0 %v3095
    %v3097 = vpop.f32.mrf.mxu0
    %v3098 = vadd.f32 %v3057, %v3097
    %3099 = vdwg.mxu0
    %3100 = vmatpush.msra.mxu0 0.0
    %3101 = vmatpush.msra.mxu0 0.0
    %3102 = vmatpush.msra.mxu0 0.0
    %3103 = vmatpush.msra.mxu0 0.0
    %3104 = vmatpush.msra.mxu0 0.0
    %3105 = vmatpush.msra.mxu0 0.0
    %3106 = vmatpush.msra.mxu0 0.0
    %3107 = vmatpush.msra.mxu0 0.0
    %3108 = vmatpush.msra.mxu0 0.0
    %3109 = vmatpush.msra.mxu0 0.0
    %3110 = vmatpush.msra.mxu0 0.0
    %3111 = vmatpush.msra.mxu0 0.0
    %v3112 = vand.u32 %v473, 4294901760
    %v3113 = vsub.f32 %v473, %v3112
    %3114 = vmatpush.msra.mxu0 %v3113
    %v3115 = vand.u32 %v472, 4294901760
    %v3116 = vsub.f32 %v472, %v3115
    %3117 = vmatpush.msra.mxu0 %v3116
    %v3118 = vand.u32 %v471, 4294901760
    %v3119 = vsub.f32 %v471, %v3118
    %3120 = vmatpush.msra.mxu0 %v3119
    %v3121 = vand.u32 %v470, 4294901760
    %v3122 = vsub.f32 %v470, %v3121
    %3123 = vmatpush.msra.mxu0 %v3122
    %v3124 = vand.u32 %v3028, 4294901760
    %v3125 = vsub.f32 %v3028, %v3124
    %3126 = vmatmul.f32.gmra.mxu0 %v3125
    %v3127 = vpop.f32.mrf.mxu0
    %v3128 = vadd.f32 %v3098, %v3127
    %3129 = vdwg.mxu0
    %3130 = vmatpush.msra.mxu0 0.0
    %3131 = vmatpush.msra.mxu0 0.0
    %3132 = vmatpush.msra.mxu0 0.0
    %3133 = vmatpush.msra.mxu0 0.0
    %3134 = vmatpush.msra.mxu0 0.0
    %3135 = vmatpush.msra.mxu0 0.0
    %3136 = vmatpush.msra.mxu0 0.0
    %3137 = vmatpush.msra.mxu0 0.0
    %3138 = vmatpush.msra.mxu0 0.0
    %3139 = vmatpush.msra.mxu0 0.0
    %3140 = vmatpush.msra.mxu0 0.0
    %3141 = vmatpush.msra.mxu0 0.0
    %v3142 = vand.u32 %v473, 4294901760
    %3143 = vmatpush.msra.mxu0 %v3142
    %v3144 = vand.u32 %v472, 4294901760
    %3145 = vmatpush.msra.mxu0 %v3144
    %v3146 = vand.u32 %v471, 4294901760
    %3147 = vmatpush.msra.mxu0 %v3146
    %v3148 = vand.u32 %v470, 4294901760
    %3149 = vmatpush.msra.mxu0 %v3148
    %v3150 = vand.u32 %v3028, 4294901760
    %v3151 = vsub.f32 %v3028, %v3150
    %v3152 = vand.u32 %v3151, 4294901760
    %3153 = vmatmul.f32.gmra.mxu0 %v3152
    %v3154 = vpop.f32.mrf.mxu0
    %v3155 = vadd.f32 %v3128, %v3154
    %3156 = vdwg.mxu0
    %3157 = vmatpush.msra.mxu0 0.0
    %3158 = vmatpush.msra.mxu0 0.0
    %3159 = vmatpush.msra.mxu0 0.0
    %3160 = vmatpush.msra.mxu0 0.0
    %3161 = vmatpush.msra.mxu0 0.0
    %3162 = vmatpush.msra.mxu0 0.0
    %3163 = vmatpush.msra.mxu0 0.0
    %3164 = vmatpush.msra.mxu0 0.0
    %3165 = vmatpush.msra.mxu0 0.0
    %3166 = vmatpush.msra.mxu0 0.0
    %3167 = vmatpush.msra.mxu0 0.0
    %3168 = vmatpush.msra.mxu0 0.0
    %v3169 = vand.u32 %v473, 4294901760
    %v3170 = vsub.f32 %v473, %v3169
    %v3171 = vand.u32 %v3170, 4294901760
    %3172 = vmatpush.msra.mxu0 %v3171
    %v3173 = vand.u32 %v472, 4294901760
    %v3174 = vsub.f32 %v472, %v3173
    %v3175 = vand.u32 %v3174, 4294901760
    %3176 = vmatpush.msra.mxu0 %v3175
    %v3177 = vand.u32 %v471, 4294901760
    %v3178 = vsub.f32 %v471, %v3177
    %v3179 = vand.u32 %v3178, 4294901760
    %3180 = vmatpush.msra.mxu0 %v3179
    %v3181 = vand.u32 %v470, 4294901760
    %v3182 = vsub.f32 %v470, %v3181
    %v3183 = vand.u32 %v3182, 4294901760
    %3184 = vmatpush.msra.mxu0 %v3183
    %v3185 = vand.u32 %v3028, 4294901760
    %3186 = vmatmul.f32.gmra.mxu0 %v3185
    %v3187 = vpop.f32.mrf.mxu0
    %v3188 = vadd.f32 %v3155, %v3187
    %3189 = vdwg.mxu0
    %3190 = vmatpush.msra.mxu0 0.0
    %3191 = vmatpush.msra.mxu0 0.0
    %3192 = vmatpush.msra.mxu0 0.0
    %3193 = vmatpush.msra.mxu0 0.0
    %3194 = vmatpush.msra.mxu0 0.0
    %3195 = vmatpush.msra.mxu0 0.0
    %3196 = vmatpush.msra.mxu0 0.0
    %3197 = vmatpush.msra.mxu0 0.0
    %3198 = vmatpush.msra.mxu0 0.0
    %3199 = vmatpush.msra.mxu0 0.0
    %3200 = vmatpush.msra.mxu0 0.0
    %3201 = vmatpush.msra.mxu0 0.0
    %v3202 = vand.u32 %v473, 4294901760
    %3203 = vmatpush.msra.mxu0 %v3202
    %v3204 = vand.u32 %v472, 4294901760
    %3205 = vmatpush.msra.mxu0 %v3204
    %v3206 = vand.u32 %v471, 4294901760
    %3207 = vmatpush.msra.mxu0 %v3206
    %v3208 = vand.u32 %v470, 4294901760
    %3209 = vmatpush.msra.mxu0 %v3208
    %v3210 = vand.u32 %v3028, 4294901760
    %3211 = vmatmul.f32.gmra.mxu0 %v3210
    %v3212 = vpop.f32.mrf.mxu0
    %v3213 = vadd.f32 %v3188, %v3212
    %3214 = vdwg.mxu0
    %v3216 = vrot.slane %v3213, 2
    %v3217 = vrot.slane %v3213, 3
    %v3218 = vrot.slane %v3213, 4
    %v3219 = vrot.slane %v3213, 5
    %v3220 = vrot.slane %v3213, 6
    %v3221 = vrot.slane %v3213, 7
    %v3222 = vrot.slane %v3213, 1
    %v3231 = vadd.f32 %v440, %v3216
    %v3232 = vadd.f32 %v444, %v3217
    %v3233 = vadd.f32 %v448, %v3218
    %v3234 = vadd.f32 %v452, %v3219
    %v3235 = vadd.f32 %v456, %v3220
    %v3236 = vadd.f32 %v460, %v3221
    %v3237 = vadd.f32 %v464, %v3213
    %v3238 = vadd.f32 %v468, %v3222
    %v3239 = vmul.f32 %v3231, %v479
    %v3240 = vmul.f32 %v3232, %v479
    %v3241 = vmul.f32 %v3233, %v479
    %v3242 = vmul.f32 %v3234, %v479
    %v3243 = vmul.f32 %v3235, %v479
    %v3244 = vmul.f32 %v3236, %v479
    %v3245 = vmul.f32 %v3237, %v479
    %v3246 = vmul.f32 %v3238, %v479
    %v3247 = vtanh.pop %v3239
    %v3248 = vtanh.pop %v3240
    %v3249 = vtanh.pop %v3241
    %v3250 = vtanh.pop %v3242
    %v3251 = vtanh.pop %v3243
    %v3252 = vtanh.pop %v3244
    %v3253 = vtanh.pop %v3245
    %v3254 = vtanh.pop %v3246
    %v3255 = vmul.f32 %v3247, %v479
    %v3256 = vmul.f32 %v3248, %v479
    %v3257 = vmul.f32 %v3249, %v479
    %v3258 = vmul.f32 %v3250, %v479
    %v3259 = vmul.f32 %v3251, %v479
    %v3260 = vmul.f32 %v3252, %v479
    %v3261 = vmul.f32 %v3253, %v479
    %v3262 = vmul.f32 %v3254, %v479
    %v3263 = vadd.f32 %v3255, %v480
    %v3264 = vadd.f32 %v3256, %v480
    %v3265 = vadd.f32 %v3257, %v480
    %v3266 = vadd.f32 %v3258, %v480
    %v3267 = vadd.f32 %v3259, %v480
    %v3268 = vadd.f32 %v3260, %v480
    %v3269 = vadd.f32 %v3261, %v480
    %v3270 = vadd.f32 %v3262, %v480
    %v3279 = vrot.slane %v2948, 7
    %v3280 = vrot.slane %v2949, 7
    %v3281 = vrot.slane %v2950, 7
    %v3282 = vrot.slane %v2951, 7
    %v3283 = vrot.slane %v2952, 7
    %v3284 = vrot.slane %v2953, 7
    %v3285 = vrot.slane %v2954, 7
    %v3286 = vrot.slane %v2955, 7
    %v3295 = vmul.f32 %v3263, %v3279
    %v3296 = vmul.f32 %v3264, %v3280
    %v3297 = vmul.f32 %v3265, %v3281
    %v3298 = vmul.f32 %v3266, %v3282
    %v3299 = vmul.f32 %v3267, %v3283
    %v3300 = vmul.f32 %v3268, %v3284
    %v3301 = vmul.f32 %v3269, %v3285
    %v3302 = vmul.f32 %v3270, %v3286
    %3311 = vrot.lane.b32.xlu0 %v3263, 64
    %v3312 = vpop.permute.xlu0 %3311
    %3313 = vrot.lane.b32.xlu0 %v3264, 64
    %v3314 = vpop.permute.xlu0 %3313
    %3315 = vrot.lane.b32.xlu0 %v3265, 64
    %v3316 = vpop.permute.xlu0 %3315
    %3317 = vrot.lane.b32.xlu0 %v3266, 64
    %v3318 = vpop.permute.xlu0 %3317
    %3319 = vrot.lane.b32.xlu0 %v3267, 64
    %v3320 = vpop.permute.xlu0 %3319
    %3321 = vrot.lane.b32.xlu0 %v3268, 64
    %v3322 = vpop.permute.xlu0 %3321
    %3323 = vrot.lane.b32.xlu0 %v3269, 64
    %v3324 = vpop.permute.xlu0 %3323
    %3325 = vrot.lane.b32.xlu0 %v3270, 64
    %v3326 = vpop.permute.xlu0 %3325
    %v3335 = vmul.f32 %v3263, %v3312
    %v3336 = vmul.f32 %v3264, %v3314
    %v3337 = vmul.f32 %v3265, %v3316
    %v3338 = vmul.f32 %v3266, %v3318
    %v3339 = vmul.f32 %v3267, %v3320
    %v3340 = vmul.f32 %v3268, %v3322
    %v3341 = vmul.f32 %v3269, %v3324
    %v3342 = vmul.f32 %v3270, %v3326
    %3351 = vrot.lane.b32.xlu0 %v3335, 32
    %v3352 = vpop.permute.xlu0 %3351
    %3353 = vrot.lane.b32.xlu0 %v3336, 32
    %v3354 = vpop.permute.xlu0 %3353
    %3355 = vrot.lane.b32.xlu0 %v3337, 32
    %v3356 = vpop.permute.xlu0 %3355
    %3357 = vrot.lane.b32.xlu0 %v3338, 32
    %v3358 = vpop.permute.xlu0 %3357
    %3359 = vrot.lane.b32.xlu0 %v3339, 32
    %v3360 = vpop.permute.xlu0 %3359
    %3361 = vrot.lane.b32.xlu0 %v3340, 32
    %v3362 = vpop.permute.xlu0 %3361
    %3363 = vrot.lane.b32.xlu0 %v3341, 32
    %v3364 = vpop.permute.xlu0 %3363
    %3365 = vrot.lane.b32.xlu0 %v3342, 32
    %v3366 = vpop.permute.xlu0 %3365
    %v3375 = vadd.f32 %v3295, %v3352
    %v3376 = vadd.f32 %v3296, %v3354
    %v3377 = vadd.f32 %v3297, %v3356
    %v3378 = vadd.f32 %v3298, %v3358
    %v3379 = vadd.f32 %v3299, %v3360
    %v3380 = vadd.f32 %v3300, %v3362
    %v3381 = vadd.f32 %v3301, %v3364
    %v3382 = vadd.f32 %v3302, %v3366
    %v3383 = vtanh.pop %v3375
    %v3384 = vtanh.pop %v3376
    %v3385 = vtanh.pop %v3377
    %v3386 = vtanh.pop %v3378
    %v3387 = vtanh.pop %v3379
    %v3388 = vtanh.pop %v3380
    %v3389 = vtanh.pop %v3381
    %v3390 = vtanh.pop %v3382
    %3399 = vrot.lane.b32.xlu0 %v3383, 64
    %v3400 = vpop.permute.xlu0 %3399
    %3401 = vrot.lane.b32.xlu0 %v3384, 64
    %v3402 = vpop.permute.xlu0 %3401
    %3403 = vrot.lane.b32.xlu0 %v3385, 64
    %v3404 = vpop.permute.xlu0 %3403
    %3405 = vrot.lane.b32.xlu0 %v3386, 64
    %v3406 = vpop.permute.xlu0 %3405
    %3407 = vrot.lane.b32.xlu0 %v3387, 64
    %v3408 = vpop.permute.xlu0 %3407
    %3409 = vrot.lane.b32.xlu0 %v3388, 64
    %v3410 = vpop.permute.xlu0 %3409
    %3411 = vrot.lane.b32.xlu0 %v3389, 64
    %v3412 = vpop.permute.xlu0 %3411
    %3413 = vrot.lane.b32.xlu0 %v3390, 64
    %v3414 = vpop.permute.xlu0 %3413
    %v3423 = vmul.f32 %v3263, %v3400
    %v3424 = vmul.f32 %v3264, %v3402
    %v3425 = vmul.f32 %v3265, %v3404
    %v3426 = vmul.f32 %v3266, %v3406
    %v3427 = vmul.f32 %v3267, %v3408
    %v3428 = vmul.f32 %v3268, %v3410
    %v3429 = vmul.f32 %v3269, %v3412
    %v3430 = vmul.f32 %v3270, %v3414
    %v3439 = vrot.slane %v3423, 6
    %v3440 = vrot.slane %v3424, 5
    %v3441 = vsel %vm871, %v3440, %v3439
    %v3442 = vrot.slane %v3425, 4
    %v3443 = vsel %vm874, %v3442, %v3441
    %v3444 = vrot.slane %v3426, 3
    %v3445 = vsel %vm877, %v3444, %v3443
    %v3446 = vrot.slane %v3427, 2
    %v3447 = vsel %vm880, %v3446, %v3445
    %v3448 = vrot.slane %v3428, 1
    %v3449 = vsel %vm883, %v3448, %v3447
    %v3450 = vsel %vm886, %v3429, %v3449
    %v3451 = vrot.slane %v3430, 7
    %v3452 = vsel %vm889, %v3451, %v3450
    %3453 = vrot.lane.b32.xlu0 %v3452, 32
    %v3454 = vpop.permute.xlu0 %3453
    %v3455 = vsel %vm481, %v3454, 0
    %3457 = vmatpush.msra.mxu0 0.0
    %3458 = vmatpush.msra.mxu0 0.0
    %3459 = vmatpush.msra.mxu0 0.0
    %3460 = vmatpush.msra.mxu0 0.0
    %3461 = vmatpush.msra.mxu0 0.0
    %3462 = vmatpush.msra.mxu0 0.0
    %3463 = vmatpush.msra.mxu0 0.0
    %3464 = vmatpush.msra.mxu0 0.0
    %3465 = vmatpush.msra.mxu0 0.0
    %3466 = vmatpush.msra.mxu0 0.0
    %3467 = vmatpush.msra.mxu0 0.0
    %3468 = vmatpush.msra.mxu0 0.0
    %v3469 = vand.u32 %v473, 4294901760
    %3470 = vmatpush.msra.mxu0 %v3469
    %v3471 = vand.u32 %v472, 4294901760
    %3472 = vmatpush.msra.mxu0 %v3471
    %v3473 = vand.u32 %v471, 4294901760
    %3474 = vmatpush.msra.mxu0 %v3473
    %v3475 = vand.u32 %v470, 4294901760
    %3476 = vmatpush.msra.mxu0 %v3475
    %v3477 = vand.u32 %v3455, 4294901760
    %v3478 = vsub.f32 %v3455, %v3477
    %v3479 = vand.u32 %v3478, 4294901760
    %v3480 = vsub.f32 %v3478, %v3479
    %v3481 = vand.u32 %v3480, 4294901760
    %3482 = vmatmul.f32.gmra.mxu0 %v3481
    %v3483 = vpop.f32.mrf.mxu0
    %v3484 = vadd.f32 0.0, %v3483
    %3485 = vdwg.mxu0
    %3486 = vmatpush.msra.mxu0 0.0
    %3487 = vmatpush.msra.mxu0 0.0
    %3488 = vmatpush.msra.mxu0 0.0
    %3489 = vmatpush.msra.mxu0 0.0
    %3490 = vmatpush.msra.mxu0 0.0
    %3491 = vmatpush.msra.mxu0 0.0
    %3492 = vmatpush.msra.mxu0 0.0
    %3493 = vmatpush.msra.mxu0 0.0
    %3494 = vmatpush.msra.mxu0 0.0
    %3495 = vmatpush.msra.mxu0 0.0
    %3496 = vmatpush.msra.mxu0 0.0
    %3497 = vmatpush.msra.mxu0 0.0
    %v3498 = vand.u32 %v473, 4294901760
    %v3499 = vsub.f32 %v473, %v3498
    %v3500 = vand.u32 %v3499, 4294901760
    %v3501 = vsub.f32 %v3499, %v3500
    %v3502 = vand.u32 %v3501, 4294901760
    %3503 = vmatpush.msra.mxu0 %v3502
    %v3504 = vand.u32 %v472, 4294901760
    %v3505 = vsub.f32 %v472, %v3504
    %v3506 = vand.u32 %v3505, 4294901760
    %v3507 = vsub.f32 %v3505, %v3506
    %v3508 = vand.u32 %v3507, 4294901760
    %3509 = vmatpush.msra.mxu0 %v3508
    %v3510 = vand.u32 %v471, 4294901760
    %v3511 = vsub.f32 %v471, %v3510
    %v3512 = vand.u32 %v3511, 4294901760
    %v3513 = vsub.f32 %v3511, %v3512
    %v3514 = vand.u32 %v3513, 4294901760
    %3515 = vmatpush.msra.mxu0 %v3514
    %v3516 = vand.u32 %v470, 4294901760
    %v3517 = vsub.f32 %v470, %v3516
    %v3518 = vand.u32 %v3517, 4294901760
    %v3519 = vsub.f32 %v3517, %v3518
    %v3520 = vand.u32 %v3519, 4294901760
    %3521 = vmatpush.msra.mxu0 %v3520
    %v3522 = vand.u32 %v3455, 4294901760
    %3523 = vmatmul.f32.gmra.mxu0 %v3522
    %v3524 = vpop.f32.mrf.mxu0
    %v3525 = vadd.f32 %v3484, %v3524
    %3526 = vdwg.mxu0
    %3527 = vmatpush.msra.mxu0 0.0
    %3528 = vmatpush.msra.mxu0 0.0
    %3529 = vmatpush.msra.mxu0 0.0
    %3530 = vmatpush.msra.mxu0 0.0
    %3531 = vmatpush.msra.mxu0 0.0
    %3532 = vmatpush.msra.mxu0 0.0
    %3533 = vmatpush.msra.mxu0 0.0
    %3534 = vmatpush.msra.mxu0 0.0
    %3535 = vmatpush.msra.mxu0 0.0
    %3536 = vmatpush.msra.mxu0 0.0
    %3537 = vmatpush.msra.mxu0 0.0
    %3538 = vmatpush.msra.mxu0 0.0
    %v3539 = vand.u32 %v473, 4294901760
    %v3540 = vsub.f32 %v473, %v3539
    %3541 = vmatpush.msra.mxu0 %v3540
    %v3542 = vand.u32 %v472, 4294901760
    %v3543 = vsub.f32 %v472, %v3542
    %3544 = vmatpush.msra.mxu0 %v3543
    %v3545 = vand.u32 %v471, 4294901760
    %v3546 = vsub.f32 %v471, %v3545
    %3547 = vmatpush.msra.mxu0 %v3546
    %v3548 = vand.u32 %v470, 4294901760
    %v3549 = vsub.f32 %v470, %v3548
    %3550 = vmatpush.msra.mxu0 %v3549
    %v3551 = vand.u32 %v3455, 4294901760
    %v3552 = vsub.f32 %v3455, %v3551
    %3553 = vmatmul.f32.gmra.mxu0 %v3552
    %v3554 = vpop.f32.mrf.mxu0
    %v3555 = vadd.f32 %v3525, %v3554
    %3556 = vdwg.mxu0
    %3557 = vmatpush.msra.mxu0 0.0
    %3558 = vmatpush.msra.mxu0 0.0
    %3559 = vmatpush.msra.mxu0 0.0
    %3560 = vmatpush.msra.mxu0 0.0
    %3561 = vmatpush.msra.mxu0 0.0
    %3562 = vmatpush.msra.mxu0 0.0
    %3563 = vmatpush.msra.mxu0 0.0
    %3564 = vmatpush.msra.mxu0 0.0
    %3565 = vmatpush.msra.mxu0 0.0
    %3566 = vmatpush.msra.mxu0 0.0
    %3567 = vmatpush.msra.mxu0 0.0
    %3568 = vmatpush.msra.mxu0 0.0
    %v3569 = vand.u32 %v473, 4294901760
    %3570 = vmatpush.msra.mxu0 %v3569
    %v3571 = vand.u32 %v472, 4294901760
    %3572 = vmatpush.msra.mxu0 %v3571
    %v3573 = vand.u32 %v471, 4294901760
    %3574 = vmatpush.msra.mxu0 %v3573
    %v3575 = vand.u32 %v470, 4294901760
    %3576 = vmatpush.msra.mxu0 %v3575
    %v3577 = vand.u32 %v3455, 4294901760
    %v3578 = vsub.f32 %v3455, %v3577
    %v3579 = vand.u32 %v3578, 4294901760
    %3580 = vmatmul.f32.gmra.mxu0 %v3579
    %v3581 = vpop.f32.mrf.mxu0
    %v3582 = vadd.f32 %v3555, %v3581
    %3583 = vdwg.mxu0
    %3584 = vmatpush.msra.mxu0 0.0
    %3585 = vmatpush.msra.mxu0 0.0
    %3586 = vmatpush.msra.mxu0 0.0
    %3587 = vmatpush.msra.mxu0 0.0
    %3588 = vmatpush.msra.mxu0 0.0
    %3589 = vmatpush.msra.mxu0 0.0
    %3590 = vmatpush.msra.mxu0 0.0
    %3591 = vmatpush.msra.mxu0 0.0
    %3592 = vmatpush.msra.mxu0 0.0
    %3593 = vmatpush.msra.mxu0 0.0
    %3594 = vmatpush.msra.mxu0 0.0
    %3595 = vmatpush.msra.mxu0 0.0
    %v3596 = vand.u32 %v473, 4294901760
    %v3597 = vsub.f32 %v473, %v3596
    %v3598 = vand.u32 %v3597, 4294901760
    %3599 = vmatpush.msra.mxu0 %v3598
    %v3600 = vand.u32 %v472, 4294901760
    %v3601 = vsub.f32 %v472, %v3600
    %v3602 = vand.u32 %v3601, 4294901760
    %3603 = vmatpush.msra.mxu0 %v3602
    %v3604 = vand.u32 %v471, 4294901760
    %v3605 = vsub.f32 %v471, %v3604
    %v3606 = vand.u32 %v3605, 4294901760
    %3607 = vmatpush.msra.mxu0 %v3606
    %v3608 = vand.u32 %v470, 4294901760
    %v3609 = vsub.f32 %v470, %v3608
    %v3610 = vand.u32 %v3609, 4294901760
    %3611 = vmatpush.msra.mxu0 %v3610
    %v3612 = vand.u32 %v3455, 4294901760
    %3613 = vmatmul.f32.gmra.mxu0 %v3612
    %v3614 = vpop.f32.mrf.mxu0
    %v3615 = vadd.f32 %v3582, %v3614
    %3616 = vdwg.mxu0
    %3617 = vmatpush.msra.mxu0 0.0
    %3618 = vmatpush.msra.mxu0 0.0
    %3619 = vmatpush.msra.mxu0 0.0
    %3620 = vmatpush.msra.mxu0 0.0
    %3621 = vmatpush.msra.mxu0 0.0
    %3622 = vmatpush.msra.mxu0 0.0
    %3623 = vmatpush.msra.mxu0 0.0
    %3624 = vmatpush.msra.mxu0 0.0
    %3625 = vmatpush.msra.mxu0 0.0
    %3626 = vmatpush.msra.mxu0 0.0
    %3627 = vmatpush.msra.mxu0 0.0
    %3628 = vmatpush.msra.mxu0 0.0
    %v3629 = vand.u32 %v473, 4294901760
    %3630 = vmatpush.msra.mxu0 %v3629
    %v3631 = vand.u32 %v472, 4294901760
    %3632 = vmatpush.msra.mxu0 %v3631
    %v3633 = vand.u32 %v471, 4294901760
    %3634 = vmatpush.msra.mxu0 %v3633
    %v3635 = vand.u32 %v470, 4294901760
    %3636 = vmatpush.msra.mxu0 %v3635
    %v3637 = vand.u32 %v3455, 4294901760
    %3638 = vmatmul.f32.gmra.mxu0 %v3637
    %v3639 = vpop.f32.mrf.mxu0
    %v3640 = vadd.f32 %v3615, %v3639
    %3641 = vdwg.mxu0
    %v3643 = vrot.slane %v3640, 1
    %v3644 = vrot.slane %v3640, 2
    %v3645 = vrot.slane %v3640, 3
    %v3646 = vrot.slane %v3640, 4
    %v3647 = vrot.slane %v3640, 5
    %v3648 = vrot.slane %v3640, 6
    %v3649 = vrot.slane %v3640, 7
    %v3658 = vadd.f32 %v440, %v3643
    %v3659 = vadd.f32 %v444, %v3644
    %v3660 = vadd.f32 %v448, %v3645
    %v3661 = vadd.f32 %v452, %v3646
    %v3662 = vadd.f32 %v456, %v3647
    %v3663 = vadd.f32 %v460, %v3648
    %v3664 = vadd.f32 %v464, %v3649
    %v3665 = vadd.f32 %v468, %v3640
    %v3666 = vmul.f32 %v3658, %v479
    %v3667 = vmul.f32 %v3659, %v479
    %v3668 = vmul.f32 %v3660, %v479
    %v3669 = vmul.f32 %v3661, %v479
    %v3670 = vmul.f32 %v3662, %v479
    %v3671 = vmul.f32 %v3663, %v479
    %v3672 = vmul.f32 %v3664, %v479
    %v3673 = vmul.f32 %v3665, %v479
    %v3674 = vtanh.pop %v3666
    %v3675 = vtanh.pop %v3667
    %v3676 = vtanh.pop %v3668
    %v3677 = vtanh.pop %v3669
    %v3678 = vtanh.pop %v3670
    %v3679 = vtanh.pop %v3671
    %v3680 = vtanh.pop %v3672
    %v3681 = vtanh.pop %v3673
    %v3682 = vmul.f32 %v3674, %v479
    %v3683 = vmul.f32 %v3675, %v479
    %v3684 = vmul.f32 %v3676, %v479
    %v3685 = vmul.f32 %v3677, %v479
    %v3686 = vmul.f32 %v3678, %v479
    %v3687 = vmul.f32 %v3679, %v479
    %v3688 = vmul.f32 %v3680, %v479
    %v3689 = vmul.f32 %v3681, %v479
    %v3690 = vadd.f32 %v3682, %v480
    %v3691 = vadd.f32 %v3683, %v480
    %v3692 = vadd.f32 %v3684, %v480
    %v3693 = vadd.f32 %v3685, %v480
    %v3694 = vadd.f32 %v3686, %v480
    %v3695 = vadd.f32 %v3687, %v480
    %v3696 = vadd.f32 %v3688, %v480
    %v3697 = vadd.f32 %v3689, %v480
    %v3706 = vrot.slane %v3375, 7
    %v3707 = vrot.slane %v3376, 7
    %v3708 = vrot.slane %v3377, 7
    %v3709 = vrot.slane %v3378, 7
    %v3710 = vrot.slane %v3379, 7
    %v3711 = vrot.slane %v3380, 7
    %v3712 = vrot.slane %v3381, 7
    %v3713 = vrot.slane %v3382, 7
    %v3722 = vmul.f32 %v3690, %v3706
    %v3723 = vmul.f32 %v3691, %v3707
    %v3724 = vmul.f32 %v3692, %v3708
    %v3725 = vmul.f32 %v3693, %v3709
    %v3726 = vmul.f32 %v3694, %v3710
    %v3727 = vmul.f32 %v3695, %v3711
    %v3728 = vmul.f32 %v3696, %v3712
    %v3729 = vmul.f32 %v3697, %v3713
    %3738 = vrot.lane.b32.xlu0 %v3690, 64
    %v3739 = vpop.permute.xlu0 %3738
    %3740 = vrot.lane.b32.xlu0 %v3691, 64
    %v3741 = vpop.permute.xlu0 %3740
    %3742 = vrot.lane.b32.xlu0 %v3692, 64
    %v3743 = vpop.permute.xlu0 %3742
    %3744 = vrot.lane.b32.xlu0 %v3693, 64
    %v3745 = vpop.permute.xlu0 %3744
    %3746 = vrot.lane.b32.xlu0 %v3694, 64
    %v3747 = vpop.permute.xlu0 %3746
    %3748 = vrot.lane.b32.xlu0 %v3695, 64
    %v3749 = vpop.permute.xlu0 %3748
    %3750 = vrot.lane.b32.xlu0 %v3696, 64
    %v3751 = vpop.permute.xlu0 %3750
    %3752 = vrot.lane.b32.xlu0 %v3697, 64
    %v3753 = vpop.permute.xlu0 %3752
    %v3762 = vmul.f32 %v3690, %v3739
    %v3763 = vmul.f32 %v3691, %v3741
    %v3764 = vmul.f32 %v3692, %v3743
    %v3765 = vmul.f32 %v3693, %v3745
    %v3766 = vmul.f32 %v3694, %v3747
    %v3767 = vmul.f32 %v3695, %v3749
    %v3768 = vmul.f32 %v3696, %v3751
    %v3769 = vmul.f32 %v3697, %v3753
    %3778 = vrot.lane.b32.xlu0 %v3762, 32
    %v3779 = vpop.permute.xlu0 %3778
    %3780 = vrot.lane.b32.xlu0 %v3763, 32
    %v3781 = vpop.permute.xlu0 %3780
    %3782 = vrot.lane.b32.xlu0 %v3764, 32
    %v3783 = vpop.permute.xlu0 %3782
    %3784 = vrot.lane.b32.xlu0 %v3765, 32
    %v3785 = vpop.permute.xlu0 %3784
    %3786 = vrot.lane.b32.xlu0 %v3766, 32
    %v3787 = vpop.permute.xlu0 %3786
    %3788 = vrot.lane.b32.xlu0 %v3767, 32
    %v3789 = vpop.permute.xlu0 %3788
    %3790 = vrot.lane.b32.xlu0 %v3768, 32
    %v3791 = vpop.permute.xlu0 %3790
    %3792 = vrot.lane.b32.xlu0 %v3769, 32
    %v3793 = vpop.permute.xlu0 %3792
    %v3802 = vadd.f32 %v3722, %v3779
    %v3803 = vadd.f32 %v3723, %v3781
    %v3804 = vadd.f32 %v3724, %v3783
    %v3805 = vadd.f32 %v3725, %v3785
    %v3806 = vadd.f32 %v3726, %v3787
    %v3807 = vadd.f32 %v3727, %v3789
    %v3808 = vadd.f32 %v3728, %v3791
    %v3809 = vadd.f32 %v3729, %v3793
    %v3810 = vtanh.pop %v3802
    %v3811 = vtanh.pop %v3803
    %v3812 = vtanh.pop %v3804
    %v3813 = vtanh.pop %v3805
    %v3814 = vtanh.pop %v3806
    %v3815 = vtanh.pop %v3807
    %v3816 = vtanh.pop %v3808
    %v3817 = vtanh.pop %v3809
    %3826 = vrot.lane.b32.xlu0 %v3810, 64
    %v3827 = vpop.permute.xlu0 %3826
    %3828 = vrot.lane.b32.xlu0 %v3811, 64
    %v3829 = vpop.permute.xlu0 %3828
    %3830 = vrot.lane.b32.xlu0 %v3812, 64
    %v3831 = vpop.permute.xlu0 %3830
    %3832 = vrot.lane.b32.xlu0 %v3813, 64
    %v3833 = vpop.permute.xlu0 %3832
    %3834 = vrot.lane.b32.xlu0 %v3814, 64
    %v3835 = vpop.permute.xlu0 %3834
    %3836 = vrot.lane.b32.xlu0 %v3815, 64
    %v3837 = vpop.permute.xlu0 %3836
    %3838 = vrot.lane.b32.xlu0 %v3816, 64
    %v3839 = vpop.permute.xlu0 %3838
    %3840 = vrot.lane.b32.xlu0 %v3817, 64
    %v3841 = vpop.permute.xlu0 %3840
    %v3850 = vmul.f32 %v3690, %v3827
    %v3851 = vmul.f32 %v3691, %v3829
    %v3852 = vmul.f32 %v3692, %v3831
    %v3853 = vmul.f32 %v3693, %v3833
    %v3854 = vmul.f32 %v3694, %v3835
    %v3855 = vmul.f32 %v3695, %v3837
    %v3856 = vmul.f32 %v3696, %v3839
    %v3857 = vmul.f32 %v3697, %v3841
    %v3858 = vld [vmem:[%s4] sm:$0xff]
    %v3859 = vld [vmem:[%s4 + $0x8] sm:$0xff]
    %v3860 = vld [vmem:[%s4 + $0x10] sm:$0xff]
    %v3861 = vld [vmem:[%s4 + $0x18] sm:$0xff]
    %v3862 = vld [vmem:[%s5] sm:$0x1]
    %v3864 = vperm.slane %v3862, 0
    %v3874 = vrot.slane %v3850, 7
    %v3875 = vrot.slane %v3851, 6
    %v3876 = vsel %vm871, %v3875, %v3874
    %v3877 = vrot.slane %v3852, 5
    %v3878 = vsel %vm874, %v3877, %v3876
    %v3879 = vrot.slane %v3853, 4
    %v3880 = vsel %vm877, %v3879, %v3878
    %v3881 = vrot.slane %v3854, 3
    %v3882 = vsel %vm880, %v3881, %v3880
    %v3883 = vrot.slane %v3855, 2
    %v3884 = vsel %vm883, %v3883, %v3882
    %v3885 = vrot.slane %v3856, 1
    %v3886 = vsel %vm886, %v3885, %v3884
    %v3887 = vsel %vm889, %v3857, %v3886
    %3888 = vrot.lane.b32.xlu0 %v3887, 32
    %v3889 = vpop.permute.xlu0 %3888
    %v3890 = vsel %vm481, %v3889, 0
    %3892 = vmatpush.msra.mxu0 0.0
    %3893 = vmatpush.msra.mxu0 0.0
    %3894 = vmatpush.msra.mxu0 0.0
    %3895 = vmatpush.msra.mxu0 0.0
    %3896 = vmatpush.msra.mxu0 0.0
    %3897 = vmatpush.msra.mxu0 0.0
    %3898 = vmatpush.msra.mxu0 0.0
    %3899 = vmatpush.msra.mxu0 0.0
    %3900 = vmatpush.msra.mxu0 0.0
    %3901 = vmatpush.msra.mxu0 0.0
    %3902 = vmatpush.msra.mxu0 0.0
    %3903 = vmatpush.msra.mxu0 0.0
    %v3904 = vand.u32 %v3861, 4294901760
    %3905 = vmatpush.msra.mxu0 %v3904
    %v3906 = vand.u32 %v3860, 4294901760
    %3907 = vmatpush.msra.mxu0 %v3906
    %v3908 = vand.u32 %v3859, 4294901760
    %3909 = vmatpush.msra.mxu0 %v3908
    %v3910 = vand.u32 %v3858, 4294901760
    %3911 = vmatpush.msra.mxu0 %v3910
    %v3912 = vand.u32 %v3890, 4294901760
    %v3913 = vsub.f32 %v3890, %v3912
    %v3914 = vand.u32 %v3913, 4294901760
    %v3915 = vsub.f32 %v3913, %v3914
    %v3916 = vand.u32 %v3915, 4294901760
    %3917 = vmatmul.f32.gmra.mxu0 %v3916
    %v3918 = vpop.f32.mrf.mxu0
    %v3919 = vadd.f32 %v3864, %v3918
    %3920 = vdwg.mxu0
    %3921 = vmatpush.msra.mxu0 0.0
    %3922 = vmatpush.msra.mxu0 0.0
    %3923 = vmatpush.msra.mxu0 0.0
    %3924 = vmatpush.msra.mxu0 0.0
    %3925 = vmatpush.msra.mxu0 0.0
    %3926 = vmatpush.msra.mxu0 0.0
    %3927 = vmatpush.msra.mxu0 0.0
    %3928 = vmatpush.msra.mxu0 0.0
    %3929 = vmatpush.msra.mxu0 0.0
    %3930 = vmatpush.msra.mxu0 0.0
    %3931 = vmatpush.msra.mxu0 0.0
    %3932 = vmatpush.msra.mxu0 0.0
    %v3933 = vand.u32 %v3861, 4294901760
    %v3934 = vsub.f32 %v3861, %v3933
    %v3935 = vand.u32 %v3934, 4294901760
    %v3936 = vsub.f32 %v3934, %v3935
    %v3937 = vand.u32 %v3936, 4294901760
    %3938 = vmatpush.msra.mxu0 %v3937
    %v3939 = vand.u32 %v3860, 4294901760
    %v3940 = vsub.f32 %v3860, %v3939
    %v3941 = vand.u32 %v3940, 4294901760
    %v3942 = vsub.f32 %v3940, %v3941
    %v3943 = vand.u32 %v3942, 4294901760
    %3944 = vmatpush.msra.mxu0 %v3943
    %v3945 = vand.u32 %v3859, 4294901760
    %v3946 = vsub.f32 %v3859, %v3945
    %v3947 = vand.u32 %v3946, 4294901760
    %v3948 = vsub.f32 %v3946, %v3947
    %v3949 = vand.u32 %v3948, 4294901760
    %3950 = vmatpush.msra.mxu0 %v3949
    %v3951 = vand.u32 %v3858, 4294901760
    %v3952 = vsub.f32 %v3858, %v3951
    %v3953 = vand.u32 %v3952, 4294901760
    %v3954 = vsub.f32 %v3952, %v3953
    %v3955 = vand.u32 %v3954, 4294901760
    %3956 = vmatpush.msra.mxu0 %v3955
    %v3957 = vand.u32 %v3890, 4294901760
    %3958 = vmatmul.f32.gmra.mxu0 %v3957
    %v3959 = vpop.f32.mrf.mxu0
    %v3960 = vadd.f32 %v3919, %v3959
    %3961 = vdwg.mxu0
    %3962 = vmatpush.msra.mxu0 0.0
    %3963 = vmatpush.msra.mxu0 0.0
    %3964 = vmatpush.msra.mxu0 0.0
    %3965 = vmatpush.msra.mxu0 0.0
    %3966 = vmatpush.msra.mxu0 0.0
    %3967 = vmatpush.msra.mxu0 0.0
    %3968 = vmatpush.msra.mxu0 0.0
    %3969 = vmatpush.msra.mxu0 0.0
    %3970 = vmatpush.msra.mxu0 0.0
    %3971 = vmatpush.msra.mxu0 0.0
    %3972 = vmatpush.msra.mxu0 0.0
    %3973 = vmatpush.msra.mxu0 0.0
    %v3974 = vand.u32 %v3861, 4294901760
    %v3975 = vsub.f32 %v3861, %v3974
    %3976 = vmatpush.msra.mxu0 %v3975
    %v3977 = vand.u32 %v3860, 4294901760
    %v3978 = vsub.f32 %v3860, %v3977
    %3979 = vmatpush.msra.mxu0 %v3978
    %v3980 = vand.u32 %v3859, 4294901760
    %v3981 = vsub.f32 %v3859, %v3980
    %3982 = vmatpush.msra.mxu0 %v3981
    %v3983 = vand.u32 %v3858, 4294901760
    %v3984 = vsub.f32 %v3858, %v3983
    %3985 = vmatpush.msra.mxu0 %v3984
    %v3986 = vand.u32 %v3890, 4294901760
    %v3987 = vsub.f32 %v3890, %v3986
    %3988 = vmatmul.f32.gmra.mxu0 %v3987
    %v3989 = vpop.f32.mrf.mxu0
    %v3990 = vadd.f32 %v3960, %v3989
    %3991 = vdwg.mxu0
    %3992 = vmatpush.msra.mxu0 0.0
    %3993 = vmatpush.msra.mxu0 0.0
    %3994 = vmatpush.msra.mxu0 0.0
    %3995 = vmatpush.msra.mxu0 0.0
    %3996 = vmatpush.msra.mxu0 0.0
    %3997 = vmatpush.msra.mxu0 0.0
    %3998 = vmatpush.msra.mxu0 0.0
    %3999 = vmatpush.msra.mxu0 0.0
    %4000 = vmatpush.msra.mxu0 0.0
    %4001 = vmatpush.msra.mxu0 0.0
    %4002 = vmatpush.msra.mxu0 0.0
    %4003 = vmatpush.msra.mxu0 0.0
    %v4004 = vand.u32 %v3861, 4294901760
    %4005 = vmatpush.msra.mxu0 %v4004
    %v4006 = vand.u32 %v3860, 4294901760
    %4007 = vmatpush.msra.mxu0 %v4006
    %v4008 = vand.u32 %v3859, 4294901760
    %4009 = vmatpush.msra.mxu0 %v4008
    %v4010 = vand.u32 %v3858, 4294901760
    %4011 = vmatpush.msra.mxu0 %v4010
    %v4012 = vand.u32 %v3890, 4294901760
    %v4013 = vsub.f32 %v3890, %v4012
    %v4014 = vand.u32 %v4013, 4294901760
    %4015 = vmatmul.f32.gmra.mxu0 %v4014
    %v4016 = vpop.f32.mrf.mxu0
    %v4017 = vadd.f32 %v3990, %v4016
    %4018 = vdwg.mxu0
    %4019 = vmatpush.msra.mxu0 0.0
    %4020 = vmatpush.msra.mxu0 0.0
    %4021 = vmatpush.msra.mxu0 0.0
    %4022 = vmatpush.msra.mxu0 0.0
    %4023 = vmatpush.msra.mxu0 0.0
    %4024 = vmatpush.msra.mxu0 0.0
    %4025 = vmatpush.msra.mxu0 0.0
    %4026 = vmatpush.msra.mxu0 0.0
    %4027 = vmatpush.msra.mxu0 0.0
    %4028 = vmatpush.msra.mxu0 0.0
    %4029 = vmatpush.msra.mxu0 0.0
    %4030 = vmatpush.msra.mxu0 0.0
    %v4031 = vand.u32 %v3861, 4294901760
    %v4032 = vsub.f32 %v3861, %v4031
    %v4033 = vand.u32 %v4032, 4294901760
    %4034 = vmatpush.msra.mxu0 %v4033
    %v4035 = vand.u32 %v3860, 4294901760
    %v4036 = vsub.f32 %v3860, %v4035
    %v4037 = vand.u32 %v4036, 4294901760
    %4038 = vmatpush.msra.mxu0 %v4037
    %v4039 = vand.u32 %v3859, 4294901760
    %v4040 = vsub.f32 %v3859, %v4039
    %v4041 = vand.u32 %v4040, 4294901760
    %4042 = vmatpush.msra.mxu0 %v4041
    %v4043 = vand.u32 %v3858, 4294901760
    %v4044 = vsub.f32 %v3858, %v4043
    %v4045 = vand.u32 %v4044, 4294901760
    %4046 = vmatpush.msra.mxu0 %v4045
    %v4047 = vand.u32 %v3890, 4294901760
    %4048 = vmatmul.f32.gmra.mxu0 %v4047
    %v4049 = vpop.f32.mrf.mxu0
    %v4050 = vadd.f32 %v4017, %v4049
    %4051 = vdwg.mxu0
    %4052 = vmatpush.msra.mxu0 0.0
    %4053 = vmatpush.msra.mxu0 0.0
    %4054 = vmatpush.msra.mxu0 0.0
    %4055 = vmatpush.msra.mxu0 0.0
    %4056 = vmatpush.msra.mxu0 0.0
    %4057 = vmatpush.msra.mxu0 0.0
    %4058 = vmatpush.msra.mxu0 0.0
    %4059 = vmatpush.msra.mxu0 0.0
    %4060 = vmatpush.msra.mxu0 0.0
    %4061 = vmatpush.msra.mxu0 0.0
    %4062 = vmatpush.msra.mxu0 0.0
    %4063 = vmatpush.msra.mxu0 0.0
    %v4064 = vand.u32 %v3861, 4294901760
    %4065 = vmatpush.msra.mxu0 %v4064
    %v4066 = vand.u32 %v3860, 4294901760
    %4067 = vmatpush.msra.mxu0 %v4066
    %v4068 = vand.u32 %v3859, 4294901760
    %4069 = vmatpush.msra.mxu0 %v4068
    %v4070 = vand.u32 %v3858, 4294901760
    %4071 = vmatpush.msra.mxu0 %v4070
    %v4072 = vand.u32 %v3890, 4294901760
    %4073 = vmatmul.f32.gmra.mxu0 %v4072
    %v4074 = vpop.f32.mrf.mxu0
    %v4075 = vadd.f32 %v4050, %v4074
    %4076 = vdwg.mxu0
    %vm4077 = vcmask 31744
    %4078 = vst.msk [vmem:[%s6] sm:$0xff] %vm4077, %v4075
    // Predicated region
    $region34: #{lstm_model_forward.1} parent=1 // pred_check
      _
    $region35: #{lstm_model_forward.1} parent=1 // pred_check_branch
      %4080 = sbr.rel (0) target = $region37
    $region36: #{lstm_model_forward.1} parent=1 // pred_region
      _
    $region37: #{lstm_model_forward.1} parent=1 // pred_fallthru
      _
    // Predicated region
    $region38: #{lstm_model_forward.1} parent=1 // pred_check
      _
    $region39: #{lstm_model_forward.1} parent=1 // pred_check_branch
      %4082 = sbr.rel (0) target = $region41
    $region40: #{lstm_model_forward.1} parent=1 // pred_region
      _
    $region41: #{lstm_model_forward.1} parent=1 // pred_fallthru
      _
    %4083 = vsyncpa [#allocation3], 1
    %4084 = vsyncpa [#allocation5], 1

</llo_original>
